<compile_context>
chip_gen: v5e
topology: v5e:2x2
jax: 0.10.0
libtpu: 0.0.40
codegen_flags: <defaults>
</compile_context>

<pallas_src>
import jax
import jax.numpy as jnp
from jax.experimental import pallas as pl
from jax.experimental.pallas import tpu as pltpu

EMBEDDING_DIM = 32
NUM_EMBEDDINGS = 512  # unused in forward (embedding table is never applied)

_VMEM_SPEC = pl.BlockSpec(memory_space=pltpu.MemorySpace.VMEM)


# ----------------------------- Pallas kernels -----------------------------

def _deconv_mm_kernel(x_ref, w_ref, o_ref):
    """One row-block of the transposed-conv matmul.

    x_ref: (bm, Cin) bf16     w_ref: (Cin, Kh*Kw*Cout) bf16
    o_ref: (bm, Kh*Kw*Cout) f32   (per-tap contributions, lane order (ky,kx,co))
    """
    o_ref[...] = jnp.dot(x_ref[...], w_ref[...],
                         preferred_element_type=jnp.float32)


def _tail_kernel(x5_ref, v_ref, ahb_ref, b_ref, o_ref):
    """Fused ConvTranspose2d(16,1,k=3,s=1,p=1) + bilinear(28,28) + sigmoid.

    x5_ref : (N*H, 3*(W+2)*Cin)  3 row-shifted views of the zero-padded layer-4
                                 output, channels innermost.
    v_ref  : (3*(W+2)*Cin, 28)   3x3 conv kernel folded with the W-axis bilinear
                                 matrix (align_corners=True).
    ahb_ref: (N*28, N*H)         block-diagonal H-axis bilinear matrix.
    b_ref  : (1, 28)             layer-5 bias (bilinear rows sum to 1).
    o_ref  : (N*28, 28)
    """
    ow = jnp.dot(x5_ref[...], v_ref[...], preferred_element_type=jnp.float32)
    pre = jnp.dot(ahb_ref[...], ow, preferred_element_type=jnp.float32)
    o_ref[...] = jax.nn.sigmoid(pre + b_ref[...])


# ------------------------------- wrappers ---------------------------------

def _pick_block_m(m):
    """Largest power-of-two row tile <= 512 that divides m (multiple of 16)."""
    if m % 16 != 0:
        return m  # full-array block
    bm = 512
    while m % bm != 0:
        bm //= 2
    return bm


def _shift_plus(t, ax):
    """out[i] = t[i-1] along axis ax, zero at i == 0."""
    pad = [(0, 0)] * t.ndim
    pad[ax] = (1, 0)
    sl = [slice(None)] * t.ndim
    sl[ax] = slice(0, t.shape[ax])
    return jnp.pad(t, pad)[tuple(sl)]


def _shift_minus(t, ax):
    """out[i] = t[i+1] along axis ax, zero at i == size-1."""
    pad = [(0, 0)] * t.ndim
    pad[ax] = (0, 1)
    sl = [slice(None)] * t.ndim
    sl[ax] = slice(1, t.shape[ax] + 1)
    return jnp.pad(t, pad)[tuple(sl)]


def conv_transpose2d_s2(h, w, b):
    """ConvTranspose2d(k=4, s=2, p=1), NHWC: one matmul + sub-pixel overlap-add.

    h: (N, Hin, Win, Cin)   w: (Cin, Cout, 4, 4) torch layout   b: (Cout,)
    returns (N, 2*Hin, 2*Win, Cout)
    """
    N, Hin, Win, Cin = h.shape
    _, Cout, Kh, Kw = w.shape
    M, KK = N * Hin * Win, Kh * Kw * Cout

    x2 = h.reshape(M, Cin).astype(jnp.bfloat16)
    wmat = w.transpose(0, 2, 3, 1).reshape(Cin, KK).astype(jnp.bfloat16)

    bm = _pick_block_m(M)
    y = pl.pallas_call(
        _deconv_mm_kernel,
        out_shape=jax.ShapeDtypeStruct((M, KK), jnp.float32),
        grid=(M // bm,),
        in_specs=[pl.BlockSpec((bm, Cin), lambda i: (i, 0)),
                  pl.BlockSpec((Cin, KK), lambda i: (0, 0))],
        out_specs=pl.BlockSpec((bm, KK), lambda i: (i, 0)),
        compiler_params=pltpu.CompilerParams(
            dimension_semantics=("parallel",)),
    )(x2, wmat)

    # sub-pixel overlap-add: out[n, 2a+py, 2b+px, c]
    #   py=0: ky=1 @ iy=a, ky=3 @ iy=a-1 ;  py=1: ky=2 @ iy=a, ky=0 @ iy=a+1
    y6 = y.reshape(N, Hin, Win, Kh, Kw, Cout)
    h0 = y6[:, :, :, 1] + _shift_plus(y6[:, :, :, 3], 1)      # even output rows
    h1 = y6[:, :, :, 2] + _shift_minus(y6[:, :, :, 0], 1)     # odd output rows
    p00 = h0[:, :, :, 1] + _shift_plus(h0[:, :, :, 3], 2)
    p01 = h0[:, :, :, 2] + _shift_minus(h0[:, :, :, 0], 2)
    p10 = h1[:, :, :, 1] + _shift_plus(h1[:, :, :, 3], 2)
    p11 = h1[:, :, :, 2] + _shift_minus(h1[:, :, :, 0], 2)
    ph = jnp.stack([p00, p01, p10, p11], axis=0).reshape(
        2, 2, N, Hin, Win, Cout)
    out = ph.transpose(2, 3, 0, 4, 1, 5).reshape(N, 2 * Hin, 2 * Win, Cout)
    return out + b.reshape(1, 1, 1, Cout)


def _bilinear_matrix(out_size, in_size):
    """Row-stochastic bilinear weight matrix (align_corners=True)."""
    if in_size == 1:
        return jnp.ones((out_size, 1), jnp.float32)
    src = jnp.arange(out_size, dtype=jnp.float32) * (in_size - 1) / (out_size - 1)
    lo = jnp.clip(jnp.floor(src).astype(jnp.int32), 0, in_size - 2)
    frac = src - lo.astype(jnp.float32)
    rows = jnp.arange(out_size)
    A = jnp.zeros((out_size, in_size), jnp.float32)
    A = A.at[rows, lo].add(1.0 - frac)
    A = A.at[rows, lo + 1].add(frac)
    return A


def decoder_tail(h, w5, b5, out_hw=(28, 28)):
    """Fused deconv5 (16->1, k=3, s=1, p=1) + bilinear resize + sigmoid.

    h: (N, H, W, 16)   w5: (16, 1, 3, 3)   b5: (1,)   returns (N, 1, *out_hw)
    """
    N, H, W, Cin = h.shape
    Hout, Wout = out_hw

    # correlation kernel (flipped transposed-conv weight): wf[ky, kx, ci]
    wf = jnp.flip(w5[:, 0], axis=(1, 2)).transpose(1, 2, 0)       # (3, 3, Cin)

    ah = _bilinear_matrix(Hout, H)                                # (Hout, H)
    aw = _bilinear_matrix(Wout, W)                                # (Wout, W)

    # V[(ky, x', ci), ox] = sum_kx wf[ky,kx,ci] * aw[ox, x'-kx]
    awt = aw.T                                                    # (W, Wout)
    v = jnp.zeros((3, W + 2, Cin, Wout), jnp.float32)
    for kx in range(3):
        aw_sh = jnp.pad(awt, ((kx, 2 - kx), (0, 0)))              # (W+2, Wout)
        v = v + wf[:, kx, :][:, None, :, None] * aw_sh[None, :, None, :]
    v = v.reshape(3 * (W + 2) * Cin, Wout)

    # three row-shifted views of the zero-padded input, channels innermost
    hp = jnp.pad(h, ((0, 0), (1, 1), (1, 1), (0, 0)))             # (N, H+2, W+2, Cin)
    x5 = jnp.concatenate(
        [hp[:, ky:ky + H].reshape(N, H, (W + 2) * Cin) for ky in range(3)],
        axis=-1).reshape(N * H, 3 * (W + 2) * Cin)

    ahb = jnp.kron(jnp.eye(N, dtype=jnp.float32), ah)             # (N*Hout, N*H)
    b_row = jnp.broadcast_to(b5.reshape(1, 1), (1, Wout))

    out = pl.pallas_call(
        _tail_kernel,
        out_shape=jax.ShapeDtypeStruct((N * Hout, Wout), jnp.float32),
        in_specs=[_VMEM_SPEC, _VMEM_SPEC, _VMEM_SPEC, _VMEM_SPEC],
        out_specs=_VMEM_SPEC,
    )(x5, v, ahb, b_row)
    return out.reshape(N, 1, Hout, Wout)


# --------------------------- model definition -----------------------------

_DECONV_SPECS = [  # (Cin, Cout, K, stride, padding) — mirrors Decoder.__init__
    (EMBEDDING_DIM, 128, 4, 2, 1),
    (128, 64, 4, 2, 1),
    (64, 32, 4, 2, 1),
    (32, 16, 4, 2, 1),
    (16, 1, 3, 1, 1),
]


def init_decoder_params(key):
    params = []
    for i, (cin, cout, k, s, p) in enumerate(_DECONV_SPECS):
        kw_, kb_ = jax.random.split(jax.random.fold_in(key, i))
        bound = 1.0 / float(cin * k * k) ** 0.5
        w = jax.random.uniform(kw_, (cin, cout, k, k), jnp.float32, -bound, bound)
        b = jax.random.uniform(kb_, (cout,), jnp.float32, -bound, bound)
        params.append((w, b))
    return params


def decoder_forward(x_nhwc, params):
    h = x_nhwc.astype(jnp.float32)
    for (w, b) in params[:-1]:        # four k=4, s=2, p=1 layers
        h = conv_transpose2d_s2(h, w, b)
    w5, b5 = params[-1]               # k=3, s=1, p=1 layer, fused with interp+sigmoid
    return decoder_tail(h, w5, b5, (28, 28))


# ------------------------ pure-XLA reference check ------------------------

def _ref_forward(x_nhwc, params):
    h = x_nhwc.astype(jnp.float32)
    for (w, b), (_, _, k, s, p) in zip(params, _DECONV_SPECS):
        rhs = jnp.flip(w, (2, 3)).transpose(2, 3, 0, 1)   # HWIO
        pad = k - 1 - p
        h = jax.lax.conv_general_dilated(
            h, rhs, window_strides=(1, 1),
            padding=((pad, pad), (pad, pad)),
            lhs_dilation=(s, s),
            dimension_numbers=("NHWC", "HWIO", "NHWC"),
            precision=jax.lax.Precision.HIGHEST) + b
    N, H, W, _ = h.shape
    ah = _bilinear_matrix(28, H)
    aw = _bilinear_matrix(28, W)
    out = jnp.einsum("oh,nhw,pw->nop", ah, h[..., 0], aw,
                     precision=jax.lax.Precision.HIGHEST)
    return jax.nn.sigmoid(out)[:, None]


if __name__ == "__main__":
    key = jax.random.PRNGKey(0)
    kx, kp = jax.random.split(key)
    # x: (B, H, W, embedding_dim) — the NHWC tensor the torch forward permutes.
    x = jax.random.normal(kx, (2, 2, 2, EMBEDDING_DIM), jnp.float32)
    params = init_decoder_params(kp)

    fwd = jax.jit(decoder_forward)
    out = jax.block_until_ready(fwd(x, params))
    assert out.shape == (2, 1, 28, 28), out.shape

    ref = _ref_forward(x, params)
    err = float(jnp.max(jnp.abs(out - ref)))
    assert jnp.allclose(out, ref, atol=5e-3, rtol=5e-3), err

    print("KERNEL_OK")
</pallas_src>

<mosaic_0001>
module attributes {stable_mosaic.version = 11 : i64} {
  func.func @_deconv_mm_kernel(%arg0: i32, %arg1: memref<8x32xbf16, #tpu.memory_space<vmem>>, %arg2: memref<32x2048xbf16, #tpu.memory_space<vmem>>, %arg3: memref<8x2048xf32, #tpu.memory_space<vmem>>) attributes {dimension_semantics = [#tpu.dimension_semantics<parallel>], iteration_bounds = array<i64: 1>, scalar_prefetch = 0 : i64, scratch_operands = 0 : i64, tpu.core_type = #tpu.core_type<tc>, window_params = [{transform_indices = @transform_0, window_bounds = array<i64: 8, 32>}, {pipeline_mode = #tpu.pipeline_mode<synchronous>, transform_indices = @transform_1, window_bounds = array<i64: 32, 2048>}, {transform_indices = @transform_2, window_bounds = array<i64: 8, 2048>}]} {
    %c0 = arith.constant 0 : index
    %c0_0 = arith.constant 0 : index
    %0 = vector.load %arg1[%c0, %c0_0] : memref<8x32xbf16, #tpu.memory_space<vmem>>, vector<8x32xbf16>
    %c0_1 = arith.constant 0 : index
    %c0_2 = arith.constant 0 : index
    %1 = vector.load %arg2[%c0_1, %c0_2] : memref<32x2048xbf16, #tpu.memory_space<vmem>>, vector<32x2048xbf16>
    %cst = arith.constant dense<0.000000e+00> : vector<8x2048xf32>
    %2 = tpu.matmul %0, %1, %cst {dimension_numbers = #tpu.dot_dimension_numbers<[1], [0], [0], [1], [0, 0, 1, 1], [], []>} : vector<8x32xbf16>, vector<32x2048xbf16>, vector<8x2048xf32> -> vector<8x2048xf32>
    %c0_3 = arith.constant 0 : index
    %c0_4 = arith.constant 0 : index
    %3 = vector.load %arg3[%c0_3, %c0_4] : memref<8x2048xf32, #tpu.memory_space<vmem>>, vector<8x2048xf32>
    tpu.vector_store %arg3[%c0_3, %c0_4], %2 {strides = array<i32>} : memref<8x2048xf32, #tpu.memory_space<vmem>>, vector<8x2048xf32>,
    return
  }
  func.func @transform_0(%arg0: i32) -> (i32, i32) {
    %c0_i32 = arith.constant 0 : i32
    %c0_i32_0 = arith.constant 0 : i32
    return %arg0, %c0_i32 : i32, i32
  }
  func.func @transform_1(%arg0: i32) -> (i32, i32) {
    %c0_i32 = arith.constant 0 : i32
    %c0_i32_0 = arith.constant 0 : i32
    %c0_i32_1 = arith.constant 0 : i32
    return %c0_i32, %c0_i32_0 : i32, i32
  }
  func.func @transform_2(%arg0: i32) -> (i32, i32) {
    %c0_i32 = arith.constant 0 : i32
    %c0_i32_0 = arith.constant 0 : i32
    return %arg0, %c0_i32 : i32, i32
  }
}

module attributes {stable_mosaic.version = 11 : i64} {
  func.func @_deconv_mm_kernel(%arg0: i32, %arg1: memref<32x128xbf16, #tpu.memory_space<vmem>>, %arg2: memref<128x1024xbf16, #tpu.memory_space<vmem>>, %arg3: memref<32x1024xf32, #tpu.memory_space<vmem>>) attributes {dimension_semantics = [#tpu.dimension_semantics<parallel>], iteration_bounds = array<i64: 1>, scalar_prefetch = 0 : i64, scratch_operands = 0 : i64, tpu.core_type = #tpu.core_type<tc>, window_params = [{transform_indices = @transform_0, window_bounds = array<i64: 32, 128>}, {pipeline_mode = #tpu.pipeline_mode<synchronous>, transform_indices = @transform_1, window_bounds = array<i64: 128, 1024>}, {transform_indices = @transform_2, window_bounds = array<i64: 32, 1024>}]} {
    %c0 = arith.constant 0 : index
    %c0_0 = arith.constant 0 : index
    %0 = vector.load %arg1[%c0, %c0_0] : memref<32x128xbf16, #tpu.memory_space<vmem>>, vector<32x128xbf16>
    %c0_1 = arith.constant 0 : index
    %c0_2 = arith.constant 0 : index
    %1 = vector.load %arg2[%c0_1, %c0_2] : memref<128x1024xbf16, #tpu.memory_space<vmem>>, vector<128x1024xbf16>
    %cst = arith.constant dense<0.000000e+00> : vector<32x1024xf32>
    %2 = tpu.matmul %0, %1, %cst {dimension_numbers = #tpu.dot_dimension_numbers<[1], [0], [0], [1], [0, 0, 1, 1], [], []>} : vector<32x128xbf16>, vector<128x1024xbf16>, vector<32x1024xf32> -> vector<32x1024xf32>
    %c0_3 = arith.constant 0 : index
    %c0_4 = arith.constant 0 : index
    %3 = vector.load %arg3[%c0_3, %c0_4] : memref<32x1024xf32, #tpu.memory_space<vmem>>, vector<32x1024xf32>
    tpu.vector_store %arg3[%c0_3, %c0_4], %2 {strides = array<i32>} : memref<32x1024xf32, #tpu.memory_space<vmem>>, vector<32x1024xf32>,
    return
  }
  func.func @transform_0(%arg0: i32) -> (i32, i32) {
    %c0_i32 = arith.constant 0 : i32
    %c0_i32_0 = arith.constant 0 : i32
    return %arg0, %c0_i32 : i32, i32
  }
  func.func @transform_1(%arg0: i32) -> (i32, i32) {
    %c0_i32 = arith.constant 0 : i32
    %c0_i32_0 = arith.constant 0 : i32
    %c0_i32_1 = arith.constant 0 : i32
    return %c0_i32, %c0_i32_0 : i32, i32
  }
  func.func @transform_2(%arg0: i32) -> (i32, i32) {
    %c0_i32 = arith.constant 0 : i32
    %c0_i32_0 = arith.constant 0 : i32
    return %arg0, %c0_i32 : i32, i32
  }
}

module attributes {stable_mosaic.version = 11 : i64} {
  func.func @_deconv_mm_kernel(%arg0: i32, %arg1: memref<128x64xbf16, #tpu.memory_space<vmem>>, %arg2: memref<64x512xbf16, #tpu.memory_space<vmem>>, %arg3: memref<128x512xf32, #tpu.memory_space<vmem>>) attributes {dimension_semantics = [#tpu.dimension_semantics<parallel>], iteration_bounds = array<i64: 1>, scalar_prefetch = 0 : i64, scratch_operands = 0 : i64, tpu.core_type = #tpu.core_type<tc>, window_params = [{transform_indices = @transform_0, window_bounds = array<i64: 128, 64>}, {pipeline_mode = #tpu.pipeline_mode<synchronous>, transform_indices = @transform_1, window_bounds = array<i64: 64, 512>}, {transform_indices = @transform_2, window_bounds = array<i64: 128, 512>}]} {
    %c0 = arith.constant 0 : index
    %c0_0 = arith.constant 0 : index
    %0 = vector.load %arg1[%c0, %c0_0] : memref<128x64xbf16, #tpu.memory_space<vmem>>, vector<128x64xbf16>
    %c0_1 = arith.constant 0 : index
    %c0_2 = arith.constant 0 : index
    %1 = vector.load %arg2[%c0_1, %c0_2] : memref<64x512xbf16, #tpu.memory_space<vmem>>, vector<64x512xbf16>
    %cst = arith.constant dense<0.000000e+00> : vector<128x512xf32>
    %2 = tpu.matmul %0, %1, %cst {dimension_numbers = #tpu.dot_dimension_numbers<[1], [0], [0], [1], [0, 0, 1, 1], [], []>} : vector<128x64xbf16>, vector<64x512xbf16>, vector<128x512xf32> -> vector<128x512xf32>
    %c0_3 = arith.constant 0 : index
    %c0_4 = arith.constant 0 : index
    %3 = vector.load %arg3[%c0_3, %c0_4] : memref<128x512xf32, #tpu.memory_space<vmem>>, vector<128x512xf32>
    tpu.vector_store %arg3[%c0_3, %c0_4], %2 {strides = array<i32>} : memref<128x512xf32, #tpu.memory_space<vmem>>, vector<128x512xf32>,
    return
  }
  func.func @transform_0(%arg0: i32) -> (i32, i32) {
    %c0_i32 = arith.constant 0 : i32
    %c0_i32_0 = arith.constant 0 : i32
    return %arg0, %c0_i32 : i32, i32
  }
  func.func @transform_1(%arg0: i32) -> (i32, i32) {
    %c0_i32 = arith.constant 0 : i32
    %c0_i32_0 = arith.constant 0 : i32
    %c0_i32_1 = arith.constant 0 : i32
    return %c0_i32, %c0_i32_0 : i32, i32
  }
  func.func @transform_2(%arg0: i32) -> (i32, i32) {
    %c0_i32 = arith.constant 0 : i32
    %c0_i32_0 = arith.constant 0 : i32
    return %arg0, %c0_i32 : i32, i32
  }
}

module attributes {stable_mosaic.version = 11 : i64} {
  func.func @_deconv_mm_kernel(%arg0: i32, %arg1: memref<512x32xbf16, #tpu.memory_space<vmem>>, %arg2: memref<32x256xbf16, #tpu.memory_space<vmem>>, %arg3: memref<512x256xf32, #tpu.memory_space<vmem>>) attributes {dimension_semantics = [#tpu.dimension_semantics<parallel>], iteration_bounds = array<i64: 1>, scalar_prefetch = 0 : i64, scratch_operands = 0 : i64, tpu.core_type = #tpu.core_type<tc>, window_params = [{transform_indices = @transform_0, window_bounds = array<i64: 512, 32>}, {pipeline_mode = #tpu.pipeline_mode<synchronous>, transform_indices = @transform_1, window_bounds = array<i64: 32, 256>}, {transform_indices = @transform_2, window_bounds = array<i64: 512, 256>}]} {
    %c0 = arith.constant 0 : index
    %c0_0 = arith.constant 0 : index
    %0 = vector.load %arg1[%c0, %c0_0] : memref<512x32xbf16, #tpu.memory_space<vmem>>, vector<512x32xbf16>
    %c0_1 = arith.constant 0 : index
    %c0_2 = arith.constant 0 : index
    %1 = vector.load %arg2[%c0_1, %c0_2] : memref<32x256xbf16, #tpu.memory_space<vmem>>, vector<32x256xbf16>
    %cst = arith.constant dense<0.000000e+00> : vector<512x256xf32>
    %2 = tpu.matmul %0, %1, %cst {dimension_numbers = #tpu.dot_dimension_numbers<[1], [0], [0], [1], [0, 0, 1, 1], [], []>} : vector<512x32xbf16>, vector<32x256xbf16>, vector<512x256xf32> -> vector<512x256xf32>
    %c0_3 = arith.constant 0 : index
    %c0_4 = arith.constant 0 : index
    %3 = vector.load %arg3[%c0_3, %c0_4] : memref<512x256xf32, #tpu.memory_space<vmem>>, vector<512x256xf32>
    tpu.vector_store %arg3[%c0_3, %c0_4], %2 {strides = array<i32>} : memref<512x256xf32, #tpu.memory_space<vmem>>, vector<512x256xf32>,
    return
  }
  func.func @transform_0(%arg0: i32) -> (i32, i32) {
    %c0_i32 = arith.constant 0 : i32
    %c0_i32_0 = arith.constant 0 : i32
    return %arg0, %c0_i32 : i32, i32
  }
  func.func @transform_1(%arg0: i32) -> (i32, i32) {
    %c0_i32 = arith.constant 0 : i32
    %c0_i32_0 = arith.constant 0 : i32
    %c0_i32_1 = arith.constant 0 : i32
    return %c0_i32, %c0_i32_0 : i32, i32
  }
  func.func @transform_2(%arg0: i32) -> (i32, i32) {
    %c0_i32 = arith.constant 0 : i32
    %c0_i32_0 = arith.constant 0 : i32
    return %arg0, %c0_i32 : i32, i32
  }
}

module attributes {stable_mosaic.version = 11 : i64} {
  func.func @_tail_kernel(%arg0: memref<64x1632xf32, #tpu.memory_space<vmem>>, %arg1: memref<1632x28xf32, #tpu.memory_space<vmem>>, %arg2: memref<56x64xf32, #tpu.memory_space<vmem>>, %arg3: memref<1x28xf32, #tpu.memory_space<vmem>>, %arg4: memref<56x28xf32, #tpu.memory_space<vmem>>) attributes {dimension_semantics = [], scalar_prefetch = 0 : i64, scratch_operands = 0 : i64, tpu.core_type = #tpu.core_type<tc>} {
    %c0 = arith.constant 0 : index
    %c0_0 = arith.constant 0 : index
    %0 = vector.load %arg0[%c0, %c0_0] : memref<64x1632xf32, #tpu.memory_space<vmem>>, vector<64x1632xf32>
    %c0_1 = arith.constant 0 : index
    %c0_2 = arith.constant 0 : index
    %1 = vector.load %arg1[%c0_1, %c0_2] : memref<1632x28xf32, #tpu.memory_space<vmem>>, vector<1632x28xf32>
    %cst = arith.constant dense<0.000000e+00> : vector<64x28xf32>
    %2 = tpu.matmul %0, %1, %cst {dimension_numbers = #tpu.dot_dimension_numbers<[1], [0], [0], [1], [0, 0, 1, 1], [], []>} : vector<64x1632xf32>, vector<1632x28xf32>, vector<64x28xf32> -> vector<64x28xf32>
    %c0_3 = arith.constant 0 : index
    %c0_4 = arith.constant 0 : index
    %3 = vector.load %arg2[%c0_3, %c0_4] : memref<56x64xf32, #tpu.memory_space<vmem>>, vector<56x64xf32>
    %cst_5 = arith.constant dense<0.000000e+00> : vector<56x28xf32>
    %4 = tpu.matmul %3, %2, %cst_5 {dimension_numbers = #tpu.dot_dimension_numbers<[1], [0], [0], [1], [0, 0, 1, 1], [], []>} : vector<56x64xf32>, vector<64x28xf32>, vector<56x28xf32> -> vector<56x28xf32>
    %c0_6 = arith.constant 0 : index
    %c0_7 = arith.constant 0 : index
    %5 = vector.load %arg3[%c0_6, %c0_7] : memref<1x28xf32, #tpu.memory_space<vmem>>, vector<1x28xf32>
    %6 = vector.broadcast %5 : vector<1x28xf32> to vector<56x28xf32>
    %7 = arith.addf %4, %6 : vector<56x28xf32>
    %8 = arith.negf %7 : vector<56x28xf32>
    %9 = math.exp %8 : vector<56x28xf32>
    %cst_8 = arith.constant 1.000000e+00 : f32
    %10 = vector.broadcast %cst_8 : f32 to vector<56x28xf32>
    %11 = arith.addf %10, %9 : vector<56x28xf32>
    %12 = arith.divf %10, %11 : vector<56x28xf32>
    %c0_9 = arith.constant 0 : index
    %c0_10 = arith.constant 0 : index
    %13 = vector.load %arg4[%c0_9, %c0_10] : memref<56x28xf32, #tpu.memory_space<vmem>>, vector<56x28xf32>
    tpu.vector_store %arg4[%c0_9, %c0_10], %12 {strides = array<i32>} : memref<56x28xf32, #tpu.memory_space<vmem>>, vector<56x28xf32>,
    return
  }
}

</mosaic_0001>

<llo_original>
// kernel: decoder_forward.5
$region0: #{decoder_forward.5}
  #allocation0 [shape = 'u32[]', space=smem, size = 0x4, offset = 0x4, fixed_abs, tag = 'smem constant byte address 0x4 - core index']
  #allocation1 [shape = 'u32[72,128]{1,0:T(1,128)}', space=vmem, size = 0x9000, scoped, tag = 'internal scratch']
  %s0 = inlined_call_operand.vmem [shape: bf16[8,32], index: 0, kind: input, shape index: {}]
  %s1 = inlined_call_operand.vmem [shape: bf16[32,2048], index: 1, kind: input, shape index: {}]
  %s2 = inlined_call_operand.vmem [shape: f32[8,2048], index: 2, kind: output, shape index: {}]
  %s3 = sld [smem:[#allocation0]]
  $region18: #{decoder_forward.5} parent=0
    _
  %s5 = ssub.s32 1, %s3
  %s6 = scalar_select 0, %s5, %s3
  // Predicated region
  $region2: #{decoder_forward.5} parent=0 // pred_check
    _
  $region3: #{decoder_forward.5} parent=0 // pred_check_branch
    %8 = sbr.rel (0) target = $region5
  $region4: #{decoder_forward.5} parent=0 // pred_region
    _
  $region5: #{decoder_forward.5} parent=0 // pred_fallthru
    _
  // Predicated region
  $region6: #{decoder_forward.5} parent=0 // pred_check
    _
  $region7: #{decoder_forward.5} parent=0 // pred_check_branch
    %10 = sbr.rel (0) target = $region9
  $region8: #{decoder_forward.5} parent=0 // pred_region
    _
  $region9: #{decoder_forward.5} parent=0 // pred_fallthru
    _
  %v12 = vld [vmem:[%s0] sm:$0xf]
  %v13 = vld [vmem:[%s1] sm:$0xff]
  %v14 = vld [vmem:[%s1 + $0x8] sm:$0xff]
  %v15 = vld [vmem:[%s1 + $0x10] sm:$0xff]
  %v16 = vld [vmem:[%s1 + $0x18] sm:$0xff]
  %v17 = vld [vmem:[%s1 + $0x20] sm:$0xff]
  %v18 = vld [vmem:[%s1 + $0x28] sm:$0xff]
  %v19 = vld [vmem:[%s1 + $0x30] sm:$0xff]
  %v20 = vld [vmem:[%s1 + $0x38] sm:$0xff]
  %v21 = vld [vmem:[%s1 + $0x40] sm:$0xff]
  %v22 = vld [vmem:[%s1 + $0x48] sm:$0xff]
  %v23 = vld [vmem:[%s1 + $0x50] sm:$0xff]
  %v24 = vld [vmem:[%s1 + $0x58] sm:$0xff]
  %v25 = vld [vmem:[%s1 + $0x60] sm:$0xff]
  %v26 = vld [vmem:[%s1 + $0x68] sm:$0xff]
  %v27 = vld [vmem:[%s1 + $0x70] sm:$0xff]
  %v28 = vld [vmem:[%s1 + $0x78] sm:$0xff]
  %v29 = vld [vmem:[%s1 + $0x80] sm:$0xff]
  %v30 = vld [vmem:[%s1 + $0x88] sm:$0xff]
  %v31 = vld [vmem:[%s1 + $0x90] sm:$0xff]
  %v32 = vld [vmem:[%s1 + $0x98] sm:$0xff]
  %v33 = vld [vmem:[%s1 + $0xa0] sm:$0xff]
  %v34 = vld [vmem:[%s1 + $0xa8] sm:$0xff]
  %v35 = vld [vmem:[%s1 + $0xb0] sm:$0xff]
  %v36 = vld [vmem:[%s1 + $0xb8] sm:$0xff]
  %v37 = vld [vmem:[%s1 + $0xc0] sm:$0xff]
  %v38 = vld [vmem:[%s1 + $0xc8] sm:$0xff]
  %v39 = vld [vmem:[%s1 + $0xd0] sm:$0xff]
  %v40 = vld [vmem:[%s1 + $0xd8] sm:$0xff]
  %v41 = vld [vmem:[%s1 + $0xe0] sm:$0xff]
  %v42 = vld [vmem:[%s1 + $0xe8] sm:$0xff]
  %v43 = vld [vmem:[%s1 + $0xf0] sm:$0xff]
  %v44 = vld [vmem:[%s1 + $0xf8] sm:$0xff]
  %v77 = vunpack.c.l.b16 %v13
  %v78 = vunpack.c.h.b16 %v13
  %v79 = vunpack.c.l.b16 %v14
  %v80 = vunpack.c.h.b16 %v14
  %v81 = vunpack.c.l.b16 %v15
  %v82 = vunpack.c.h.b16 %v15
  %v83 = vunpack.c.l.b16 %v16
  %v84 = vunpack.c.h.b16 %v16
  %v85 = vunpack.c.l.b16 %v17
  %v86 = vunpack.c.h.b16 %v17
  %v87 = vunpack.c.l.b16 %v18
  %v88 = vunpack.c.h.b16 %v18
  %v89 = vunpack.c.l.b16 %v19
  %v90 = vunpack.c.h.b16 %v19
  %v91 = vunpack.c.l.b16 %v20
  %v92 = vunpack.c.h.b16 %v20
  %v93 = vunpack.c.l.b16 %v21
  %v94 = vunpack.c.h.b16 %v21
  %v95 = vunpack.c.l.b16 %v22
  %v96 = vunpack.c.h.b16 %v22
  %v97 = vunpack.c.l.b16 %v23
  %v98 = vunpack.c.h.b16 %v23
  %v99 = vunpack.c.l.b16 %v24
  %v100 = vunpack.c.h.b16 %v24
  %v101 = vunpack.c.l.b16 %v25
  %v102 = vunpack.c.h.b16 %v25
  %v103 = vunpack.c.l.b16 %v26
  %v104 = vunpack.c.h.b16 %v26
  %v105 = vunpack.c.l.b16 %v27
  %v106 = vunpack.c.h.b16 %v27
  %v107 = vunpack.c.l.b16 %v28
  %v108 = vunpack.c.h.b16 %v28
  %v109 = vunpack.c.l.b16 %v29
  %v110 = vunpack.c.h.b16 %v29
  %v111 = vunpack.c.l.b16 %v30
  %v112 = vunpack.c.h.b16 %v30
  %v113 = vunpack.c.l.b16 %v31
  %v114 = vunpack.c.h.b16 %v31
  %v115 = vunpack.c.l.b16 %v32
  %v116 = vunpack.c.h.b16 %v32
  %v117 = vunpack.c.l.b16 %v33
  %v118 = vunpack.c.h.b16 %v33
  %v119 = vunpack.c.l.b16 %v34
  %v120 = vunpack.c.h.b16 %v34
  %v121 = vunpack.c.l.b16 %v35
  %v122 = vunpack.c.h.b16 %v35
  %v123 = vunpack.c.l.b16 %v36
  %v124 = vunpack.c.h.b16 %v36
  %v125 = vunpack.c.l.b16 %v37
  %v126 = vunpack.c.h.b16 %v37
  %v127 = vunpack.c.l.b16 %v38
  %v128 = vunpack.c.h.b16 %v38
  %v129 = vunpack.c.l.b16 %v39
  %v130 = vunpack.c.h.b16 %v39
  %v131 = vunpack.c.l.b16 %v40
  %v132 = vunpack.c.h.b16 %v40
  %v133 = vunpack.c.l.b16 %v41
  %v134 = vunpack.c.h.b16 %v41
  %v135 = vunpack.c.l.b16 %v42
  %v136 = vunpack.c.h.b16 %v42
  %v137 = vunpack.c.l.b16 %v43
  %v138 = vunpack.c.h.b16 %v43
  %v139 = vunpack.c.l.b16 %v44
  %v140 = vunpack.c.h.b16 %v44
  %v141 = vpack.c.b16 %v93, %v77
  %v142 = vpack.c.b16 %v94, %v78
  %v143 = vpack.c.b16 %v95, %v79
  %v144 = vpack.c.b16 %v96, %v80
  %v145 = vpack.c.b16 %v97, %v81
  %v146 = vpack.c.b16 %v98, %v82
  %v147 = vpack.c.b16 %v99, %v83
  %v148 = vpack.c.b16 %v100, %v84
  %v149 = vpack.c.b16 %v101, %v85
  %v150 = vpack.c.b16 %v102, %v86
  %v151 = vpack.c.b16 %v103, %v87
  %v152 = vpack.c.b16 %v104, %v88
  %v153 = vpack.c.b16 %v105, %v89
  %v154 = vpack.c.b16 %v106, %v90
  %v155 = vpack.c.b16 %v107, %v91
  %v156 = vpack.c.b16 %v108, %v92
  %v157 = vpack.c.b16 %v125, %v109
  %v158 = vpack.c.b16 %v126, %v110
  %v159 = vpack.c.b16 %v127, %v111
  %v160 = vpack.c.b16 %v128, %v112
  %v161 = vpack.c.b16 %v129, %v113
  %v162 = vpack.c.b16 %v130, %v114
  %v163 = vpack.c.b16 %v131, %v115
  %v164 = vpack.c.b16 %v132, %v116
  %v165 = vpack.c.b16 %v133, %v117
  %v166 = vpack.c.b16 %v134, %v118
  %v167 = vpack.c.b16 %v135, %v119
  %v168 = vpack.c.b16 %v136, %v120
  %v169 = vpack.c.b16 %v137, %v121
  %v170 = vpack.c.b16 %v138, %v122
  %v171 = vpack.c.b16 %v139, %v123
  %v172 = vpack.c.b16 %v140, %v124
  %vm205 = vcmask 261120
  %v207 = vsel %vm205, %v12, 0
  %209 = vmatpush.bf16.msra.mxu0 0
  %210 = vmatpush.bf16.msra.mxu0 0
  %211 = vmatpush.bf16.msra.mxu0 0
  %212 = vmatpush.bf16.msra.mxu0 0
  %213 = vmatpush.bf16.msra.mxu0 0
  %214 = vmatpush.bf16.msra.mxu0 0
  %215 = vmatpush.bf16.msra.mxu0 %v157
  %216 = vmatpush.bf16.msra.mxu0 %v141
  %217 = vmatmul.bf16.gmra.mxu0 %v207
  %v218 = vpop.f32.mrf.mxu0
  %v219 = vadd.f32 0.0, %v218
  %v220 = vpop.f32.mrf.mxu0
  %221 = vdwg.mxu0
  %222 = vmatpush.bf16.msra.mxu0 0
  %223 = vmatpush.bf16.msra.mxu0 0
  %224 = vmatpush.bf16.msra.mxu0 0
  %225 = vmatpush.bf16.msra.mxu0 0
  %226 = vmatpush.bf16.msra.mxu0 0
  %227 = vmatpush.bf16.msra.mxu0 0
  %228 = vmatpush.bf16.msra.mxu0 %v158
  %229 = vmatpush.bf16.msra.mxu0 %v142
  %230 = vmatmul.bf16.gmra.mxu0 %v207
  %v231 = vpop.f32.mrf.mxu0
  %v232 = vadd.f32 0.0, %v231
  %v233 = vpop.f32.mrf.mxu0
  %234 = vdwg.mxu0
  %235 = vmatpush.bf16.msra.mxu0 0
  %236 = vmatpush.bf16.msra.mxu0 0
  %237 = vmatpush.bf16.msra.mxu0 0
  %238 = vmatpush.bf16.msra.mxu0 0
  %239 = vmatpush.bf16.msra.mxu0 0
  %240 = vmatpush.bf16.msra.mxu0 0
  %241 = vmatpush.bf16.msra.mxu0 %v159
  %242 = vmatpush.bf16.msra.mxu0 %v143
  %243 = vmatmul.bf16.gmra.mxu0 %v207
  %v244 = vpop.f32.mrf.mxu0
  %v245 = vadd.f32 0.0, %v244
  %v246 = vpop.f32.mrf.mxu0
  %247 = vdwg.mxu0
  %248 = vmatpush.bf16.msra.mxu0 0
  %249 = vmatpush.bf16.msra.mxu0 0
  %250 = vmatpush.bf16.msra.mxu0 0
  %251 = vmatpush.bf16.msra.mxu0 0
  %252 = vmatpush.bf16.msra.mxu0 0
  %253 = vmatpush.bf16.msra.mxu0 0
  %254 = vmatpush.bf16.msra.mxu0 %v160
  %255 = vmatpush.bf16.msra.mxu0 %v144
  %256 = vmatmul.bf16.gmra.mxu0 %v207
  %v257 = vpop.f32.mrf.mxu0
  %v258 = vadd.f32 0.0, %v257
  %v259 = vpop.f32.mrf.mxu0
  %260 = vdwg.mxu0
  %261 = vmatpush.bf16.msra.mxu0 0
  %262 = vmatpush.bf16.msra.mxu0 0
  %263 = vmatpush.bf16.msra.mxu0 0
  %264 = vmatpush.bf16.msra.mxu0 0
  %265 = vmatpush.bf16.msra.mxu0 0
  %266 = vmatpush.bf16.msra.mxu0 0
  %267 = vmatpush.bf16.msra.mxu0 %v161
  %268 = vmatpush.bf16.msra.mxu0 %v145
  %269 = vmatmul.bf16.gmra.mxu0 %v207
  %v270 = vpop.f32.mrf.mxu0
  %v271 = vadd.f32 0.0, %v270
  %v272 = vpop.f32.mrf.mxu0
  %273 = vdwg.mxu0
  %274 = vmatpush.bf16.msra.mxu0 0
  %275 = vmatpush.bf16.msra.mxu0 0
  %276 = vmatpush.bf16.msra.mxu0 0
  %277 = vmatpush.bf16.msra.mxu0 0
  %278 = vmatpush.bf16.msra.mxu0 0
  %279 = vmatpush.bf16.msra.mxu0 0
  %280 = vmatpush.bf16.msra.mxu0 %v162
  %281 = vmatpush.bf16.msra.mxu0 %v146
  %282 = vmatmul.bf16.gmra.mxu0 %v207
  %v283 = vpop.f32.mrf.mxu0
  %v284 = vadd.f32 0.0, %v283
  %v285 = vpop.f32.mrf.mxu0
  %286 = vdwg.mxu0
  %287 = vmatpush.bf16.msra.mxu0 0
  %288 = vmatpush.bf16.msra.mxu0 0
  %289 = vmatpush.bf16.msra.mxu0 0
  %290 = vmatpush.bf16.msra.mxu0 0
  %291 = vmatpush.bf16.msra.mxu0 0
  %292 = vmatpush.bf16.msra.mxu0 0
  %293 = vmatpush.bf16.msra.mxu0 %v163
  %294 = vmatpush.bf16.msra.mxu0 %v147
  %295 = vmatmul.bf16.gmra.mxu0 %v207
  %v296 = vpop.f32.mrf.mxu0
  %v297 = vadd.f32 0.0, %v296
  %v298 = vpop.f32.mrf.mxu0
  %299 = vdwg.mxu0
  %300 = vmatpush.bf16.msra.mxu0 0
  %301 = vmatpush.bf16.msra.mxu0 0
  %302 = vmatpush.bf16.msra.mxu0 0
  %303 = vmatpush.bf16.msra.mxu0 0
  %304 = vmatpush.bf16.msra.mxu0 0
  %305 = vmatpush.bf16.msra.mxu0 0
  %306 = vmatpush.bf16.msra.mxu0 %v164
  %307 = vmatpush.bf16.msra.mxu0 %v148
  %308 = vmatmul.bf16.gmra.mxu0 %v207
  %v309 = vpop.f32.mrf.mxu0
  %v310 = vadd.f32 0.0, %v309
  %v311 = vpop.f32.mrf.mxu0
  %312 = vdwg.mxu0
  %313 = vmatpush.bf16.msra.mxu0 0
  %314 = vmatpush.bf16.msra.mxu0 0
  %315 = vmatpush.bf16.msra.mxu0 0
  %316 = vmatpush.bf16.msra.mxu0 0
  %317 = vmatpush.bf16.msra.mxu0 0
  %318 = vmatpush.bf16.msra.mxu0 0
  %319 = vmatpush.bf16.msra.mxu0 %v165
  %320 = vmatpush.bf16.msra.mxu0 %v149
  %321 = vmatmul.bf16.gmra.mxu0 %v207
  %v322 = vpop.f32.mrf.mxu0
  %v323 = vadd.f32 0.0, %v322
  %v324 = vpop.f32.mrf.mxu0
  %325 = vdwg.mxu0
  %326 = vmatpush.bf16.msra.mxu0 0
  %327 = vmatpush.bf16.msra.mxu0 0
  %328 = vmatpush.bf16.msra.mxu0 0
  %329 = vmatpush.bf16.msra.mxu0 0
  %330 = vmatpush.bf16.msra.mxu0 0
  %331 = vmatpush.bf16.msra.mxu0 0
  %332 = vmatpush.bf16.msra.mxu0 %v166
  %333 = vmatpush.bf16.msra.mxu0 %v150
  %334 = vmatmul.bf16.gmra.mxu0 %v207
  %v335 = vpop.f32.mrf.mxu0
  %v336 = vadd.f32 0.0, %v335
  %v337 = vpop.f32.mrf.mxu0
  %338 = vdwg.mxu0
  %339 = vmatpush.bf16.msra.mxu0 0
  %340 = vmatpush.bf16.msra.mxu0 0
  %341 = vmatpush.bf16.msra.mxu0 0
  %342 = vmatpush.bf16.msra.mxu0 0
  %343 = vmatpush.bf16.msra.mxu0 0
  %344 = vmatpush.bf16.msra.mxu0 0
  %345 = vmatpush.bf16.msra.mxu0 %v167
  %346 = vmatpush.bf16.msra.mxu0 %v151
  %347 = vmatmul.bf16.gmra.mxu0 %v207
  %v348 = vpop.f32.mrf.mxu0
  %v349 = vadd.f32 0.0, %v348
  %v350 = vpop.f32.mrf.mxu0
  %351 = vdwg.mxu0
  %352 = vmatpush.bf16.msra.mxu0 0
  %353 = vmatpush.bf16.msra.mxu0 0
  %354 = vmatpush.bf16.msra.mxu0 0
  %355 = vmatpush.bf16.msra.mxu0 0
  %356 = vmatpush.bf16.msra.mxu0 0
  %357 = vmatpush.bf16.msra.mxu0 0
  %358 = vmatpush.bf16.msra.mxu0 %v168
  %359 = vmatpush.bf16.msra.mxu0 %v152
  %360 = vmatmul.bf16.gmra.mxu0 %v207
  %v361 = vpop.f32.mrf.mxu0
  %v362 = vadd.f32 0.0, %v361
  %v363 = vpop.f32.mrf.mxu0
  %364 = vdwg.mxu0
  %365 = vmatpush.bf16.msra.mxu0 0
  %366 = vmatpush.bf16.msra.mxu0 0
  %367 = vmatpush.bf16.msra.mxu0 0
  %368 = vmatpush.bf16.msra.mxu0 0
  %369 = vmatpush.bf16.msra.mxu0 0
  %370 = vmatpush.bf16.msra.mxu0 0
  %371 = vmatpush.bf16.msra.mxu0 %v169
  %372 = vmatpush.bf16.msra.mxu0 %v153
  %373 = vmatmul.bf16.gmra.mxu0 %v207
  %v374 = vpop.f32.mrf.mxu0
  %v375 = vadd.f32 0.0, %v374
  %v376 = vpop.f32.mrf.mxu0
  %377 = vdwg.mxu0
  %378 = vmatpush.bf16.msra.mxu0 0
  %379 = vmatpush.bf16.msra.mxu0 0
  %380 = vmatpush.bf16.msra.mxu0 0
  %381 = vmatpush.bf16.msra.mxu0 0
  %382 = vmatpush.bf16.msra.mxu0 0
  %383 = vmatpush.bf16.msra.mxu0 0
  %384 = vmatpush.bf16.msra.mxu0 %v170
  %385 = vmatpush.bf16.msra.mxu0 %v154
  %386 = vmatmul.bf16.gmra.mxu0 %v207
  %v387 = vpop.f32.mrf.mxu0
  %v388 = vadd.f32 0.0, %v387
  %v389 = vpop.f32.mrf.mxu0
  %390 = vdwg.mxu0
  %391 = vmatpush.bf16.msra.mxu0 0
  %392 = vmatpush.bf16.msra.mxu0 0
  %393 = vmatpush.bf16.msra.mxu0 0
  %394 = vmatpush.bf16.msra.mxu0 0
  %395 = vmatpush.bf16.msra.mxu0 0
  %396 = vmatpush.bf16.msra.mxu0 0
  %397 = vmatpush.bf16.msra.mxu0 %v171
  %398 = vmatpush.bf16.msra.mxu0 %v155
  %399 = vmatmul.bf16.gmra.mxu0 %v207
  %v400 = vpop.f32.mrf.mxu0
  %v401 = vadd.f32 0.0, %v400
  %v402 = vpop.f32.mrf.mxu0
  %403 = vdwg.mxu0
  %404 = vmatpush.bf16.msra.mxu0 0
  %405 = vmatpush.bf16.msra.mxu0 0
  %406 = vmatpush.bf16.msra.mxu0 0
  %407 = vmatpush.bf16.msra.mxu0 0
  %408 = vmatpush.bf16.msra.mxu0 0
  %409 = vmatpush.bf16.msra.mxu0 0
  %410 = vmatpush.bf16.msra.mxu0 %v172
  %411 = vmatpush.bf16.msra.mxu0 %v156
  %412 = vmatmul.bf16.gmra.mxu0 %v207
  %v413 = vpop.f32.mrf.mxu0
  %v414 = vadd.f32 0.0, %v413
  %v415 = vpop.f32.mrf.mxu0
  %416 = vdwg.mxu0
  %417 = vst [vmem:[%s2] sm:$0xff] %v219
  %418 = vst [vmem:[%s2 + $0x8] sm:$0xff] %v232
  %419 = vst [vmem:[%s2 + $0x10] sm:$0xff] %v245
  %420 = vst [vmem:[%s2 + $0x18] sm:$0xff] %v258
  %421 = vst [vmem:[%s2 + $0x20] sm:$0xff] %v271
  %422 = vst [vmem:[%s2 + $0x28] sm:$0xff] %v284
  %423 = vst [vmem:[%s2 + $0x30] sm:$0xff] %v297
  %424 = vst [vmem:[%s2 + $0x38] sm:$0xff] %v310
  %425 = vst [vmem:[%s2 + $0x40] sm:$0xff] %v323
  %426 = vst [vmem:[%s2 + $0x48] sm:$0xff] %v336
  %427 = vst [vmem:[%s2 + $0x50] sm:$0xff] %v349
  %428 = vst [vmem:[%s2 + $0x58] sm:$0xff] %v362
  %429 = vst [vmem:[%s2 + $0x60] sm:$0xff] %v375
  %430 = vst [vmem:[%s2 + $0x68] sm:$0xff] %v388
  %431 = vst [vmem:[%s2 + $0x70] sm:$0xff] %v401
  %432 = vst [vmem:[%s2 + $0x78] sm:$0xff] %v414
  // Predicated region
  $region10: #{decoder_forward.5} parent=0 // pred_check
    _
  $region11: #{decoder_forward.5} parent=0 // pred_check_branch
    %434 = sbr.rel (0) target = $region13
  $region12: #{decoder_forward.5} parent=0 // pred_region
    _
  $region13: #{decoder_forward.5} parent=0 // pred_fallthru
    _
  // Predicated region
  $region14: #{decoder_forward.5} parent=0 // pred_check
    _
  $region15: #{decoder_forward.5} parent=0 // pred_check_branch
    %436 = sbr.rel (0) target = $region17
  $region16: #{decoder_forward.5} parent=0 // pred_region
    _
  $region17: #{decoder_forward.5} parent=0 // pred_fallthru
    _

// kernel: decoder_forward.6
$region0: #{decoder_forward.6}
  #allocation0 [shape = 'u32[]', space=smem, size = 0x4, offset = 0x4, fixed_abs, tag = 'smem constant byte address 0x4 - core index']
  #allocation1 [shape = 'u32[72,128]{1,0:T(1,128)}', space=vmem, size = 0x9000, scoped, tag = 'internal scratch']
  %s0 = inlined_call_operand.vmem [shape: bf16[32,128], index: 0, kind: input, shape index: {}]
  %s1 = inlined_call_operand.vmem [shape: bf16[128,1024], index: 1, kind: input, shape index: {}]
  %s2 = inlined_call_operand.vmem [shape: f32[32,1024], index: 2, kind: output, shape index: {}]
  %s3 = sld [smem:[#allocation0]]
  $region18: #{decoder_forward.6} parent=0
    _
  %s5 = ssub.s32 1, %s3
  %s6 = scalar_select 0, %s5, %s3
  // Predicated region
  $region2: #{decoder_forward.6} parent=0 // pred_check
    _
  $region3: #{decoder_forward.6} parent=0 // pred_check_branch
    %8 = sbr.rel (0) target = $region5
  $region4: #{decoder_forward.6} parent=0 // pred_region
    _
  $region5: #{decoder_forward.6} parent=0 // pred_fallthru
    _
  // Predicated region
  $region6: #{decoder_forward.6} parent=0 // pred_check
    _
  $region7: #{decoder_forward.6} parent=0 // pred_check_branch
    %10 = sbr.rel (0) target = $region9
  $region8: #{decoder_forward.6} parent=0 // pred_region
    _
  $region9: #{decoder_forward.6} parent=0 // pred_fallthru
    _
  %v11 = vld [vmem:[%s0] sm:$0xf]
  %v12 = vld [vmem:[%s0 + $0x4] sm:$0xf]
  %v13 = vld [vmem:[%s0 + $0x8] sm:$0xf]
  %v14 = vld [vmem:[%s0 + $0xc] sm:$0xf]
  %v15 = vld [vmem:[%s1] sm:$0xff]
  %v16 = vld [vmem:[%s1 + $0x8] sm:$0xff]
  %v17 = vld [vmem:[%s1 + $0x10] sm:$0xff]
  %v18 = vld [vmem:[%s1 + $0x18] sm:$0xff]
  %v19 = vld [vmem:[%s1 + $0x20] sm:$0xff]
  %v20 = vld [vmem:[%s1 + $0x28] sm:$0xff]
  %v21 = vld [vmem:[%s1 + $0x30] sm:$0xff]
  %v22 = vld [vmem:[%s1 + $0x38] sm:$0xff]
  %v23 = vld [vmem:[%s1 + $0x40] sm:$0xff]
  %v24 = vld [vmem:[%s1 + $0x48] sm:$0xff]
  %v25 = vld [vmem:[%s1 + $0x50] sm:$0xff]
  %v26 = vld [vmem:[%s1 + $0x58] sm:$0xff]
  %v27 = vld [vmem:[%s1 + $0x60] sm:$0xff]
  %v28 = vld [vmem:[%s1 + $0x68] sm:$0xff]
  %v29 = vld [vmem:[%s1 + $0x70] sm:$0xff]
  %v30 = vld [vmem:[%s1 + $0x78] sm:$0xff]
  %v31 = vld [vmem:[%s1 + $0x80] sm:$0xff]
  %v32 = vld [vmem:[%s1 + $0x88] sm:$0xff]
  %v33 = vld [vmem:[%s1 + $0x90] sm:$0xff]
  %v34 = vld [vmem:[%s1 + $0x98] sm:$0xff]
  %v35 = vld [vmem:[%s1 + $0xa0] sm:$0xff]
  %v36 = vld [vmem:[%s1 + $0xa8] sm:$0xff]
  %v37 = vld [vmem:[%s1 + $0xb0] sm:$0xff]
  %v38 = vld [vmem:[%s1 + $0xb8] sm:$0xff]
  %v39 = vld [vmem:[%s1 + $0xc0] sm:$0xff]
  %v40 = vld [vmem:[%s1 + $0xc8] sm:$0xff]
  %v41 = vld [vmem:[%s1 + $0xd0] sm:$0xff]
  %v42 = vld [vmem:[%s1 + $0xd8] sm:$0xff]
  %v43 = vld [vmem:[%s1 + $0xe0] sm:$0xff]
  %v44 = vld [vmem:[%s1 + $0xe8] sm:$0xff]
  %v45 = vld [vmem:[%s1 + $0xf0] sm:$0xff]
  %v46 = vld [vmem:[%s1 + $0xf8] sm:$0xff]
  %v47 = vld [vmem:[%s1 + $0x100] sm:$0xff]
  %v48 = vld [vmem:[%s1 + $0x108] sm:$0xff]
  %v49 = vld [vmem:[%s1 + $0x110] sm:$0xff]
  %v50 = vld [vmem:[%s1 + $0x118] sm:$0xff]
  %v51 = vld [vmem:[%s1 + $0x120] sm:$0xff]
  %v52 = vld [vmem:[%s1 + $0x128] sm:$0xff]
  %v53 = vld [vmem:[%s1 + $0x130] sm:$0xff]
  %v54 = vld [vmem:[%s1 + $0x138] sm:$0xff]
  %v55 = vld [vmem:[%s1 + $0x140] sm:$0xff]
  %v56 = vld [vmem:[%s1 + $0x148] sm:$0xff]
  %v57 = vld [vmem:[%s1 + $0x150] sm:$0xff]
  %v58 = vld [vmem:[%s1 + $0x158] sm:$0xff]
  %v59 = vld [vmem:[%s1 + $0x160] sm:$0xff]
  %v60 = vld [vmem:[%s1 + $0x168] sm:$0xff]
  %v61 = vld [vmem:[%s1 + $0x170] sm:$0xff]
  %v62 = vld [vmem:[%s1 + $0x178] sm:$0xff]
  %v63 = vld [vmem:[%s1 + $0x180] sm:$0xff]
  %v64 = vld [vmem:[%s1 + $0x188] sm:$0xff]
  %v65 = vld [vmem:[%s1 + $0x190] sm:$0xff]
  %v66 = vld [vmem:[%s1 + $0x198] sm:$0xff]
  %v67 = vld [vmem:[%s1 + $0x1a0] sm:$0xff]
  %v68 = vld [vmem:[%s1 + $0x1a8] sm:$0xff]
  %v69 = vld [vmem:[%s1 + $0x1b0] sm:$0xff]
  %v70 = vld [vmem:[%s1 + $0x1b8] sm:$0xff]
  %v71 = vld [vmem:[%s1 + $0x1c0] sm:$0xff]
  %v72 = vld [vmem:[%s1 + $0x1c8] sm:$0xff]
  %v73 = vld [vmem:[%s1 + $0x1d0] sm:$0xff]
  %v74 = vld [vmem:[%s1 + $0x1d8] sm:$0xff]
  %v75 = vld [vmem:[%s1 + $0x1e0] sm:$0xff]
  %v76 = vld [vmem:[%s1 + $0x1e8] sm:$0xff]
  %v77 = vld [vmem:[%s1 + $0x1f0] sm:$0xff]
  %v78 = vld [vmem:[%s1 + $0x1f8] sm:$0xff]
  %v83 = vunpack.c.l.b16 %v11
  %v84 = vunpack.c.l.b16 %v12
  %v85 = vunpack.c.l.b16 %v13
  %v86 = vunpack.c.l.b16 %v14
  %v87 = vpack.c.b16 %v84, %v83
  %v88 = vpack.c.b16 %v86, %v85
  %v155 = vunpack.c.l.b16 %v15
  %v156 = vunpack.c.h.b16 %v15
  %v157 = vunpack.c.l.b16 %v16
  %v158 = vunpack.c.h.b16 %v16
  %v159 = vunpack.c.l.b16 %v17
  %v160 = vunpack.c.h.b16 %v17
  %v161 = vunpack.c.l.b16 %v18
  %v162 = vunpack.c.h.b16 %v18
  %v163 = vunpack.c.l.b16 %v19
  %v164 = vunpack.c.h.b16 %v19
  %v165 = vunpack.c.l.b16 %v20
  %v166 = vunpack.c.h.b16 %v20
  %v167 = vunpack.c.l.b16 %v21
  %v168 = vunpack.c.h.b16 %v21
  %v169 = vunpack.c.l.b16 %v22
  %v170 = vunpack.c.h.b16 %v22
  %v171 = vunpack.c.l.b16 %v23
  %v172 = vunpack.c.h.b16 %v23
  %v173 = vunpack.c.l.b16 %v24
  %v174 = vunpack.c.h.b16 %v24
  %v175 = vunpack.c.l.b16 %v25
  %v176 = vunpack.c.h.b16 %v25
  %v177 = vunpack.c.l.b16 %v26
  %v178 = vunpack.c.h.b16 %v26
  %v179 = vunpack.c.l.b16 %v27
  %v180 = vunpack.c.h.b16 %v27
  %v181 = vunpack.c.l.b16 %v28
  %v182 = vunpack.c.h.b16 %v28
  %v183 = vunpack.c.l.b16 %v29
  %v184 = vunpack.c.h.b16 %v29
  %v185 = vunpack.c.l.b16 %v30
  %v186 = vunpack.c.h.b16 %v30
  %v187 = vunpack.c.l.b16 %v31
  %v188 = vunpack.c.h.b16 %v31
  %v189 = vunpack.c.l.b16 %v32
  %v190 = vunpack.c.h.b16 %v32
  %v191 = vunpack.c.l.b16 %v33
  %v192 = vunpack.c.h.b16 %v33
  %v193 = vunpack.c.l.b16 %v34
  %v194 = vunpack.c.h.b16 %v34
  %v195 = vunpack.c.l.b16 %v35
  %v196 = vunpack.c.h.b16 %v35
  %v197 = vunpack.c.l.b16 %v36
  %v198 = vunpack.c.h.b16 %v36
  %v199 = vunpack.c.l.b16 %v37
  %v200 = vunpack.c.h.b16 %v37
  %v201 = vunpack.c.l.b16 %v38
  %v202 = vunpack.c.h.b16 %v38
  %v203 = vunpack.c.l.b16 %v39
  %v204 = vunpack.c.h.b16 %v39
  %v205 = vunpack.c.l.b16 %v40
  %v206 = vunpack.c.h.b16 %v40
  %v207 = vunpack.c.l.b16 %v41
  %v208 = vunpack.c.h.b16 %v41
  %v209 = vunpack.c.l.b16 %v42
  %v210 = vunpack.c.h.b16 %v42
  %v211 = vunpack.c.l.b16 %v43
  %v212 = vunpack.c.h.b16 %v43
  %v213 = vunpack.c.l.b16 %v44
  %v214 = vunpack.c.h.b16 %v44
  %v215 = vunpack.c.l.b16 %v45
  %v216 = vunpack.c.h.b16 %v45
  %v217 = vunpack.c.l.b16 %v46
  %v218 = vunpack.c.h.b16 %v46
  %v219 = vunpack.c.l.b16 %v47
  %v220 = vunpack.c.h.b16 %v47
  %v221 = vunpack.c.l.b16 %v48
  %v222 = vunpack.c.h.b16 %v48
  %v223 = vunpack.c.l.b16 %v49
  %v224 = vunpack.c.h.b16 %v49
  %v225 = vunpack.c.l.b16 %v50
  %v226 = vunpack.c.h.b16 %v50
  %v227 = vunpack.c.l.b16 %v51
  %v228 = vunpack.c.h.b16 %v51
  %v229 = vunpack.c.l.b16 %v52
  %v230 = vunpack.c.h.b16 %v52
  %v231 = vunpack.c.l.b16 %v53
  %v232 = vunpack.c.h.b16 %v53
  %v233 = vunpack.c.l.b16 %v54
  %v234 = vunpack.c.h.b16 %v54
  %v235 = vunpack.c.l.b16 %v55
  %v236 = vunpack.c.h.b16 %v55
  %v237 = vunpack.c.l.b16 %v56
  %v238 = vunpack.c.h.b16 %v56
  %v239 = vunpack.c.l.b16 %v57
  %v240 = vunpack.c.h.b16 %v57
  %v241 = vunpack.c.l.b16 %v58
  %v242 = vunpack.c.h.b16 %v58
  %v243 = vunpack.c.l.b16 %v59
  %v244 = vunpack.c.h.b16 %v59
  %v245 = vunpack.c.l.b16 %v60
  %v246 = vunpack.c.h.b16 %v60
  %v247 = vunpack.c.l.b16 %v61
  %v248 = vunpack.c.h.b16 %v61
  %v249 = vunpack.c.l.b16 %v62
  %v250 = vunpack.c.h.b16 %v62
  %v251 = vunpack.c.l.b16 %v63
  %v252 = vunpack.c.h.b16 %v63
  %v253 = vunpack.c.l.b16 %v64
  %v254 = vunpack.c.h.b16 %v64
  %v255 = vunpack.c.l.b16 %v65
  %v256 = vunpack.c.h.b16 %v65
  %v257 = vunpack.c.l.b16 %v66
  %v258 = vunpack.c.h.b16 %v66
  %v259 = vunpack.c.l.b16 %v67
  %v260 = vunpack.c.h.b16 %v67
  %v261 = vunpack.c.l.b16 %v68
  %v262 = vunpack.c.h.b16 %v68
  %v263 = vunpack.c.l.b16 %v69
  %v264 = vunpack.c.h.b16 %v69
  %v265 = vunpack.c.l.b16 %v70
  %v266 = vunpack.c.h.b16 %v70
  %v267 = vunpack.c.l.b16 %v71
  %v268 = vunpack.c.h.b16 %v71
  %v269 = vunpack.c.l.b16 %v72
  %v270 = vunpack.c.h.b16 %v72
  %v271 = vunpack.c.l.b16 %v73
  %v272 = vunpack.c.h.b16 %v73
  %v273 = vunpack.c.l.b16 %v74
  %v274 = vunpack.c.h.b16 %v74
  %v275 = vunpack.c.l.b16 %v75
  %v276 = vunpack.c.h.b16 %v75
  %v277 = vunpack.c.l.b16 %v76
  %v278 = vunpack.c.h.b16 %v76
  %v279 = vunpack.c.l.b16 %v77
  %v280 = vunpack.c.h.b16 %v77
  %v281 = vunpack.c.l.b16 %v78
  %v282 = vunpack.c.h.b16 %v78
  %v283 = vpack.c.b16 %v163, %v155
  %v284 = vpack.c.b16 %v164, %v156
  %v285 = vpack.c.b16 %v165, %v157
  %v286 = vpack.c.b16 %v166, %v158
  %v287 = vpack.c.b16 %v167, %v159
  %v288 = vpack.c.b16 %v168, %v160
  %v289 = vpack.c.b16 %v169, %v161
  %v290 = vpack.c.b16 %v170, %v162
  %v291 = vpack.c.b16 %v179, %v171
  %v292 = vpack.c.b16 %v180, %v172
  %v293 = vpack.c.b16 %v181, %v173
  %v294 = vpack.c.b16 %v182, %v174
  %v295 = vpack.c.b16 %v183, %v175
  %v296 = vpack.c.b16 %v184, %v176
  %v297 = vpack.c.b16 %v185, %v177
  %v298 = vpack.c.b16 %v186, %v178
  %v299 = vpack.c.b16 %v195, %v187
  %v300 = vpack.c.b16 %v196, %v188
  %v301 = vpack.c.b16 %v197, %v189
  %v302 = vpack.c.b16 %v198, %v190
  %v303 = vpack.c.b16 %v199, %v191
  %v304 = vpack.c.b16 %v200, %v192
  %v305 = vpack.c.b16 %v201, %v193
  %v306 = vpack.c.b16 %v202, %v194
  %v307 = vpack.c.b16 %v211, %v203
  %v308 = vpack.c.b16 %v212, %v204
  %v309 = vpack.c.b16 %v213, %v205
  %v310 = vpack.c.b16 %v214, %v206
  %v311 = vpack.c.b16 %v215, %v207
  %v312 = vpack.c.b16 %v216, %v208
  %v313 = vpack.c.b16 %v217, %v209
  %v314 = vpack.c.b16 %v218, %v210
  %v315 = vpack.c.b16 %v227, %v219
  %v316 = vpack.c.b16 %v228, %v220
  %v317 = vpack.c.b16 %v229, %v221
  %v318 = vpack.c.b16 %v230, %v222
  %v319 = vpack.c.b16 %v231, %v223
  %v320 = vpack.c.b16 %v232, %v224
  %v321 = vpack.c.b16 %v233, %v225
  %v322 = vpack.c.b16 %v234, %v226
  %v323 = vpack.c.b16 %v243, %v235
  %v324 = vpack.c.b16 %v244, %v236
  %v325 = vpack.c.b16 %v245, %v237
  %v326 = vpack.c.b16 %v246, %v238
  %v327 = vpack.c.b16 %v247, %v239
  %v328 = vpack.c.b16 %v248, %v240
  %v329 = vpack.c.b16 %v249, %v241
  %v330 = vpack.c.b16 %v250, %v242
  %v331 = vpack.c.b16 %v259, %v251
  %v332 = vpack.c.b16 %v260, %v252
  %v333 = vpack.c.b16 %v261, %v253
  %v334 = vpack.c.b16 %v262, %v254
  %v335 = vpack.c.b16 %v263, %v255
  %v336 = vpack.c.b16 %v264, %v256
  %v337 = vpack.c.b16 %v265, %v257
  %v338 = vpack.c.b16 %v266, %v258
  %v339 = vpack.c.b16 %v275, %v267
  %v340 = vpack.c.b16 %v276, %v268
  %v341 = vpack.c.b16 %v277, %v269
  %v342 = vpack.c.b16 %v278, %v270
  %v343 = vpack.c.b16 %v279, %v271
  %v344 = vpack.c.b16 %v280, %v272
  %v345 = vpack.c.b16 %v281, %v273
  %v346 = vpack.c.b16 %v282, %v274
  %411 = vmatpush.bf16.msra.mxu0 %v339
  %412 = vmatpush.bf16.msra.mxu0 %v331
  %413 = vmatpush.bf16.msra.mxu0 %v323
  %414 = vmatpush.bf16.msra.mxu0 %v315
  %415 = vmatpush.bf16.msra.mxu0 %v307
  %416 = vmatpush.bf16.msra.mxu0 %v299
  %417 = vmatpush.bf16.msra.mxu0 %v291
  %418 = vmatpush.bf16.msra.mxu0 %v283
  %419 = vmatmul.bf16.gmra.mxu0 %v87
  %v420 = vpop.f32.mrf.mxu0
  %v421 = vadd.f32 0.0, %v420
  %v422 = vpop.f32.mrf.mxu0
  %v423 = vadd.f32 0.0, %v422
  %424 = vmatmul.bf16.gmra.mxu0 %v88
  %v425 = vpop.f32.mrf.mxu0
  %v426 = vadd.f32 0.0, %v425
  %v427 = vpop.f32.mrf.mxu0
  %v428 = vadd.f32 0.0, %v427
  %429 = vdwg.mxu0
  %430 = vmatpush.bf16.msra.mxu0 %v340
  %431 = vmatpush.bf16.msra.mxu0 %v332
  %432 = vmatpush.bf16.msra.mxu0 %v324
  %433 = vmatpush.bf16.msra.mxu0 %v316
  %434 = vmatpush.bf16.msra.mxu0 %v308
  %435 = vmatpush.bf16.msra.mxu0 %v300
  %436 = vmatpush.bf16.msra.mxu0 %v292
  %437 = vmatpush.bf16.msra.mxu0 %v284
  %438 = vmatmul.bf16.gmra.mxu0 %v87
  %v439 = vpop.f32.mrf.mxu0
  %v440 = vadd.f32 0.0, %v439
  %v441 = vpop.f32.mrf.mxu0
  %v442 = vadd.f32 0.0, %v441
  %443 = vmatmul.bf16.gmra.mxu0 %v88
  %v444 = vpop.f32.mrf.mxu0
  %v445 = vadd.f32 0.0, %v444
  %v446 = vpop.f32.mrf.mxu0
  %v447 = vadd.f32 0.0, %v446
  %448 = vdwg.mxu0
  %449 = vmatpush.bf16.msra.mxu0 %v341
  %450 = vmatpush.bf16.msra.mxu0 %v333
  %451 = vmatpush.bf16.msra.mxu0 %v325
  %452 = vmatpush.bf16.msra.mxu0 %v317
  %453 = vmatpush.bf16.msra.mxu0 %v309
  %454 = vmatpush.bf16.msra.mxu0 %v301
  %455 = vmatpush.bf16.msra.mxu0 %v293
  %456 = vmatpush.bf16.msra.mxu0 %v285
  %457 = vmatmul.bf16.gmra.mxu0 %v87
  %v458 = vpop.f32.mrf.mxu0
  %v459 = vadd.f32 0.0, %v458
  %v460 = vpop.f32.mrf.mxu0
  %v461 = vadd.f32 0.0, %v460
  %462 = vmatmul.bf16.gmra.mxu0 %v88
  %v463 = vpop.f32.mrf.mxu0
  %v464 = vadd.f32 0.0, %v463
  %v465 = vpop.f32.mrf.mxu0
  %v466 = vadd.f32 0.0, %v465
  %467 = vdwg.mxu0
  %468 = vmatpush.bf16.msra.mxu0 %v342
  %469 = vmatpush.bf16.msra.mxu0 %v334
  %470 = vmatpush.bf16.msra.mxu0 %v326
  %471 = vmatpush.bf16.msra.mxu0 %v318
  %472 = vmatpush.bf16.msra.mxu0 %v310
  %473 = vmatpush.bf16.msra.mxu0 %v302
  %474 = vmatpush.bf16.msra.mxu0 %v294
  %475 = vmatpush.bf16.msra.mxu0 %v286
  %476 = vmatmul.bf16.gmra.mxu0 %v87
  %v477 = vpop.f32.mrf.mxu0
  %v478 = vadd.f32 0.0, %v477
  %v479 = vpop.f32.mrf.mxu0
  %v480 = vadd.f32 0.0, %v479
  %481 = vmatmul.bf16.gmra.mxu0 %v88
  %v482 = vpop.f32.mrf.mxu0
  %v483 = vadd.f32 0.0, %v482
  %v484 = vpop.f32.mrf.mxu0
  %v485 = vadd.f32 0.0, %v484
  %486 = vdwg.mxu0
  %487 = vmatpush.bf16.msra.mxu0 %v343
  %488 = vmatpush.bf16.msra.mxu0 %v335
  %489 = vmatpush.bf16.msra.mxu0 %v327
  %490 = vmatpush.bf16.msra.mxu0 %v319
  %491 = vmatpush.bf16.msra.mxu0 %v311
  %492 = vmatpush.bf16.msra.mxu0 %v303
  %493 = vmatpush.bf16.msra.mxu0 %v295
  %494 = vmatpush.bf16.msra.mxu0 %v287
  %495 = vmatmul.bf16.gmra.mxu0 %v87
  %v496 = vpop.f32.mrf.mxu0
  %v497 = vadd.f32 0.0, %v496
  %v498 = vpop.f32.mrf.mxu0
  %v499 = vadd.f32 0.0, %v498
  %500 = vmatmul.bf16.gmra.mxu0 %v88
  %v501 = vpop.f32.mrf.mxu0
  %v502 = vadd.f32 0.0, %v501
  %v503 = vpop.f32.mrf.mxu0
  %v504 = vadd.f32 0.0, %v503
  %505 = vdwg.mxu0
  %506 = vmatpush.bf16.msra.mxu0 %v344
  %507 = vmatpush.bf16.msra.mxu0 %v336
  %508 = vmatpush.bf16.msra.mxu0 %v328
  %509 = vmatpush.bf16.msra.mxu0 %v320
  %510 = vmatpush.bf16.msra.mxu0 %v312
  %511 = vmatpush.bf16.msra.mxu0 %v304
  %512 = vmatpush.bf16.msra.mxu0 %v296
  %513 = vmatpush.bf16.msra.mxu0 %v288
  %514 = vmatmul.bf16.gmra.mxu0 %v87
  %v515 = vpop.f32.mrf.mxu0
  %v516 = vadd.f32 0.0, %v515
  %v517 = vpop.f32.mrf.mxu0
  %v518 = vadd.f32 0.0, %v517
  %519 = vmatmul.bf16.gmra.mxu0 %v88
  %v520 = vpop.f32.mrf.mxu0
  %v521 = vadd.f32 0.0, %v520
  %v522 = vpop.f32.mrf.mxu0
  %v523 = vadd.f32 0.0, %v522
  %524 = vdwg.mxu0
  %525 = vmatpush.bf16.msra.mxu0 %v345
  %526 = vmatpush.bf16.msra.mxu0 %v337
  %527 = vmatpush.bf16.msra.mxu0 %v329
  %528 = vmatpush.bf16.msra.mxu0 %v321
  %529 = vmatpush.bf16.msra.mxu0 %v313
  %530 = vmatpush.bf16.msra.mxu0 %v305
  %531 = vmatpush.bf16.msra.mxu0 %v297
  %532 = vmatpush.bf16.msra.mxu0 %v289
  %533 = vmatmul.bf16.gmra.mxu0 %v87
  %v534 = vpop.f32.mrf.mxu0
  %v535 = vadd.f32 0.0, %v534
  %v536 = vpop.f32.mrf.mxu0
  %v537 = vadd.f32 0.0, %v536
  %538 = vmatmul.bf16.gmra.mxu0 %v88
  %v539 = vpop.f32.mrf.mxu0
  %v540 = vadd.f32 0.0, %v539
  %v541 = vpop.f32.mrf.mxu0
  %v542 = vadd.f32 0.0, %v541
  %543 = vdwg.mxu0
  %544 = vmatpush.bf16.msra.mxu0 %v346
  %545 = vmatpush.bf16.msra.mxu0 %v338
  %546 = vmatpush.bf16.msra.mxu0 %v330
  %547 = vmatpush.bf16.msra.mxu0 %v322
  %548 = vmatpush.bf16.msra.mxu0 %v314
  %549 = vmatpush.bf16.msra.mxu0 %v306
  %550 = vmatpush.bf16.msra.mxu0 %v298
  %551 = vmatpush.bf16.msra.mxu0 %v290
  %552 = vmatmul.bf16.gmra.mxu0 %v87
  %v553 = vpop.f32.mrf.mxu0
  %v554 = vadd.f32 0.0, %v553
  %v555 = vpop.f32.mrf.mxu0
  %v556 = vadd.f32 0.0, %v555
  %557 = vmatmul.bf16.gmra.mxu0 %v88
  %v558 = vpop.f32.mrf.mxu0
  %v559 = vadd.f32 0.0, %v558
  %v560 = vpop.f32.mrf.mxu0
  %v561 = vadd.f32 0.0, %v560
  %562 = vdwg.mxu0
  %563 = vst [vmem:[%s2] sm:$0xff] %v421
  %564 = vst [vmem:[%s2 + $0x8] sm:$0xff] %v440
  %565 = vst [vmem:[%s2 + $0x10] sm:$0xff] %v459
  %566 = vst [vmem:[%s2 + $0x18] sm:$0xff] %v478
  %567 = vst [vmem:[%s2 + $0x20] sm:$0xff] %v497
  %568 = vst [vmem:[%s2 + $0x28] sm:$0xff] %v516
  %569 = vst [vmem:[%s2 + $0x30] sm:$0xff] %v535
  %570 = vst [vmem:[%s2 + $0x38] sm:$0xff] %v554
  %571 = vst [vmem:[%s2 + $0x40] sm:$0xff] %v423
  %572 = vst [vmem:[%s2 + $0x48] sm:$0xff] %v442
  %573 = vst [vmem:[%s2 + $0x50] sm:$0xff] %v461
  %574 = vst [vmem:[%s2 + $0x58] sm:$0xff] %v480
  %575 = vst [vmem:[%s2 + $0x60] sm:$0xff] %v499
  %576 = vst [vmem:[%s2 + $0x68] sm:$0xff] %v518
  %577 = vst [vmem:[%s2 + $0x70] sm:$0xff] %v537
  %578 = vst [vmem:[%s2 + $0x78] sm:$0xff] %v556
  %579 = vst [vmem:[%s2 + $0x80] sm:$0xff] %v426
  %580 = vst [vmem:[%s2 + $0x88] sm:$0xff] %v445
  %581 = vst [vmem:[%s2 + $0x90] sm:$0xff] %v464
  %582 = vst [vmem:[%s2 + $0x98] sm:$0xff] %v483
  %583 = vst [vmem:[%s2 + $0xa0] sm:$0xff] %v502
  %584 = vst [vmem:[%s2 + $0xa8] sm:$0xff] %v521
  %585 = vst [vmem:[%s2 + $0xb0] sm:$0xff] %v540
  %586 = vst [vmem:[%s2 + $0xb8] sm:$0xff] %v559
  %587 = vst [vmem:[%s2 + $0xc0] sm:$0xff] %v428
  %588 = vst [vmem:[%s2 + $0xc8] sm:$0xff] %v447
  %589 = vst [vmem:[%s2 + $0xd0] sm:$0xff] %v466
  %590 = vst [vmem:[%s2 + $0xd8] sm:$0xff] %v485
  %591 = vst [vmem:[%s2 + $0xe0] sm:$0xff] %v504
  %592 = vst [vmem:[%s2 + $0xe8] sm:$0xff] %v523
  %593 = vst [vmem:[%s2 + $0xf0] sm:$0xff] %v542
  %594 = vst [vmem:[%s2 + $0xf8] sm:$0xff] %v561
  // Predicated region
  $region10: #{decoder_forward.6} parent=0 // pred_check
    _
  $region11: #{decoder_forward.6} parent=0 // pred_check_branch
    %596 = sbr.rel (0) target = $region13
  $region12: #{decoder_forward.6} parent=0 // pred_region
    _
  $region13: #{decoder_forward.6} parent=0 // pred_fallthru
    _
  // Predicated region
  $region14: #{decoder_forward.6} parent=0 // pred_check
    _
  $region15: #{decoder_forward.6} parent=0 // pred_check_branch
    %598 = sbr.rel (0) target = $region17
  $region16: #{decoder_forward.6} parent=0 // pred_region
    _
  $region17: #{decoder_forward.6} parent=0 // pred_fallthru
    _

// kernel: decoder_forward.7
$region0: #{decoder_forward.7}
  #allocation0 [shape = 'u32[]', space=smem, size = 0x4, offset = 0x4, fixed_abs, tag = 'smem constant byte address 0x4 - core index']
  #allocation1 [shape = 'u32[72,128]{1,0:T(1,128)}', space=vmem, size = 0x9000, scoped, tag = 'internal scratch']
  %s0 = inlined_call_operand.vmem [shape: bf16[128,64], index: 0, kind: input, shape index: {}]
  %s1 = inlined_call_operand.vmem [shape: bf16[64,512], index: 1, kind: input, shape index: {}]
  %s2 = inlined_call_operand.vmem [shape: f32[128,512], index: 2, kind: output, shape index: {}]
  %s3 = sld [smem:[#allocation0]]
  $region18: #{decoder_forward.7} parent=0
    _
  %s5 = ssub.s32 1, %s3
  %s6 = scalar_select 0, %s5, %s3
  // Predicated region
  $region2: #{decoder_forward.7} parent=0 // pred_check
    _
  $region3: #{decoder_forward.7} parent=0 // pred_check_branch
    %8 = sbr.rel (0) target = $region5
  $region4: #{decoder_forward.7} parent=0 // pred_region
    _
  $region5: #{decoder_forward.7} parent=0 // pred_fallthru
    _
  // Predicated region
  $region6: #{decoder_forward.7} parent=0 // pred_check
    _
  $region7: #{decoder_forward.7} parent=0 // pred_check_branch
    %10 = sbr.rel (0) target = $region9
  $region8: #{decoder_forward.7} parent=0 // pred_region
    _
  $region9: #{decoder_forward.7} parent=0 // pred_fallthru
    _
  %v12 = vld [vmem:[%s0] sm:$0xf]
  %v13 = vld [vmem:[%s0 + $0x4] sm:$0xf]
  %v14 = vld [vmem:[%s0 + $0x8] sm:$0xf]
  %v15 = vld [vmem:[%s0 + $0xc] sm:$0xf]
  %v16 = vld [vmem:[%s0 + $0x10] sm:$0xf]
  %v17 = vld [vmem:[%s0 + $0x14] sm:$0xf]
  %v18 = vld [vmem:[%s0 + $0x18] sm:$0xf]
  %v19 = vld [vmem:[%s0 + $0x1c] sm:$0xf]
  %v20 = vld [vmem:[%s0 + $0x20] sm:$0xf]
  %v21 = vld [vmem:[%s0 + $0x24] sm:$0xf]
  %v22 = vld [vmem:[%s0 + $0x28] sm:$0xf]
  %v23 = vld [vmem:[%s0 + $0x2c] sm:$0xf]
  %v24 = vld [vmem:[%s0 + $0x30] sm:$0xf]
  %v25 = vld [vmem:[%s0 + $0x34] sm:$0xf]
  %v26 = vld [vmem:[%s0 + $0x38] sm:$0xf]
  %v27 = vld [vmem:[%s0 + $0x3c] sm:$0xf]
  %v28 = vld [vmem:[%s1] sm:$0xff]
  %v29 = vld [vmem:[%s1 + $0x8] sm:$0xff]
  %v30 = vld [vmem:[%s1 + $0x10] sm:$0xff]
  %v31 = vld [vmem:[%s1 + $0x18] sm:$0xff]
  %v32 = vld [vmem:[%s1 + $0x20] sm:$0xff]
  %v33 = vld [vmem:[%s1 + $0x28] sm:$0xff]
  %v34 = vld [vmem:[%s1 + $0x30] sm:$0xff]
  %v35 = vld [vmem:[%s1 + $0x38] sm:$0xff]
  %v36 = vld [vmem:[%s1 + $0x40] sm:$0xff]
  %v37 = vld [vmem:[%s1 + $0x48] sm:$0xff]
  %v38 = vld [vmem:[%s1 + $0x50] sm:$0xff]
  %v39 = vld [vmem:[%s1 + $0x58] sm:$0xff]
  %v40 = vld [vmem:[%s1 + $0x60] sm:$0xff]
  %v41 = vld [vmem:[%s1 + $0x68] sm:$0xff]
  %v42 = vld [vmem:[%s1 + $0x70] sm:$0xff]
  %v43 = vld [vmem:[%s1 + $0x78] sm:$0xff]
  %v60 = vunpack.c.l.b16 %v12
  %v61 = vunpack.c.l.b16 %v13
  %v62 = vunpack.c.l.b16 %v14
  %v63 = vunpack.c.l.b16 %v15
  %v64 = vunpack.c.l.b16 %v16
  %v65 = vunpack.c.l.b16 %v17
  %v66 = vunpack.c.l.b16 %v18
  %v67 = vunpack.c.l.b16 %v19
  %v68 = vunpack.c.l.b16 %v20
  %v69 = vunpack.c.l.b16 %v21
  %v70 = vunpack.c.l.b16 %v22
  %v71 = vunpack.c.l.b16 %v23
  %v72 = vunpack.c.l.b16 %v24
  %v73 = vunpack.c.l.b16 %v25
  %v74 = vunpack.c.l.b16 %v26
  %v75 = vunpack.c.l.b16 %v27
  %v76 = vpack.c.b16 %v61, %v60
  %v77 = vpack.c.b16 %v63, %v62
  %v78 = vpack.c.b16 %v65, %v64
  %v79 = vpack.c.b16 %v67, %v66
  %v80 = vpack.c.b16 %v69, %v68
  %v81 = vpack.c.b16 %v71, %v70
  %v82 = vpack.c.b16 %v73, %v72
  %v83 = vpack.c.b16 %v75, %v74
  %v100 = vunpack.c.l.b16 %v28
  %v101 = vunpack.c.h.b16 %v28
  %v102 = vunpack.c.l.b16 %v29
  %v103 = vunpack.c.h.b16 %v29
  %v104 = vunpack.c.l.b16 %v30
  %v105 = vunpack.c.h.b16 %v30
  %v106 = vunpack.c.l.b16 %v31
  %v107 = vunpack.c.h.b16 %v31
  %v108 = vunpack.c.l.b16 %v32
  %v109 = vunpack.c.h.b16 %v32
  %v110 = vunpack.c.l.b16 %v33
  %v111 = vunpack.c.h.b16 %v33
  %v112 = vunpack.c.l.b16 %v34
  %v113 = vunpack.c.h.b16 %v34
  %v114 = vunpack.c.l.b16 %v35
  %v115 = vunpack.c.h.b16 %v35
  %v116 = vunpack.c.l.b16 %v36
  %v117 = vunpack.c.h.b16 %v36
  %v118 = vunpack.c.l.b16 %v37
  %v119 = vunpack.c.h.b16 %v37
  %v120 = vunpack.c.l.b16 %v38
  %v121 = vunpack.c.h.b16 %v38
  %v122 = vunpack.c.l.b16 %v39
  %v123 = vunpack.c.h.b16 %v39
  %v124 = vunpack.c.l.b16 %v40
  %v125 = vunpack.c.h.b16 %v40
  %v126 = vunpack.c.l.b16 %v41
  %v127 = vunpack.c.h.b16 %v41
  %v128 = vunpack.c.l.b16 %v42
  %v129 = vunpack.c.h.b16 %v42
  %v130 = vunpack.c.l.b16 %v43
  %v131 = vunpack.c.h.b16 %v43
  %v132 = vpack.c.b16 %v104, %v100
  %v133 = vpack.c.b16 %v105, %v101
  %v134 = vpack.c.b16 %v106, %v102
  %v135 = vpack.c.b16 %v107, %v103
  %v136 = vpack.c.b16 %v112, %v108
  %v137 = vpack.c.b16 %v113, %v109
  %v138 = vpack.c.b16 %v114, %v110
  %v139 = vpack.c.b16 %v115, %v111
  %v140 = vpack.c.b16 %v120, %v116
  %v141 = vpack.c.b16 %v121, %v117
  %v142 = vpack.c.b16 %v122, %v118
  %v143 = vpack.c.b16 %v123, %v119
  %v144 = vpack.c.b16 %v128, %v124
  %v145 = vpack.c.b16 %v129, %v125
  %v146 = vpack.c.b16 %v130, %v126
  %v147 = vpack.c.b16 %v131, %v127
  %vm164 = vcmask 523264
  %v166 = vsel %vm164, %v76, 0
  %v169 = vsel %vm164, %v77, 0
  %v172 = vsel %vm164, %v78, 0
  %v175 = vsel %vm164, %v79, 0
  %v178 = vsel %vm164, %v80, 0
  %v181 = vsel %vm164, %v81, 0
  %v184 = vsel %vm164, %v82, 0
  %v187 = vsel %vm164, %v83, 0
  %189 = vmatpush.bf16.msra.mxu0 0
  %190 = vmatpush.bf16.msra.mxu0 0
  %191 = vmatpush.bf16.msra.mxu0 0
  %192 = vmatpush.bf16.msra.mxu0 0
  %193 = vmatpush.bf16.msra.mxu0 %v144
  %194 = vmatpush.bf16.msra.mxu0 %v140
  %195 = vmatpush.bf16.msra.mxu0 %v136
  %196 = vmatpush.bf16.msra.mxu0 %v132
  %197 = vmatmul.bf16.gmra.mxu0 %v166
  %v198 = vpop.f32.mrf.mxu0
  %v199 = vadd.f32 0.0, %v198
  %v200 = vpop.f32.mrf.mxu0
  %v201 = vadd.f32 0.0, %v200
  %202 = vmatmul.bf16.gmra.mxu0 %v169
  %v203 = vpop.f32.mrf.mxu0
  %v204 = vadd.f32 0.0, %v203
  %v205 = vpop.f32.mrf.mxu0
  %v206 = vadd.f32 0.0, %v205
  %207 = vmatmul.bf16.gmra.mxu0 %v172
  %v208 = vpop.f32.mrf.mxu0
  %v209 = vadd.f32 0.0, %v208
  %v210 = vpop.f32.mrf.mxu0
  %v211 = vadd.f32 0.0, %v210
  %212 = vmatmul.bf16.gmra.mxu0 %v175
  %v213 = vpop.f32.mrf.mxu0
  %v214 = vadd.f32 0.0, %v213
  %v215 = vpop.f32.mrf.mxu0
  %v216 = vadd.f32 0.0, %v215
  %217 = vmatmul.bf16.gmra.mxu0 %v178
  %v218 = vpop.f32.mrf.mxu0
  %v219 = vadd.f32 0.0, %v218
  %v220 = vpop.f32.mrf.mxu0
  %v221 = vadd.f32 0.0, %v220
  %222 = vmatmul.bf16.gmra.mxu0 %v181
  %v223 = vpop.f32.mrf.mxu0
  %v224 = vadd.f32 0.0, %v223
  %v225 = vpop.f32.mrf.mxu0
  %v226 = vadd.f32 0.0, %v225
  %227 = vmatmul.bf16.gmra.mxu0 %v184
  %v228 = vpop.f32.mrf.mxu0
  %v229 = vadd.f32 0.0, %v228
  %v230 = vpop.f32.mrf.mxu0
  %v231 = vadd.f32 0.0, %v230
  %232 = vmatmul.bf16.gmra.mxu0 %v187
  %v233 = vpop.f32.mrf.mxu0
  %v234 = vadd.f32 0.0, %v233
  %v235 = vpop.f32.mrf.mxu0
  %v236 = vadd.f32 0.0, %v235
  %237 = vdwg.mxu0
  %238 = vmatpush.bf16.msra.mxu0 0
  %239 = vmatpush.bf16.msra.mxu0 0
  %240 = vmatpush.bf16.msra.mxu0 0
  %241 = vmatpush.bf16.msra.mxu0 0
  %242 = vmatpush.bf16.msra.mxu0 %v145
  %243 = vmatpush.bf16.msra.mxu0 %v141
  %244 = vmatpush.bf16.msra.mxu0 %v137
  %245 = vmatpush.bf16.msra.mxu0 %v133
  %246 = vmatmul.bf16.gmra.mxu0 %v166
  %v247 = vpop.f32.mrf.mxu0
  %v248 = vadd.f32 0.0, %v247
  %v249 = vpop.f32.mrf.mxu0
  %v250 = vadd.f32 0.0, %v249
  %251 = vmatmul.bf16.gmra.mxu0 %v169
  %v252 = vpop.f32.mrf.mxu0
  %v253 = vadd.f32 0.0, %v252
  %v254 = vpop.f32.mrf.mxu0
  %v255 = vadd.f32 0.0, %v254
  %256 = vmatmul.bf16.gmra.mxu0 %v172
  %v257 = vpop.f32.mrf.mxu0
  %v258 = vadd.f32 0.0, %v257
  %v259 = vpop.f32.mrf.mxu0
  %v260 = vadd.f32 0.0, %v259
  %261 = vmatmul.bf16.gmra.mxu0 %v175
  %v262 = vpop.f32.mrf.mxu0
  %v263 = vadd.f32 0.0, %v262
  %v264 = vpop.f32.mrf.mxu0
  %v265 = vadd.f32 0.0, %v264
  %266 = vmatmul.bf16.gmra.mxu0 %v178
  %v267 = vpop.f32.mrf.mxu0
  %v268 = vadd.f32 0.0, %v267
  %v269 = vpop.f32.mrf.mxu0
  %v270 = vadd.f32 0.0, %v269
  %271 = vmatmul.bf16.gmra.mxu0 %v181
  %v272 = vpop.f32.mrf.mxu0
  %v273 = vadd.f32 0.0, %v272
  %v274 = vpop.f32.mrf.mxu0
  %v275 = vadd.f32 0.0, %v274
  %276 = vmatmul.bf16.gmra.mxu0 %v184
  %v277 = vpop.f32.mrf.mxu0
  %v278 = vadd.f32 0.0, %v277
  %v279 = vpop.f32.mrf.mxu0
  %v280 = vadd.f32 0.0, %v279
  %281 = vmatmul.bf16.gmra.mxu0 %v187
  %v282 = vpop.f32.mrf.mxu0
  %v283 = vadd.f32 0.0, %v282
  %v284 = vpop.f32.mrf.mxu0
  %v285 = vadd.f32 0.0, %v284
  %286 = vdwg.mxu0
  %287 = vmatpush.bf16.msra.mxu0 0
  %288 = vmatpush.bf16.msra.mxu0 0
  %289 = vmatpush.bf16.msra.mxu0 0
  %290 = vmatpush.bf16.msra.mxu0 0
  %291 = vmatpush.bf16.msra.mxu0 %v146
  %292 = vmatpush.bf16.msra.mxu0 %v142
  %293 = vmatpush.bf16.msra.mxu0 %v138
  %294 = vmatpush.bf16.msra.mxu0 %v134
  %295 = vmatmul.bf16.gmra.mxu0 %v166
  %v296 = vpop.f32.mrf.mxu0
  %v297 = vadd.f32 0.0, %v296
  %v298 = vpop.f32.mrf.mxu0
  %v299 = vadd.f32 0.0, %v298
  %300 = vmatmul.bf16.gmra.mxu0 %v169
  %v301 = vpop.f32.mrf.mxu0
  %v302 = vadd.f32 0.0, %v301
  %v303 = vpop.f32.mrf.mxu0
  %v304 = vadd.f32 0.0, %v303
  %305 = vmatmul.bf16.gmra.mxu0 %v172
  %v306 = vpop.f32.mrf.mxu0
  %v307 = vadd.f32 0.0, %v306
  %v308 = vpop.f32.mrf.mxu0
  %v309 = vadd.f32 0.0, %v308
  %310 = vmatmul.bf16.gmra.mxu0 %v175
  %v311 = vpop.f32.mrf.mxu0
  %v312 = vadd.f32 0.0, %v311
  %v313 = vpop.f32.mrf.mxu0
  %v314 = vadd.f32 0.0, %v313
  %315 = vmatmul.bf16.gmra.mxu0 %v178
  %v316 = vpop.f32.mrf.mxu0
  %v317 = vadd.f32 0.0, %v316
  %v318 = vpop.f32.mrf.mxu0
  %v319 = vadd.f32 0.0, %v318
  %320 = vmatmul.bf16.gmra.mxu0 %v181
  %v321 = vpop.f32.mrf.mxu0
  %v322 = vadd.f32 0.0, %v321
  %v323 = vpop.f32.mrf.mxu0
  %v324 = vadd.f32 0.0, %v323
  %325 = vmatmul.bf16.gmra.mxu0 %v184
  %v326 = vpop.f32.mrf.mxu0
  %v327 = vadd.f32 0.0, %v326
  %v328 = vpop.f32.mrf.mxu0
  %v329 = vadd.f32 0.0, %v328
  %330 = vmatmul.bf16.gmra.mxu0 %v187
  %v331 = vpop.f32.mrf.mxu0
  %v332 = vadd.f32 0.0, %v331
  %v333 = vpop.f32.mrf.mxu0
  %v334 = vadd.f32 0.0, %v333
  %335 = vdwg.mxu0
  %336 = vmatpush.bf16.msra.mxu0 0
  %337 = vmatpush.bf16.msra.mxu0 0
  %338 = vmatpush.bf16.msra.mxu0 0
  %339 = vmatpush.bf16.msra.mxu0 0
  %340 = vmatpush.bf16.msra.mxu0 %v147
  %341 = vmatpush.bf16.msra.mxu0 %v143
  %342 = vmatpush.bf16.msra.mxu0 %v139
  %343 = vmatpush.bf16.msra.mxu0 %v135
  %344 = vmatmul.bf16.gmra.mxu0 %v166
  %v345 = vpop.f32.mrf.mxu0
  %v346 = vadd.f32 0.0, %v345
  %v347 = vpop.f32.mrf.mxu0
  %v348 = vadd.f32 0.0, %v347
  %349 = vmatmul.bf16.gmra.mxu0 %v169
  %v350 = vpop.f32.mrf.mxu0
  %v351 = vadd.f32 0.0, %v350
  %v352 = vpop.f32.mrf.mxu0
  %v353 = vadd.f32 0.0, %v352
  %354 = vmatmul.bf16.gmra.mxu0 %v172
  %v355 = vpop.f32.mrf.mxu0
  %v356 = vadd.f32 0.0, %v355
  %v357 = vpop.f32.mrf.mxu0
  %v358 = vadd.f32 0.0, %v357
  %359 = vmatmul.bf16.gmra.mxu0 %v175
  %v360 = vpop.f32.mrf.mxu0
  %v361 = vadd.f32 0.0, %v360
  %v362 = vpop.f32.mrf.mxu0
  %v363 = vadd.f32 0.0, %v362
  %364 = vmatmul.bf16.gmra.mxu0 %v178
  %v365 = vpop.f32.mrf.mxu0
  %v366 = vadd.f32 0.0, %v365
  %v367 = vpop.f32.mrf.mxu0
  %v368 = vadd.f32 0.0, %v367
  %369 = vmatmul.bf16.gmra.mxu0 %v181
  %v370 = vpop.f32.mrf.mxu0
  %v371 = vadd.f32 0.0, %v370
  %v372 = vpop.f32.mrf.mxu0
  %v373 = vadd.f32 0.0, %v372
  %374 = vmatmul.bf16.gmra.mxu0 %v184
  %v375 = vpop.f32.mrf.mxu0
  %v376 = vadd.f32 0.0, %v375
  %v377 = vpop.f32.mrf.mxu0
  %v378 = vadd.f32 0.0, %v377
  %379 = vmatmul.bf16.gmra.mxu0 %v187
  %v380 = vpop.f32.mrf.mxu0
  %v381 = vadd.f32 0.0, %v380
  %v382 = vpop.f32.mrf.mxu0
  %v383 = vadd.f32 0.0, %v382
  %384 = vdwg.mxu0
  %385 = vst [vmem:[%s2] sm:$0xff] %v199
  %386 = vst [vmem:[%s2 + $0x8] sm:$0xff] %v248
  %387 = vst [vmem:[%s2 + $0x10] sm:$0xff] %v297
  %388 = vst [vmem:[%s2 + $0x18] sm:$0xff] %v346
  %389 = vst [vmem:[%s2 + $0x20] sm:$0xff] %v201
  %390 = vst [vmem:[%s2 + $0x28] sm:$0xff] %v250
  %391 = vst [vmem:[%s2 + $0x30] sm:$0xff] %v299
  %392 = vst [vmem:[%s2 + $0x38] sm:$0xff] %v348
  %393 = vst [vmem:[%s2 + $0x40] sm:$0xff] %v204
  %394 = vst [vmem:[%s2 + $0x48] sm:$0xff] %v253
  %395 = vst [vmem:[%s2 + $0x50] sm:$0xff] %v302
  %396 = vst [vmem:[%s2 + $0x58] sm:$0xff] %v351
  %397 = vst [vmem:[%s2 + $0x60] sm:$0xff] %v206
  %398 = vst [vmem:[%s2 + $0x68] sm:$0xff] %v255
  %399 = vst [vmem:[%s2 + $0x70] sm:$0xff] %v304
  %400 = vst [vmem:[%s2 + $0x78] sm:$0xff] %v353
  %401 = vst [vmem:[%s2 + $0x80] sm:$0xff] %v209
  %402 = vst [vmem:[%s2 + $0x88] sm:$0xff] %v258
  %403 = vst [vmem:[%s2 + $0x90] sm:$0xff] %v307
  %404 = vst [vmem:[%s2 + $0x98] sm:$0xff] %v356
  %405 = vst [vmem:[%s2 + $0xa0] sm:$0xff] %v211
  %406 = vst [vmem:[%s2 + $0xa8] sm:$0xff] %v260
  %407 = vst [vmem:[%s2 + $0xb0] sm:$0xff] %v309
  %408 = vst [vmem:[%s2 + $0xb8] sm:$0xff] %v358
  %409 = vst [vmem:[%s2 + $0xc0] sm:$0xff] %v214
  %410 = vst [vmem:[%s2 + $0xc8] sm:$0xff] %v263
  %411 = vst [vmem:[%s2 + $0xd0] sm:$0xff] %v312
  %412 = vst [vmem:[%s2 + $0xd8] sm:$0xff] %v361
  %413 = vst [vmem:[%s2 + $0xe0] sm:$0xff] %v216
  %414 = vst [vmem:[%s2 + $0xe8] sm:$0xff] %v265
  %415 = vst [vmem:[%s2 + $0xf0] sm:$0xff] %v314
  %416 = vst [vmem:[%s2 + $0xf8] sm:$0xff] %v363
  %417 = vst [vmem:[%s2 + $0x100] sm:$0xff] %v219
  %418 = vst [vmem:[%s2 + $0x108] sm:$0xff] %v268
  %419 = vst [vmem:[%s2 + $0x110] sm:$0xff] %v317
  %420 = vst [vmem:[%s2 + $0x118] sm:$0xff] %v366
  %421 = vst [vmem:[%s2 + $0x120] sm:$0xff] %v221
  %422 = vst [vmem:[%s2 + $0x128] sm:$0xff] %v270
  %423 = vst [vmem:[%s2 + $0x130] sm:$0xff] %v319
  %424 = vst [vmem:[%s2 + $0x138] sm:$0xff] %v368
  %425 = vst [vmem:[%s2 + $0x140] sm:$0xff] %v224
  %426 = vst [vmem:[%s2 + $0x148] sm:$0xff] %v273
  %427 = vst [vmem:[%s2 + $0x150] sm:$0xff] %v322
  %428 = vst [vmem:[%s2 + $0x158] sm:$0xff] %v371
  %429 = vst [vmem:[%s2 + $0x160] sm:$0xff] %v226
  %430 = vst [vmem:[%s2 + $0x168] sm:$0xff] %v275
  %431 = vst [vmem:[%s2 + $0x170] sm:$0xff] %v324
  %432 = vst [vmem:[%s2 + $0x178] sm:$0xff] %v373
  %433 = vst [vmem:[%s2 + $0x180] sm:$0xff] %v229
  %434 = vst [vmem:[%s2 + $0x188] sm:$0xff] %v278
  %435 = vst [vmem:[%s2 + $0x190] sm:$0xff] %v327
  %436 = vst [vmem:[%s2 + $0x198] sm:$0xff] %v376
  %437 = vst [vmem:[%s2 + $0x1a0] sm:$0xff] %v231
  %438 = vst [vmem:[%s2 + $0x1a8] sm:$0xff] %v280
  %439 = vst [vmem:[%s2 + $0x1b0] sm:$0xff] %v329
  %440 = vst [vmem:[%s2 + $0x1b8] sm:$0xff] %v378
  %441 = vst [vmem:[%s2 + $0x1c0] sm:$0xff] %v234
  %442 = vst [vmem:[%s2 + $0x1c8] sm:$0xff] %v283
  %443 = vst [vmem:[%s2 + $0x1d0] sm:$0xff] %v332
  %444 = vst [vmem:[%s2 + $0x1d8] sm:$0xff] %v381
  %445 = vst [vmem:[%s2 + $0x1e0] sm:$0xff] %v236
  %446 = vst [vmem:[%s2 + $0x1e8] sm:$0xff] %v285
  %447 = vst [vmem:[%s2 + $0x1f0] sm:$0xff] %v334
  %448 = vst [vmem:[%s2 + $0x1f8] sm:$0xff] %v383
  // Predicated region
  $region10: #{decoder_forward.7} parent=0 // pred_check
    _
  $region11: #{decoder_forward.7} parent=0 // pred_check_branch
    %450 = sbr.rel (0) target = $region13
  $region12: #{decoder_forward.7} parent=0 // pred_region
    _
  $region13: #{decoder_forward.7} parent=0 // pred_fallthru
    _
  // Predicated region
  $region14: #{decoder_forward.7} parent=0 // pred_check
    _
  $region15: #{decoder_forward.7} parent=0 // pred_check_branch
    %452 = sbr.rel (0) target = $region17
  $region16: #{decoder_forward.7} parent=0 // pred_region
    _
  $region17: #{decoder_forward.7} parent=0 // pred_fallthru
    _

// kernel: decoder_forward.8
$region0: #{decoder_forward.8}
  #allocation0 [shape = 'u32[]', space=smem, size = 0x4, offset = 0x4, fixed_abs, tag = 'smem constant byte address 0x4 - core index']
  #allocation1 [shape = 'u32[72,128]{1,0:T(1,128)}', space=vmem, size = 0x9000, scoped, tag = 'internal scratch']
  %s0 = inlined_call_operand.vmem [shape: bf16[512,32], index: 0, kind: input, shape index: {}]
  %s1 = inlined_call_operand.vmem [shape: bf16[32,256], index: 1, kind: input, shape index: {}]
  %s2 = inlined_call_operand.vmem [shape: f32[512,256], index: 2, kind: output, shape index: {}]
  %s3 = sld [smem:[#allocation0]]
  $region18: #{decoder_forward.8} parent=0
    _
  %s5 = ssub.s32 1, %s3
  %s6 = scalar_select 0, %s5, %s3
  // Predicated region
  $region2: #{decoder_forward.8} parent=0 // pred_check
    _
  $region3: #{decoder_forward.8} parent=0 // pred_check_branch
    %8 = sbr.rel (0) target = $region5
  $region4: #{decoder_forward.8} parent=0 // pred_region
    _
  $region5: #{decoder_forward.8} parent=0 // pred_fallthru
    _
  // Predicated region
  $region6: #{decoder_forward.8} parent=0 // pred_check
    _
  $region7: #{decoder_forward.8} parent=0 // pred_check_branch
    %10 = sbr.rel (0) target = $region9
  $region8: #{decoder_forward.8} parent=0 // pred_region
    _
  $region9: #{decoder_forward.8} parent=0 // pred_fallthru
    _
  %v12 = vld [vmem:[%s0] sm:$0xf]
  %v13 = vld [vmem:[%s0 + $0x4] sm:$0xf]
  %v14 = vld [vmem:[%s0 + $0x8] sm:$0xf]
  %v15 = vld [vmem:[%s0 + $0xc] sm:$0xf]
  %v16 = vld [vmem:[%s0 + $0x10] sm:$0xf]
  %v17 = vld [vmem:[%s0 + $0x14] sm:$0xf]
  %v18 = vld [vmem:[%s0 + $0x18] sm:$0xf]
  %v19 = vld [vmem:[%s0 + $0x1c] sm:$0xf]
  %v20 = vld [vmem:[%s0 + $0x20] sm:$0xf]
  %v21 = vld [vmem:[%s0 + $0x24] sm:$0xf]
  %v22 = vld [vmem:[%s0 + $0x28] sm:$0xf]
  %v23 = vld [vmem:[%s0 + $0x2c] sm:$0xf]
  %v24 = vld [vmem:[%s0 + $0x30] sm:$0xf]
  %v25 = vld [vmem:[%s0 + $0x34] sm:$0xf]
  %v26 = vld [vmem:[%s0 + $0x38] sm:$0xf]
  %v27 = vld [vmem:[%s0 + $0x3c] sm:$0xf]
  %v28 = vld [vmem:[%s0 + $0x40] sm:$0xf]
  %v29 = vld [vmem:[%s0 + $0x44] sm:$0xf]
  %v30 = vld [vmem:[%s0 + $0x48] sm:$0xf]
  %v31 = vld [vmem:[%s0 + $0x4c] sm:$0xf]
  %v32 = vld [vmem:[%s0 + $0x50] sm:$0xf]
  %v33 = vld [vmem:[%s0 + $0x54] sm:$0xf]
  %v34 = vld [vmem:[%s0 + $0x58] sm:$0xf]
  %v35 = vld [vmem:[%s0 + $0x5c] sm:$0xf]
  %v36 = vld [vmem:[%s0 + $0x60] sm:$0xf]
  %v37 = vld [vmem:[%s0 + $0x64] sm:$0xf]
  %v38 = vld [vmem:[%s0 + $0x68] sm:$0xf]
  %v39 = vld [vmem:[%s0 + $0x6c] sm:$0xf]
  %v40 = vld [vmem:[%s0 + $0x70] sm:$0xf]
  %v41 = vld [vmem:[%s0 + $0x74] sm:$0xf]
  %v42 = vld [vmem:[%s0 + $0x78] sm:$0xf]
  %v43 = vld [vmem:[%s0 + $0x7c] sm:$0xf]
  %v44 = vld [vmem:[%s0 + $0x80] sm:$0xf]
  %v45 = vld [vmem:[%s0 + $0x84] sm:$0xf]
  %v46 = vld [vmem:[%s0 + $0x88] sm:$0xf]
  %v47 = vld [vmem:[%s0 + $0x8c] sm:$0xf]
  %v48 = vld [vmem:[%s0 + $0x90] sm:$0xf]
  %v49 = vld [vmem:[%s0 + $0x94] sm:$0xf]
  %v50 = vld [vmem:[%s0 + $0x98] sm:$0xf]
  %v51 = vld [vmem:[%s0 + $0x9c] sm:$0xf]
  %v52 = vld [vmem:[%s0 + $0xa0] sm:$0xf]
  %v53 = vld [vmem:[%s0 + $0xa4] sm:$0xf]
  %v54 = vld [vmem:[%s0 + $0xa8] sm:$0xf]
  %v55 = vld [vmem:[%s0 + $0xac] sm:$0xf]
  %v56 = vld [vmem:[%s0 + $0xb0] sm:$0xf]
  %v57 = vld [vmem:[%s0 + $0xb4] sm:$0xf]
  %v58 = vld [vmem:[%s0 + $0xb8] sm:$0xf]
  %v59 = vld [vmem:[%s0 + $0xbc] sm:$0xf]
  %v60 = vld [vmem:[%s0 + $0xc0] sm:$0xf]
  %v61 = vld [vmem:[%s0 + $0xc4] sm:$0xf]
  %v62 = vld [vmem:[%s0 + $0xc8] sm:$0xf]
  %v63 = vld [vmem:[%s0 + $0xcc] sm:$0xf]
  %v64 = vld [vmem:[%s0 + $0xd0] sm:$0xf]
  %v65 = vld [vmem:[%s0 + $0xd4] sm:$0xf]
  %v66 = vld [vmem:[%s0 + $0xd8] sm:$0xf]
  %v67 = vld [vmem:[%s0 + $0xdc] sm:$0xf]
  %v68 = vld [vmem:[%s0 + $0xe0] sm:$0xf]
  %v69 = vld [vmem:[%s0 + $0xe4] sm:$0xf]
  %v70 = vld [vmem:[%s0 + $0xe8] sm:$0xf]
  %v71 = vld [vmem:[%s0 + $0xec] sm:$0xf]
  %v72 = vld [vmem:[%s0 + $0xf0] sm:$0xf]
  %v73 = vld [vmem:[%s0 + $0xf4] sm:$0xf]
  %v74 = vld [vmem:[%s0 + $0xf8] sm:$0xf]
  %v75 = vld [vmem:[%s0 + $0xfc] sm:$0xf]
  %v76 = vld [vmem:[%s1] sm:$0xff]
  %v77 = vld [vmem:[%s1 + $0x8] sm:$0xff]
  %v78 = vld [vmem:[%s1 + $0x10] sm:$0xff]
  %v79 = vld [vmem:[%s1 + $0x18] sm:$0xff]
  %v144 = vunpack.c.l.b16 %v12
  %v145 = vunpack.c.l.b16 %v13
  %v146 = vunpack.c.l.b16 %v14
  %v147 = vunpack.c.l.b16 %v15
  %v148 = vunpack.c.l.b16 %v16
  %v149 = vunpack.c.l.b16 %v17
  %v150 = vunpack.c.l.b16 %v18
  %v151 = vunpack.c.l.b16 %v19
  %v152 = vunpack.c.l.b16 %v20
  %v153 = vunpack.c.l.b16 %v21
  %v154 = vunpack.c.l.b16 %v22
  %v155 = vunpack.c.l.b16 %v23
  %v156 = vunpack.c.l.b16 %v24
  %v157 = vunpack.c.l.b16 %v25
  %v158 = vunpack.c.l.b16 %v26
  %v159 = vunpack.c.l.b16 %v27
  %v160 = vunpack.c.l.b16 %v28
  %v161 = vunpack.c.l.b16 %v29
  %v162 = vunpack.c.l.b16 %v30
  %v163 = vunpack.c.l.b16 %v31
  %v164 = vunpack.c.l.b16 %v32
  %v165 = vunpack.c.l.b16 %v33
  %v166 = vunpack.c.l.b16 %v34
  %v167 = vunpack.c.l.b16 %v35
  %v168 = vunpack.c.l.b16 %v36
  %v169 = vunpack.c.l.b16 %v37
  %v170 = vunpack.c.l.b16 %v38
  %v171 = vunpack.c.l.b16 %v39
  %v172 = vunpack.c.l.b16 %v40
  %v173 = vunpack.c.l.b16 %v41
  %v174 = vunpack.c.l.b16 %v42
  %v175 = vunpack.c.l.b16 %v43
  %v176 = vunpack.c.l.b16 %v44
  %v177 = vunpack.c.l.b16 %v45
  %v178 = vunpack.c.l.b16 %v46
  %v179 = vunpack.c.l.b16 %v47
  %v180 = vunpack.c.l.b16 %v48
  %v181 = vunpack.c.l.b16 %v49
  %v182 = vunpack.c.l.b16 %v50
  %v183 = vunpack.c.l.b16 %v51
  %v184 = vunpack.c.l.b16 %v52
  %v185 = vunpack.c.l.b16 %v53
  %v186 = vunpack.c.l.b16 %v54
  %v187 = vunpack.c.l.b16 %v55
  %v188 = vunpack.c.l.b16 %v56
  %v189 = vunpack.c.l.b16 %v57
  %v190 = vunpack.c.l.b16 %v58
  %v191 = vunpack.c.l.b16 %v59
  %v192 = vunpack.c.l.b16 %v60
  %v193 = vunpack.c.l.b16 %v61
  %v194 = vunpack.c.l.b16 %v62
  %v195 = vunpack.c.l.b16 %v63
  %v196 = vunpack.c.l.b16 %v64
  %v197 = vunpack.c.l.b16 %v65
  %v198 = vunpack.c.l.b16 %v66
  %v199 = vunpack.c.l.b16 %v67
  %v200 = vunpack.c.l.b16 %v68
  %v201 = vunpack.c.l.b16 %v69
  %v202 = vunpack.c.l.b16 %v70
  %v203 = vunpack.c.l.b16 %v71
  %v204 = vunpack.c.l.b16 %v72
  %v205 = vunpack.c.l.b16 %v73
  %v206 = vunpack.c.l.b16 %v74
  %v207 = vunpack.c.l.b16 %v75
  %v208 = vpack.c.b16 %v145, %v144
  %v209 = vpack.c.b16 %v147, %v146
  %v210 = vpack.c.b16 %v149, %v148
  %v211 = vpack.c.b16 %v151, %v150
  %v212 = vpack.c.b16 %v153, %v152
  %v213 = vpack.c.b16 %v155, %v154
  %v214 = vpack.c.b16 %v157, %v156
  %v215 = vpack.c.b16 %v159, %v158
  %v216 = vpack.c.b16 %v161, %v160
  %v217 = vpack.c.b16 %v163, %v162
  %v218 = vpack.c.b16 %v165, %v164
  %v219 = vpack.c.b16 %v167, %v166
  %v220 = vpack.c.b16 %v169, %v168
  %v221 = vpack.c.b16 %v171, %v170
  %v222 = vpack.c.b16 %v173, %v172
  %v223 = vpack.c.b16 %v175, %v174
  %v224 = vpack.c.b16 %v177, %v176
  %v225 = vpack.c.b16 %v179, %v178
  %v226 = vpack.c.b16 %v181, %v180
  %v227 = vpack.c.b16 %v183, %v182
  %v228 = vpack.c.b16 %v185, %v184
  %v229 = vpack.c.b16 %v187, %v186
  %v230 = vpack.c.b16 %v189, %v188
  %v231 = vpack.c.b16 %v191, %v190
  %v232 = vpack.c.b16 %v193, %v192
  %v233 = vpack.c.b16 %v195, %v194
  %v234 = vpack.c.b16 %v197, %v196
  %v235 = vpack.c.b16 %v199, %v198
  %v236 = vpack.c.b16 %v201, %v200
  %v237 = vpack.c.b16 %v203, %v202
  %v238 = vpack.c.b16 %v205, %v204
  %v239 = vpack.c.b16 %v207, %v206
  %v244 = vunpack.c.l.b16 %v76
  %v245 = vunpack.c.h.b16 %v76
  %v246 = vunpack.c.l.b16 %v77
  %v247 = vunpack.c.h.b16 %v77
  %v248 = vunpack.c.l.b16 %v78
  %v249 = vunpack.c.h.b16 %v78
  %v250 = vunpack.c.l.b16 %v79
  %v251 = vunpack.c.h.b16 %v79
  %v252 = vpack.c.b16 %v246, %v244
  %v253 = vpack.c.b16 %v247, %v245
  %v254 = vpack.c.b16 %v250, %v248
  %v255 = vpack.c.b16 %v251, %v249
  %vm260 = vcmask 261120
  %v262 = vsel %vm260, %v208, 0
  %v265 = vsel %vm260, %v209, 0
  %v268 = vsel %vm260, %v210, 0
  %v271 = vsel %vm260, %v211, 0
  %v274 = vsel %vm260, %v212, 0
  %v277 = vsel %vm260, %v213, 0
  %v280 = vsel %vm260, %v214, 0
  %v283 = vsel %vm260, %v215, 0
  %v286 = vsel %vm260, %v216, 0
  %v289 = vsel %vm260, %v217, 0
  %v292 = vsel %vm260, %v218, 0
  %v295 = vsel %vm260, %v219, 0
  %v298 = vsel %vm260, %v220, 0
  %v301 = vsel %vm260, %v221, 0
  %v304 = vsel %vm260, %v222, 0
  %v307 = vsel %vm260, %v223, 0
  %v310 = vsel %vm260, %v224, 0
  %v313 = vsel %vm260, %v225, 0
  %v316 = vsel %vm260, %v226, 0
  %v319 = vsel %vm260, %v227, 0
  %v322 = vsel %vm260, %v228, 0
  %v325 = vsel %vm260, %v229, 0
  %v328 = vsel %vm260, %v230, 0
  %v331 = vsel %vm260, %v231, 0
  %v334 = vsel %vm260, %v232, 0
  %v337 = vsel %vm260, %v233, 0
  %v340 = vsel %vm260, %v234, 0
  %v343 = vsel %vm260, %v235, 0
  %v346 = vsel %vm260, %v236, 0
  %v349 = vsel %vm260, %v237, 0
  %v352 = vsel %vm260, %v238, 0
  %v355 = vsel %vm260, %v239, 0
  %357 = vmatpush.bf16.msra.mxu0 0
  %358 = vmatpush.bf16.msra.mxu0 0
  %359 = vmatpush.bf16.msra.mxu0 0
  %360 = vmatpush.bf16.msra.mxu0 0
  %361 = vmatpush.bf16.msra.mxu0 0
  %362 = vmatpush.bf16.msra.mxu0 0
  %363 = vmatpush.bf16.msra.mxu0 %v254
  %364 = vmatpush.bf16.msra.mxu0 %v252
  %365 = vmatmul.bf16.gmra.mxu0 %v262
  %v366 = vpop.f32.mrf.mxu0
  %v367 = vadd.f32 0.0, %v366
  %v368 = vpop.f32.mrf.mxu0
  %v369 = vadd.f32 0.0, %v368
  %370 = vmatmul.bf16.gmra.mxu0 %v265
  %v371 = vpop.f32.mrf.mxu0
  %v372 = vadd.f32 0.0, %v371
  %v373 = vpop.f32.mrf.mxu0
  %v374 = vadd.f32 0.0, %v373
  %375 = vmatmul.bf16.gmra.mxu0 %v268
  %v376 = vpop.f32.mrf.mxu0
  %v377 = vadd.f32 0.0, %v376
  %v378 = vpop.f32.mrf.mxu0
  %v379 = vadd.f32 0.0, %v378
  %380 = vmatmul.bf16.gmra.mxu0 %v271
  %v381 = vpop.f32.mrf.mxu0
  %v382 = vadd.f32 0.0, %v381
  %v383 = vpop.f32.mrf.mxu0
  %v384 = vadd.f32 0.0, %v383
  %385 = vmatmul.bf16.gmra.mxu0 %v274
  %v386 = vpop.f32.mrf.mxu0
  %v387 = vadd.f32 0.0, %v386
  %v388 = vpop.f32.mrf.mxu0
  %v389 = vadd.f32 0.0, %v388
  %390 = vmatmul.bf16.gmra.mxu0 %v277
  %v391 = vpop.f32.mrf.mxu0
  %v392 = vadd.f32 0.0, %v391
  %v393 = vpop.f32.mrf.mxu0
  %v394 = vadd.f32 0.0, %v393
  %395 = vmatmul.bf16.gmra.mxu0 %v280
  %v396 = vpop.f32.mrf.mxu0
  %v397 = vadd.f32 0.0, %v396
  %v398 = vpop.f32.mrf.mxu0
  %v399 = vadd.f32 0.0, %v398
  %400 = vmatmul.bf16.gmra.mxu0 %v283
  %v401 = vpop.f32.mrf.mxu0
  %v402 = vadd.f32 0.0, %v401
  %v403 = vpop.f32.mrf.mxu0
  %v404 = vadd.f32 0.0, %v403
  %405 = vmatmul.bf16.gmra.mxu0 %v286
  %v406 = vpop.f32.mrf.mxu0
  %v407 = vadd.f32 0.0, %v406
  %v408 = vpop.f32.mrf.mxu0
  %v409 = vadd.f32 0.0, %v408
  %410 = vmatmul.bf16.gmra.mxu0 %v289
  %v411 = vpop.f32.mrf.mxu0
  %v412 = vadd.f32 0.0, %v411
  %v413 = vpop.f32.mrf.mxu0
  %v414 = vadd.f32 0.0, %v413
  %415 = vmatmul.bf16.gmra.mxu0 %v292
  %v416 = vpop.f32.mrf.mxu0
  %v417 = vadd.f32 0.0, %v416
  %v418 = vpop.f32.mrf.mxu0
  %v419 = vadd.f32 0.0, %v418
  %420 = vmatmul.bf16.gmra.mxu0 %v295
  %v421 = vpop.f32.mrf.mxu0
  %v422 = vadd.f32 0.0, %v421
  %v423 = vpop.f32.mrf.mxu0
  %v424 = vadd.f32 0.0, %v423
  %425 = vmatmul.bf16.gmra.mxu0 %v298
  %v426 = vpop.f32.mrf.mxu0
  %v427 = vadd.f32 0.0, %v426
  %v428 = vpop.f32.mrf.mxu0
  %v429 = vadd.f32 0.0, %v428
  %430 = vmatmul.bf16.gmra.mxu0 %v301
  %v431 = vpop.f32.mrf.mxu0
  %v432 = vadd.f32 0.0, %v431
  %v433 = vpop.f32.mrf.mxu0
  %v434 = vadd.f32 0.0, %v433
  %435 = vmatmul.bf16.gmra.mxu0 %v304
  %v436 = vpop.f32.mrf.mxu0
  %v437 = vadd.f32 0.0, %v436
  %v438 = vpop.f32.mrf.mxu0
  %v439 = vadd.f32 0.0, %v438
  %440 = vmatmul.bf16.gmra.mxu0 %v307
  %v441 = vpop.f32.mrf.mxu0
  %v442 = vadd.f32 0.0, %v441
  %v443 = vpop.f32.mrf.mxu0
  %v444 = vadd.f32 0.0, %v443
  %445 = vmatmul.bf16.gmra.mxu0 %v310
  %v446 = vpop.f32.mrf.mxu0
  %v447 = vadd.f32 0.0, %v446
  %v448 = vpop.f32.mrf.mxu0
  %v449 = vadd.f32 0.0, %v448
  %450 = vmatmul.bf16.gmra.mxu0 %v313
  %v451 = vpop.f32.mrf.mxu0
  %v452 = vadd.f32 0.0, %v451
  %v453 = vpop.f32.mrf.mxu0
  %v454 = vadd.f32 0.0, %v453
  %455 = vmatmul.bf16.gmra.mxu0 %v316
  %v456 = vpop.f32.mrf.mxu0
  %v457 = vadd.f32 0.0, %v456
  %v458 = vpop.f32.mrf.mxu0
  %v459 = vadd.f32 0.0, %v458
  %460 = vmatmul.bf16.gmra.mxu0 %v319
  %v461 = vpop.f32.mrf.mxu0
  %v462 = vadd.f32 0.0, %v461
  %v463 = vpop.f32.mrf.mxu0
  %v464 = vadd.f32 0.0, %v463
  %465 = vmatmul.bf16.gmra.mxu0 %v322
  %v466 = vpop.f32.mrf.mxu0
  %v467 = vadd.f32 0.0, %v466
  %v468 = vpop.f32.mrf.mxu0
  %v469 = vadd.f32 0.0, %v468
  %470 = vmatmul.bf16.gmra.mxu0 %v325
  %v471 = vpop.f32.mrf.mxu0
  %v472 = vadd.f32 0.0, %v471
  %v473 = vpop.f32.mrf.mxu0
  %v474 = vadd.f32 0.0, %v473
  %475 = vmatmul.bf16.gmra.mxu0 %v328
  %v476 = vpop.f32.mrf.mxu0
  %v477 = vadd.f32 0.0, %v476
  %v478 = vpop.f32.mrf.mxu0
  %v479 = vadd.f32 0.0, %v478
  %480 = vmatmul.bf16.gmra.mxu0 %v331
  %v481 = vpop.f32.mrf.mxu0
  %v482 = vadd.f32 0.0, %v481
  %v483 = vpop.f32.mrf.mxu0
  %v484 = vadd.f32 0.0, %v483
  %485 = vmatmul.bf16.gmra.mxu0 %v334
  %v486 = vpop.f32.mrf.mxu0
  %v487 = vadd.f32 0.0, %v486
  %v488 = vpop.f32.mrf.mxu0
  %v489 = vadd.f32 0.0, %v488
  %490 = vmatmul.bf16.gmra.mxu0 %v337
  %v491 = vpop.f32.mrf.mxu0
  %v492 = vadd.f32 0.0, %v491
  %v493 = vpop.f32.mrf.mxu0
  %v494 = vadd.f32 0.0, %v493
  %495 = vmatmul.bf16.gmra.mxu0 %v340
  %v496 = vpop.f32.mrf.mxu0
  %v497 = vadd.f32 0.0, %v496
  %v498 = vpop.f32.mrf.mxu0
  %v499 = vadd.f32 0.0, %v498
  %500 = vmatmul.bf16.gmra.mxu0 %v343
  %v501 = vpop.f32.mrf.mxu0
  %v502 = vadd.f32 0.0, %v501
  %v503 = vpop.f32.mrf.mxu0
  %v504 = vadd.f32 0.0, %v503
  %505 = vmatmul.bf16.gmra.mxu0 %v346
  %v506 = vpop.f32.mrf.mxu0
  %v507 = vadd.f32 0.0, %v506
  %v508 = vpop.f32.mrf.mxu0
  %v509 = vadd.f32 0.0, %v508
  %510 = vmatmul.bf16.gmra.mxu0 %v349
  %v511 = vpop.f32.mrf.mxu0
  %v512 = vadd.f32 0.0, %v511
  %v513 = vpop.f32.mrf.mxu0
  %v514 = vadd.f32 0.0, %v513
  %515 = vmatmul.bf16.gmra.mxu0 %v352
  %v516 = vpop.f32.mrf.mxu0
  %v517 = vadd.f32 0.0, %v516
  %v518 = vpop.f32.mrf.mxu0
  %v519 = vadd.f32 0.0, %v518
  %520 = vmatmul.bf16.gmra.mxu0 %v355
  %v521 = vpop.f32.mrf.mxu0
  %v522 = vadd.f32 0.0, %v521
  %v523 = vpop.f32.mrf.mxu0
  %v524 = vadd.f32 0.0, %v523
  %525 = vdwg.mxu0
  %526 = vmatpush.bf16.msra.mxu0 0
  %527 = vmatpush.bf16.msra.mxu0 0
  %528 = vmatpush.bf16.msra.mxu0 0
  %529 = vmatpush.bf16.msra.mxu0 0
  %530 = vmatpush.bf16.msra.mxu0 0
  %531 = vmatpush.bf16.msra.mxu0 0
  %532 = vmatpush.bf16.msra.mxu0 %v255
  %533 = vmatpush.bf16.msra.mxu0 %v253
  %534 = vmatmul.bf16.gmra.mxu0 %v262
  %v535 = vpop.f32.mrf.mxu0
  %v536 = vadd.f32 0.0, %v535
  %v537 = vpop.f32.mrf.mxu0
  %v538 = vadd.f32 0.0, %v537
  %539 = vmatmul.bf16.gmra.mxu0 %v265
  %v540 = vpop.f32.mrf.mxu0
  %v541 = vadd.f32 0.0, %v540
  %v542 = vpop.f32.mrf.mxu0
  %v543 = vadd.f32 0.0, %v542
  %544 = vmatmul.bf16.gmra.mxu0 %v268
  %v545 = vpop.f32.mrf.mxu0
  %v546 = vadd.f32 0.0, %v545
  %v547 = vpop.f32.mrf.mxu0
  %v548 = vadd.f32 0.0, %v547
  %549 = vmatmul.bf16.gmra.mxu0 %v271
  %v550 = vpop.f32.mrf.mxu0
  %v551 = vadd.f32 0.0, %v550
  %v552 = vpop.f32.mrf.mxu0
  %v553 = vadd.f32 0.0, %v552
  %554 = vmatmul.bf16.gmra.mxu0 %v274
  %v555 = vpop.f32.mrf.mxu0
  %v556 = vadd.f32 0.0, %v555
  %v557 = vpop.f32.mrf.mxu0
  %v558 = vadd.f32 0.0, %v557
  %559 = vmatmul.bf16.gmra.mxu0 %v277
  %v560 = vpop.f32.mrf.mxu0
  %v561 = vadd.f32 0.0, %v560
  %v562 = vpop.f32.mrf.mxu0
  %v563 = vadd.f32 0.0, %v562
  %564 = vmatmul.bf16.gmra.mxu0 %v280
  %v565 = vpop.f32.mrf.mxu0
  %v566 = vadd.f32 0.0, %v565
  %v567 = vpop.f32.mrf.mxu0
  %v568 = vadd.f32 0.0, %v567
  %569 = vmatmul.bf16.gmra.mxu0 %v283
  %v570 = vpop.f32.mrf.mxu0
  %v571 = vadd.f32 0.0, %v570
  %v572 = vpop.f32.mrf.mxu0
  %v573 = vadd.f32 0.0, %v572
  %574 = vmatmul.bf16.gmra.mxu0 %v286
  %v575 = vpop.f32.mrf.mxu0
  %v576 = vadd.f32 0.0, %v575
  %v577 = vpop.f32.mrf.mxu0
  %v578 = vadd.f32 0.0, %v577
  %579 = vmatmul.bf16.gmra.mxu0 %v289
  %v580 = vpop.f32.mrf.mxu0
  %v581 = vadd.f32 0.0, %v580
  %v582 = vpop.f32.mrf.mxu0
  %v583 = vadd.f32 0.0, %v582
  %584 = vmatmul.bf16.gmra.mxu0 %v292
  %v585 = vpop.f32.mrf.mxu0
  %v586 = vadd.f32 0.0, %v585
  %v587 = vpop.f32.mrf.mxu0
  %v588 = vadd.f32 0.0, %v587
  %589 = vmatmul.bf16.gmra.mxu0 %v295
  %v590 = vpop.f32.mrf.mxu0
  %v591 = vadd.f32 0.0, %v590
  %v592 = vpop.f32.mrf.mxu0
  %v593 = vadd.f32 0.0, %v592
  %594 = vmatmul.bf16.gmra.mxu0 %v298
  %v595 = vpop.f32.mrf.mxu0
  %v596 = vadd.f32 0.0, %v595
  %v597 = vpop.f32.mrf.mxu0
  %v598 = vadd.f32 0.0, %v597
  %599 = vmatmul.bf16.gmra.mxu0 %v301
  %v600 = vpop.f32.mrf.mxu0
  %v601 = vadd.f32 0.0, %v600
  %v602 = vpop.f32.mrf.mxu0
  %v603 = vadd.f32 0.0, %v602
  %604 = vmatmul.bf16.gmra.mxu0 %v304
  %v605 = vpop.f32.mrf.mxu0
  %v606 = vadd.f32 0.0, %v605
  %v607 = vpop.f32.mrf.mxu0
  %v608 = vadd.f32 0.0, %v607
  %609 = vmatmul.bf16.gmra.mxu0 %v307
  %v610 = vpop.f32.mrf.mxu0
  %v611 = vadd.f32 0.0, %v610
  %v612 = vpop.f32.mrf.mxu0
  %v613 = vadd.f32 0.0, %v612
  %614 = vmatmul.bf16.gmra.mxu0 %v310
  %v615 = vpop.f32.mrf.mxu0
  %v616 = vadd.f32 0.0, %v615
  %v617 = vpop.f32.mrf.mxu0
  %v618 = vadd.f32 0.0, %v617
  %619 = vmatmul.bf16.gmra.mxu0 %v313
  %v620 = vpop.f32.mrf.mxu0
  %v621 = vadd.f32 0.0, %v620
  %v622 = vpop.f32.mrf.mxu0
  %v623 = vadd.f32 0.0, %v622
  %624 = vmatmul.bf16.gmra.mxu0 %v316
  %v625 = vpop.f32.mrf.mxu0
  %v626 = vadd.f32 0.0, %v625
  %v627 = vpop.f32.mrf.mxu0
  %v628 = vadd.f32 0.0, %v627
  %629 = vmatmul.bf16.gmra.mxu0 %v319
  %v630 = vpop.f32.mrf.mxu0
  %v631 = vadd.f32 0.0, %v630
  %v632 = vpop.f32.mrf.mxu0
  %v633 = vadd.f32 0.0, %v632
  %634 = vmatmul.bf16.gmra.mxu0 %v322
  %v635 = vpop.f32.mrf.mxu0
  %v636 = vadd.f32 0.0, %v635
  %v637 = vpop.f32.mrf.mxu0
  %v638 = vadd.f32 0.0, %v637
  %639 = vmatmul.bf16.gmra.mxu0 %v325
  %v640 = vpop.f32.mrf.mxu0
  %v641 = vadd.f32 0.0, %v640
  %v642 = vpop.f32.mrf.mxu0
  %v643 = vadd.f32 0.0, %v642
  %644 = vmatmul.bf16.gmra.mxu0 %v328
  %v645 = vpop.f32.mrf.mxu0
  %v646 = vadd.f32 0.0, %v645
  %v647 = vpop.f32.mrf.mxu0
  %v648 = vadd.f32 0.0, %v647
  %649 = vmatmul.bf16.gmra.mxu0 %v331
  %v650 = vpop.f32.mrf.mxu0
  %v651 = vadd.f32 0.0, %v650
  %v652 = vpop.f32.mrf.mxu0
  %v653 = vadd.f32 0.0, %v652
  %654 = vmatmul.bf16.gmra.mxu0 %v334
  %v655 = vpop.f32.mrf.mxu0
  %v656 = vadd.f32 0.0, %v655
  %v657 = vpop.f32.mrf.mxu0
  %v658 = vadd.f32 0.0, %v657
  %659 = vmatmul.bf16.gmra.mxu0 %v337
  %v660 = vpop.f32.mrf.mxu0
  %v661 = vadd.f32 0.0, %v660
  %v662 = vpop.f32.mrf.mxu0
  %v663 = vadd.f32 0.0, %v662
  %664 = vmatmul.bf16.gmra.mxu0 %v340
  %v665 = vpop.f32.mrf.mxu0
  %v666 = vadd.f32 0.0, %v665
  %v667 = vpop.f32.mrf.mxu0
  %v668 = vadd.f32 0.0, %v667
  %669 = vmatmul.bf16.gmra.mxu0 %v343
  %v670 = vpop.f32.mrf.mxu0
  %v671 = vadd.f32 0.0, %v670
  %v672 = vpop.f32.mrf.mxu0
  %v673 = vadd.f32 0.0, %v672
  %674 = vmatmul.bf16.gmra.mxu0 %v346
  %v675 = vpop.f32.mrf.mxu0
  %v676 = vadd.f32 0.0, %v675
  %v677 = vpop.f32.mrf.mxu0
  %v678 = vadd.f32 0.0, %v677
  %679 = vmatmul.bf16.gmra.mxu0 %v349
  %v680 = vpop.f32.mrf.mxu0
  %v681 = vadd.f32 0.0, %v680
  %v682 = vpop.f32.mrf.mxu0
  %v683 = vadd.f32 0.0, %v682
  %684 = vmatmul.bf16.gmra.mxu0 %v352
  %v685 = vpop.f32.mrf.mxu0
  %v686 = vadd.f32 0.0, %v685
  %v687 = vpop.f32.mrf.mxu0
  %v688 = vadd.f32 0.0, %v687
  %689 = vmatmul.bf16.gmra.mxu0 %v355
  %v690 = vpop.f32.mrf.mxu0
  %v691 = vadd.f32 0.0, %v690
  %v692 = vpop.f32.mrf.mxu0
  %v693 = vadd.f32 0.0, %v692
  %694 = vdwg.mxu0
  %695 = vst [vmem:[%s2] sm:$0xff] %v367
  %696 = vst [vmem:[%s2 + $0x8] sm:$0xff] %v536
  %697 = vst [vmem:[%s2 + $0x10] sm:$0xff] %v369
  %698 = vst [vmem:[%s2 + $0x18] sm:$0xff] %v538
  %699 = vst [vmem:[%s2 + $0x20] sm:$0xff] %v372
  %700 = vst [vmem:[%s2 + $0x28] sm:$0xff] %v541
  %701 = vst [vmem:[%s2 + $0x30] sm:$0xff] %v374
  %702 = vst [vmem:[%s2 + $0x38] sm:$0xff] %v543
  %703 = vst [vmem:[%s2 + $0x40] sm:$0xff] %v377
  %704 = vst [vmem:[%s2 + $0x48] sm:$0xff] %v546
  %705 = vst [vmem:[%s2 + $0x50] sm:$0xff] %v379
  %706 = vst [vmem:[%s2 + $0x58] sm:$0xff] %v548
  %707 = vst [vmem:[%s2 + $0x60] sm:$0xff] %v382
  %708 = vst [vmem:[%s2 + $0x68] sm:$0xff] %v551
  %709 = vst [vmem:[%s2 + $0x70] sm:$0xff] %v384
  %710 = vst [vmem:[%s2 + $0x78] sm:$0xff] %v553
  %711 = vst [vmem:[%s2 + $0x80] sm:$0xff] %v387
  %712 = vst [vmem:[%s2 + $0x88] sm:$0xff] %v556
  %713 = vst [vmem:[%s2 + $0x90] sm:$0xff] %v389
  %714 = vst [vmem:[%s2 + $0x98] sm:$0xff] %v558
  %715 = vst [vmem:[%s2 + $0xa0] sm:$0xff] %v392
  %716 = vst [vmem:[%s2 + $0xa8] sm:$0xff] %v561
  %717 = vst [vmem:[%s2 + $0xb0] sm:$0xff] %v394
  %718 = vst [vmem:[%s2 + $0xb8] sm:$0xff] %v563
  %719 = vst [vmem:[%s2 + $0xc0] sm:$0xff] %v397
  %720 = vst [vmem:[%s2 + $0xc8] sm:$0xff] %v566
  %721 = vst [vmem:[%s2 + $0xd0] sm:$0xff] %v399
  %722 = vst [vmem:[%s2 + $0xd8] sm:$0xff] %v568
  %723 = vst [vmem:[%s2 + $0xe0] sm:$0xff] %v402
  %724 = vst [vmem:[%s2 + $0xe8] sm:$0xff] %v571
  %725 = vst [vmem:[%s2 + $0xf0] sm:$0xff] %v404
  %726 = vst [vmem:[%s2 + $0xf8] sm:$0xff] %v573
  %727 = vst [vmem:[%s2 + $0x100] sm:$0xff] %v407
  %728 = vst [vmem:[%s2 + $0x108] sm:$0xff] %v576
  %729 = vst [vmem:[%s2 + $0x110] sm:$0xff] %v409
  %730 = vst [vmem:[%s2 + $0x118] sm:$0xff] %v578
  %731 = vst [vmem:[%s2 + $0x120] sm:$0xff] %v412
  %732 = vst [vmem:[%s2 + $0x128] sm:$0xff] %v581
  %733 = vst [vmem:[%s2 + $0x130] sm:$0xff] %v414
  %734 = vst [vmem:[%s2 + $0x138] sm:$0xff] %v583
  %735 = vst [vmem:[%s2 + $0x140] sm:$0xff] %v417
  %736 = vst [vmem:[%s2 + $0x148] sm:$0xff] %v586
  %737 = vst [vmem:[%s2 + $0x150] sm:$0xff] %v419
  %738 = vst [vmem:[%s2 + $0x158] sm:$0xff] %v588
  %739 = vst [vmem:[%s2 + $0x160] sm:$0xff] %v422
  %740 = vst [vmem:[%s2 + $0x168] sm:$0xff] %v591
  %741 = vst [vmem:[%s2 + $0x170] sm:$0xff] %v424
  %742 = vst [vmem:[%s2 + $0x178] sm:$0xff] %v593
  %743 = vst [vmem:[%s2 + $0x180] sm:$0xff] %v427
  %744 = vst [vmem:[%s2 + $0x188] sm:$0xff] %v596
  %745 = vst [vmem:[%s2 + $0x190] sm:$0xff] %v429
  %746 = vst [vmem:[%s2 + $0x198] sm:$0xff] %v598
  %747 = vst [vmem:[%s2 + $0x1a0] sm:$0xff] %v432
  %748 = vst [vmem:[%s2 + $0x1a8] sm:$0xff] %v601
  %749 = vst [vmem:[%s2 + $0x1b0] sm:$0xff] %v434
  %750 = vst [vmem:[%s2 + $0x1b8] sm:$0xff] %v603
  %751 = vst [vmem:[%s2 + $0x1c0] sm:$0xff] %v437
  %752 = vst [vmem:[%s2 + $0x1c8] sm:$0xff] %v606
  %753 = vst [vmem:[%s2 + $0x1d0] sm:$0xff] %v439
  %754 = vst [vmem:[%s2 + $0x1d8] sm:$0xff] %v608
  %755 = vst [vmem:[%s2 + $0x1e0] sm:$0xff] %v442
  %756 = vst [vmem:[%s2 + $0x1e8] sm:$0xff] %v611
  %757 = vst [vmem:[%s2 + $0x1f0] sm:$0xff] %v444
  %758 = vst [vmem:[%s2 + $0x1f8] sm:$0xff] %v613
  %759 = vst [vmem:[%s2 + $0x200] sm:$0xff] %v447
  %760 = vst [vmem:[%s2 + $0x208] sm:$0xff] %v616
  %761 = vst [vmem:[%s2 + $0x210] sm:$0xff] %v449
  %762 = vst [vmem:[%s2 + $0x218] sm:$0xff] %v618
  %763 = vst [vmem:[%s2 + $0x220] sm:$0xff] %v452
  %764 = vst [vmem:[%s2 + $0x228] sm:$0xff] %v621
  %765 = vst [vmem:[%s2 + $0x230] sm:$0xff] %v454
  %766 = vst [vmem:[%s2 + $0x238] sm:$0xff] %v623
  %767 = vst [vmem:[%s2 + $0x240] sm:$0xff] %v457
  %768 = vst [vmem:[%s2 + $0x248] sm:$0xff] %v626
  %769 = vst [vmem:[%s2 + $0x250] sm:$0xff] %v459
  %770 = vst [vmem:[%s2 + $0x258] sm:$0xff] %v628
  %771 = vst [vmem:[%s2 + $0x260] sm:$0xff] %v462
  %772 = vst [vmem:[%s2 + $0x268] sm:$0xff] %v631
  %773 = vst [vmem:[%s2 + $0x270] sm:$0xff] %v464
  %774 = vst [vmem:[%s2 + $0x278] sm:$0xff] %v633
  %775 = vst [vmem:[%s2 + $0x280] sm:$0xff] %v467
  %776 = vst [vmem:[%s2 + $0x288] sm:$0xff] %v636
  %777 = vst [vmem:[%s2 + $0x290] sm:$0xff] %v469
  %778 = vst [vmem:[%s2 + $0x298] sm:$0xff] %v638
  %779 = vst [vmem:[%s2 + $0x2a0] sm:$0xff] %v472
  %780 = vst [vmem:[%s2 + $0x2a8] sm:$0xff] %v641
  %781 = vst [vmem:[%s2 + $0x2b0] sm:$0xff] %v474
  %782 = vst [vmem:[%s2 + $0x2b8] sm:$0xff] %v643
  %783 = vst [vmem:[%s2 + $0x2c0] sm:$0xff] %v477
  %784 = vst [vmem:[%s2 + $0x2c8] sm:$0xff] %v646
  %785 = vst [vmem:[%s2 + $0x2d0] sm:$0xff] %v479
  %786 = vst [vmem:[%s2 + $0x2d8] sm:$0xff] %v648
  %787 = vst [vmem:[%s2 + $0x2e0] sm:$0xff] %v482
  %788 = vst [vmem:[%s2 + $0x2e8] sm:$0xff] %v651
  %789 = vst [vmem:[%s2 + $0x2f0] sm:$0xff] %v484
  %790 = vst [vmem:[%s2 + $0x2f8] sm:$0xff] %v653
  %791 = vst [vmem:[%s2 + $0x300] sm:$0xff] %v487
  %792 = vst [vmem:[%s2 + $0x308] sm:$0xff] %v656
  %793 = vst [vmem:[%s2 + $0x310] sm:$0xff] %v489
  %794 = vst [vmem:[%s2 + $0x318] sm:$0xff] %v658
  %795 = vst [vmem:[%s2 + $0x320] sm:$0xff] %v492
  %796 = vst [vmem:[%s2 + $0x328] sm:$0xff] %v661
  %797 = vst [vmem:[%s2 + $0x330] sm:$0xff] %v494
  %798 = vst [vmem:[%s2 + $0x338] sm:$0xff] %v663
  %799 = vst [vmem:[%s2 + $0x340] sm:$0xff] %v497
  %800 = vst [vmem:[%s2 + $0x348] sm:$0xff] %v666
  %801 = vst [vmem:[%s2 + $0x350] sm:$0xff] %v499
  %802 = vst [vmem:[%s2 + $0x358] sm:$0xff] %v668
  %803 = vst [vmem:[%s2 + $0x360] sm:$0xff] %v502
  %804 = vst [vmem:[%s2 + $0x368] sm:$0xff] %v671
  %805 = vst [vmem:[%s2 + $0x370] sm:$0xff] %v504
  %806 = vst [vmem:[%s2 + $0x378] sm:$0xff] %v673
  %807 = vst [vmem:[%s2 + $0x380] sm:$0xff] %v507
  %808 = vst [vmem:[%s2 + $0x388] sm:$0xff] %v676
  %809 = vst [vmem:[%s2 + $0x390] sm:$0xff] %v509
  %810 = vst [vmem:[%s2 + $0x398] sm:$0xff] %v678
  %811 = vst [vmem:[%s2 + $0x3a0] sm:$0xff] %v512
  %812 = vst [vmem:[%s2 + $0x3a8] sm:$0xff] %v681
  %813 = vst [vmem:[%s2 + $0x3b0] sm:$0xff] %v514
  %814 = vst [vmem:[%s2 + $0x3b8] sm:$0xff] %v683
  %815 = vst [vmem:[%s2 + $0x3c0] sm:$0xff] %v517
  %816 = vst [vmem:[%s2 + $0x3c8] sm:$0xff] %v686
  %817 = vst [vmem:[%s2 + $0x3d0] sm:$0xff] %v519
  %818 = vst [vmem:[%s2 + $0x3d8] sm:$0xff] %v688
  %819 = vst [vmem:[%s2 + $0x3e0] sm:$0xff] %v522
  %820 = vst [vmem:[%s2 + $0x3e8] sm:$0xff] %v691
  %821 = vst [vmem:[%s2 + $0x3f0] sm:$0xff] %v524
  %822 = vst [vmem:[%s2 + $0x3f8] sm:$0xff] %v693
  // Predicated region
  $region10: #{decoder_forward.8} parent=0 // pred_check
    _
  $region11: #{decoder_forward.8} parent=0 // pred_check_branch
    %824 = sbr.rel (0) target = $region13
  $region12: #{decoder_forward.8} parent=0 // pred_region
    _
  $region13: #{decoder_forward.8} parent=0 // pred_fallthru
    _
  // Predicated region
  $region14: #{decoder_forward.8} parent=0 // pred_check
    _
  $region15: #{decoder_forward.8} parent=0 // pred_check_branch
    %826 = sbr.rel (0) target = $region17
  $region16: #{decoder_forward.8} parent=0 // pred_region
    _
  $region17: #{decoder_forward.8} parent=0 // pred_fallthru
    _

// kernel: decoder_forward.9
$region0: #{decoder_forward.9}
  #allocation0 [shape = 'u32[]', space=smem, size = 0x4, offset = 0x4, fixed_abs, tag = 'smem constant byte address 0x4 - core index']
  #allocation1 [shape = 'u32[72,128]{1,0:T(1,128)}', space=vmem, size = 0x9000, scoped, tag = 'internal scratch']
  %s0 = inlined_call_operand.vmem [shape: f32[64,1632], index: 0, kind: input, shape index: {}]
  %s1 = inlined_call_operand.vmem [shape: f32[1632,28], index: 1, kind: input, shape index: {}]
  %s2 = inlined_call_operand.vmem [shape: f32[56,64], index: 2, kind: input, shape index: {}]
  %s3 = inlined_call_operand.vmem [shape: f32[1,28], index: 3, kind: input, shape index: {}]
  %s4 = inlined_call_operand.hbm [shape: f32[56,28], index: 4, kind: output, shape index: {}]
  %s5 = sld [smem:[#allocation0]]
  $region26: #{decoder_forward.9} parent=0
    _
  %s7 = ssub.s32 1, %s5
  %s8 = scalar_select 0, %s7, %s5
  $region1: #{decoder_forward.9} parent=0
    #allocation2 [shape = 'u8[28672]{0}', space=vmem, size = 0x7000, scoped, tag = 'output window, operand 0, single buffered']
    #allocation3 [shape = 's32[1]{0}', space=sflag, size = 0x4, scoped, tag = 'scoped memory for decoder_forward.9']
    %9 = vsyncpa [#allocation3], 0
    // Predicated region
    $region2: #{decoder_forward.9} parent=1 // pred_check
      _
    $region3: #{decoder_forward.9} parent=1 // pred_check_branch
      %11 = sbr.rel (0) target = $region5
    $region4: #{decoder_forward.9} parent=1 // pred_region
      _
    $region5: #{decoder_forward.9} parent=1 // pred_fallthru
      _
    // Predicated region
    $region6: #{decoder_forward.9} parent=1 // pred_check
      _
    $region7: #{decoder_forward.9} parent=1 // pred_check_branch
      %13 = sbr.rel (0) target = $region9
    $region8: #{decoder_forward.9} parent=1 // pred_region
      _
    $region9: #{decoder_forward.9} parent=1 // pred_fallthru
      _
    // Predicated region
    $region10: #{decoder_forward.9} parent=1 // pred_check
      _
    $region11: #{decoder_forward.9} parent=1 // pred_check_branch
      %15 = sbr.rel (0) target = $region13
    $region12: #{decoder_forward.9} parent=1 // pred_region
      _
    $region13: #{decoder_forward.9} parent=1 // pred_fallthru
      _
    // Predicated region
    $region14: #{decoder_forward.9} parent=1 // pred_check
      _
    $region15: #{decoder_forward.9} parent=1 // pred_check_branch
      %17 = sbr.rel (0) target = $region17
    $region16: #{decoder_forward.9} parent=1 // pred_region
      _
    $region17: #{decoder_forward.9} parent=1 // pred_fallthru
      _
    %v18 = vld [vmem:[%s0] sm:$0xff]
    %v19 = vld [vmem:[%s0 + $0x8] sm:$0xff]
    %v20 = vld [vmem:[%s0 + $0x10] sm:$0xff]
    %v21 = vld [vmem:[%s0 + $0x18] sm:$0xff]
    %v22 = vld [vmem:[%s0 + $0x20] sm:$0xff]
    %v23 = vld [vmem:[%s0 + $0x28] sm:$0xff]
    %v24 = vld [vmem:[%s0 + $0x30] sm:$0xff]
    %v25 = vld [vmem:[%s0 + $0x38] sm:$0xff]
    %v26 = vld [vmem:[%s0 + $0x40] sm:$0xff]
    %v27 = vld [vmem:[%s0 + $0x48] sm:$0xff]
    %v28 = vld [vmem:[%s0 + $0x50] sm:$0xff]
    %v29 = vld [vmem:[%s0 + $0x58] sm:$0xff]
    %v30 = vld [vmem:[%s0 + $0x60] sm:$0xff]
    %v31 = vld [vmem:[%s0 + $0x68] sm:$0xff]
    %v32 = vld [vmem:[%s0 + $0x70] sm:$0xff]
    %v33 = vld [vmem:[%s0 + $0x78] sm:$0xff]
    %v34 = vld [vmem:[%s0 + $0x80] sm:$0xff]
    %v35 = vld [vmem:[%s0 + $0x88] sm:$0xff]
    %v36 = vld [vmem:[%s0 + $0x90] sm:$0xff]
    %v37 = vld [vmem:[%s0 + $0x98] sm:$0xff]
    %v38 = vld [vmem:[%s0 + $0xa0] sm:$0xff]
    %v39 = vld [vmem:[%s0 + $0xa8] sm:$0xff]
    %v40 = vld [vmem:[%s0 + $0xb0] sm:$0xff]
    %v41 = vld [vmem:[%s0 + $0xb8] sm:$0xff]
    %v42 = vld [vmem:[%s0 + $0xc0] sm:$0xff]
    %v43 = vld [vmem:[%s0 + $0xc8] sm:$0xff]
    %v44 = vld [vmem:[%s0 + $0xd0] sm:$0xff]
    %v45 = vld [vmem:[%s0 + $0xd8] sm:$0xff]
    %v46 = vld [vmem:[%s0 + $0xe0] sm:$0xff]
    %v47 = vld [vmem:[%s0 + $0xe8] sm:$0xff]
    %v48 = vld [vmem:[%s0 + $0xf0] sm:$0xff]
    %v49 = vld [vmem:[%s0 + $0xf8] sm:$0xff]
    %v50 = vld [vmem:[%s0 + $0x100] sm:$0xff]
    %v51 = vld [vmem:[%s0 + $0x108] sm:$0xff]
    %v52 = vld [vmem:[%s0 + $0x110] sm:$0xff]
    %v53 = vld [vmem:[%s0 + $0x118] sm:$0xff]
    %v54 = vld [vmem:[%s0 + $0x120] sm:$0xff]
    %v55 = vld [vmem:[%s0 + $0x128] sm:$0xff]
    %v56 = vld [vmem:[%s0 + $0x130] sm:$0xff]
    %v57 = vld [vmem:[%s0 + $0x138] sm:$0xff]
    %v58 = vld [vmem:[%s0 + $0x140] sm:$0xff]
    %v59 = vld [vmem:[%s0 + $0x148] sm:$0xff]
    %v60 = vld [vmem:[%s0 + $0x150] sm:$0xff]
    %v61 = vld [vmem:[%s0 + $0x158] sm:$0xff]
    %v62 = vld [vmem:[%s0 + $0x160] sm:$0xff]
    %v63 = vld [vmem:[%s0 + $0x168] sm:$0xff]
    %v64 = vld [vmem:[%s0 + $0x170] sm:$0xff]
    %v65 = vld [vmem:[%s0 + $0x178] sm:$0xff]
    %v66 = vld [vmem:[%s0 + $0x180] sm:$0xff]
    %v67 = vld [vmem:[%s0 + $0x188] sm:$0xff]
    %v68 = vld [vmem:[%s0 + $0x190] sm:$0xff]
    %v69 = vld [vmem:[%s0 + $0x198] sm:$0xff]
    %v70 = vld [vmem:[%s0 + $0x1a0] sm:$0xff]
    %v71 = vld [vmem:[%s0 + $0x1a8] sm:$0xff]
    %v72 = vld [vmem:[%s0 + $0x1b0] sm:$0xff]
    %v73 = vld [vmem:[%s0 + $0x1b8] sm:$0xff]
    %v74 = vld [vmem:[%s0 + $0x1c0] sm:$0xff]
    %v75 = vld [vmem:[%s0 + $0x1c8] sm:$0xff]
    %v76 = vld [vmem:[%s0 + $0x1d0] sm:$0xff]
    %v77 = vld [vmem:[%s0 + $0x1d8] sm:$0xff]
    %v78 = vld [vmem:[%s0 + $0x1e0] sm:$0xff]
    %v79 = vld [vmem:[%s0 + $0x1e8] sm:$0xff]
    %v80 = vld [vmem:[%s0 + $0x1f0] sm:$0xff]
    %v81 = vld [vmem:[%s0 + $0x1f8] sm:$0xff]
    %v82 = vld [vmem:[%s0 + $0x200] sm:$0xff]
    %v83 = vld [vmem:[%s0 + $0x208] sm:$0xff]
    %v84 = vld [vmem:[%s0 + $0x210] sm:$0xff]
    %v85 = vld [vmem:[%s0 + $0x218] sm:$0xff]
    %v86 = vld [vmem:[%s0 + $0x220] sm:$0xff]
    %v87 = vld [vmem:[%s0 + $0x228] sm:$0xff]
    %v88 = vld [vmem:[%s0 + $0x230] sm:$0xff]
    %v89 = vld [vmem:[%s0 + $0x238] sm:$0xff]
    %v90 = vld [vmem:[%s0 + $0x240] sm:$0xff]
    %v91 = vld [vmem:[%s0 + $0x248] sm:$0xff]
    %v92 = vld [vmem:[%s0 + $0x250] sm:$0xff]
    %v93 = vld [vmem:[%s0 + $0x258] sm:$0xff]
    %v94 = vld [vmem:[%s0 + $0x260] sm:$0xff]
    %v95 = vld [vmem:[%s0 + $0x268] sm:$0xff]
    %v96 = vld [vmem:[%s0 + $0x270] sm:$0xff]
    %v97 = vld [vmem:[%s0 + $0x278] sm:$0xff]
    %v98 = vld [vmem:[%s0 + $0x280] sm:$0xff]
    %v99 = vld [vmem:[%s0 + $0x288] sm:$0xff]
    %v100 = vld [vmem:[%s0 + $0x290] sm:$0xff]
    %v101 = vld [vmem:[%s0 + $0x298] sm:$0xff]
    %v102 = vld [vmem:[%s0 + $0x2a0] sm:$0xff]
    %v103 = vld [vmem:[%s0 + $0x2a8] sm:$0xff]
    %v104 = vld [vmem:[%s0 + $0x2b0] sm:$0xff]
    %v105 = vld [vmem:[%s0 + $0x2b8] sm:$0xff]
    %v106 = vld [vmem:[%s0 + $0x2c0] sm:$0xff]
    %v107 = vld [vmem:[%s0 + $0x2c8] sm:$0xff]
    %v108 = vld [vmem:[%s0 + $0x2d0] sm:$0xff]
    %v109 = vld [vmem:[%s0 + $0x2d8] sm:$0xff]
    %v110 = vld [vmem:[%s0 + $0x2e0] sm:$0xff]
    %v111 = vld [vmem:[%s0 + $0x2e8] sm:$0xff]
    %v112 = vld [vmem:[%s0 + $0x2f0] sm:$0xff]
    %v113 = vld [vmem:[%s0 + $0x2f8] sm:$0xff]
    %v114 = vld [vmem:[%s0 + $0x300] sm:$0xff]
    %v115 = vld [vmem:[%s0 + $0x308] sm:$0xff]
    %v116 = vld [vmem:[%s0 + $0x310] sm:$0xff]
    %v117 = vld [vmem:[%s0 + $0x318] sm:$0xff]
    %v118 = vld [vmem:[%s0 + $0x320] sm:$0xff]
    %v119 = vld [vmem:[%s0 + $0x328] sm:$0xff]
    %v120 = vld [vmem:[%s0 + $0x330] sm:$0xff]
    %v121 = vld [vmem:[%s0 + $0x338] sm:$0xff]
    %v122 = vld [vmem:[%s1] sm:$0xff]
    %v123 = vld [vmem:[%s1 + $0x8] sm:$0xff]
    %v124 = vld [vmem:[%s1 + $0x10] sm:$0xff]
    %v125 = vld [vmem:[%s1 + $0x18] sm:$0xff]
    %v126 = vld [vmem:[%s1 + $0x20] sm:$0xff]
    %v127 = vld [vmem:[%s1 + $0x28] sm:$0xff]
    %v128 = vld [vmem:[%s1 + $0x30] sm:$0xff]
    %v129 = vld [vmem:[%s1 + $0x38] sm:$0xff]
    %v130 = vld [vmem:[%s1 + $0x40] sm:$0xff]
    %v131 = vld [vmem:[%s1 + $0x48] sm:$0xff]
    %v132 = vld [vmem:[%s1 + $0x50] sm:$0xff]
    %v133 = vld [vmem:[%s1 + $0x58] sm:$0xff]
    %v134 = vld [vmem:[%s1 + $0x60] sm:$0xff]
    %v135 = vld [vmem:[%s1 + $0x68] sm:$0xff]
    %v136 = vld [vmem:[%s1 + $0x70] sm:$0xff]
    %v137 = vld [vmem:[%s1 + $0x78] sm:$0xff]
    %v138 = vld [vmem:[%s1 + $0x80] sm:$0xff]
    %v139 = vld [vmem:[%s1 + $0x88] sm:$0xff]
    %v140 = vld [vmem:[%s1 + $0x90] sm:$0xff]
    %v141 = vld [vmem:[%s1 + $0x98] sm:$0xff]
    %v142 = vld [vmem:[%s1 + $0xa0] sm:$0xff]
    %v143 = vld [vmem:[%s1 + $0xa8] sm:$0xff]
    %v144 = vld [vmem:[%s1 + $0xb0] sm:$0xff]
    %v145 = vld [vmem:[%s1 + $0xb8] sm:$0xff]
    %v146 = vld [vmem:[%s1 + $0xc0] sm:$0xff]
    %v147 = vld [vmem:[%s1 + $0xc8] sm:$0xff]
    %v148 = vld [vmem:[%s1 + $0xd0] sm:$0xff]
    %v149 = vld [vmem:[%s1 + $0xd8] sm:$0xff]
    %v150 = vld [vmem:[%s1 + $0xe0] sm:$0xff]
    %v151 = vld [vmem:[%s1 + $0xe8] sm:$0xff]
    %v152 = vld [vmem:[%s1 + $0xf0] sm:$0xff]
    %v153 = vld [vmem:[%s1 + $0xf8] sm:$0xff]
    %v154 = vld [vmem:[%s1 + $0x100] sm:$0xff]
    %v155 = vld [vmem:[%s1 + $0x108] sm:$0xff]
    %v156 = vld [vmem:[%s1 + $0x110] sm:$0xff]
    %v157 = vld [vmem:[%s1 + $0x118] sm:$0xff]
    %v158 = vld [vmem:[%s1 + $0x120] sm:$0xff]
    %v159 = vld [vmem:[%s1 + $0x128] sm:$0xff]
    %v160 = vld [vmem:[%s1 + $0x130] sm:$0xff]
    %v161 = vld [vmem:[%s1 + $0x138] sm:$0xff]
    %v162 = vld [vmem:[%s1 + $0x140] sm:$0xff]
    %v163 = vld [vmem:[%s1 + $0x148] sm:$0xff]
    %v164 = vld [vmem:[%s1 + $0x150] sm:$0xff]
    %v165 = vld [vmem:[%s1 + $0x158] sm:$0xff]
    %v166 = vld [vmem:[%s1 + $0x160] sm:$0xff]
    %v167 = vld [vmem:[%s1 + $0x168] sm:$0xff]
    %v168 = vld [vmem:[%s1 + $0x170] sm:$0xff]
    %v169 = vld [vmem:[%s1 + $0x178] sm:$0xff]
    %v170 = vld [vmem:[%s1 + $0x180] sm:$0xff]
    %v171 = vld [vmem:[%s1 + $0x188] sm:$0xff]
    %v172 = vld [vmem:[%s1 + $0x190] sm:$0xff]
    %v173 = vld [vmem:[%s1 + $0x198] sm:$0xff]
    %v174 = vld [vmem:[%s1 + $0x1a0] sm:$0xff]
    %v175 = vld [vmem:[%s1 + $0x1a8] sm:$0xff]
    %v176 = vld [vmem:[%s1 + $0x1b0] sm:$0xff]
    %v177 = vld [vmem:[%s1 + $0x1b8] sm:$0xff]
    %v178 = vld [vmem:[%s1 + $0x1c0] sm:$0xff]
    %v179 = vld [vmem:[%s1 + $0x1c8] sm:$0xff]
    %v180 = vld [vmem:[%s1 + $0x1d0] sm:$0xff]
    %v181 = vld [vmem:[%s1 + $0x1d8] sm:$0xff]
    %v182 = vld [vmem:[%s1 + $0x1e0] sm:$0xff]
    %v183 = vld [vmem:[%s1 + $0x1e8] sm:$0xff]
    %v184 = vld [vmem:[%s1 + $0x1f0] sm:$0xff]
    %v185 = vld [vmem:[%s1 + $0x1f8] sm:$0xff]
    %v186 = vld [vmem:[%s1 + $0x200] sm:$0xff]
    %v187 = vld [vmem:[%s1 + $0x208] sm:$0xff]
    %v188 = vld [vmem:[%s1 + $0x210] sm:$0xff]
    %v189 = vld [vmem:[%s1 + $0x218] sm:$0xff]
    %v190 = vld [vmem:[%s1 + $0x220] sm:$0xff]
    %v191 = vld [vmem:[%s1 + $0x228] sm:$0xff]
    %v192 = vld [vmem:[%s1 + $0x230] sm:$0xff]
    %v193 = vld [vmem:[%s1 + $0x238] sm:$0xff]
    %v194 = vld [vmem:[%s1 + $0x240] sm:$0xff]
    %v195 = vld [vmem:[%s1 + $0x248] sm:$0xff]
    %v196 = vld [vmem:[%s1 + $0x250] sm:$0xff]
    %v197 = vld [vmem:[%s1 + $0x258] sm:$0xff]
    %v198 = vld [vmem:[%s1 + $0x260] sm:$0xff]
    %v199 = vld [vmem:[%s1 + $0x268] sm:$0xff]
    %v200 = vld [vmem:[%s1 + $0x270] sm:$0xff]
    %v201 = vld [vmem:[%s1 + $0x278] sm:$0xff]
    %v202 = vld [vmem:[%s1 + $0x280] sm:$0xff]
    %v203 = vld [vmem:[%s1 + $0x288] sm:$0xff]
    %v204 = vld [vmem:[%s1 + $0x290] sm:$0xff]
    %v205 = vld [vmem:[%s1 + $0x298] sm:$0xff]
    %v206 = vld [vmem:[%s1 + $0x2a0] sm:$0xff]
    %v207 = vld [vmem:[%s1 + $0x2a8] sm:$0xff]
    %v208 = vld [vmem:[%s1 + $0x2b0] sm:$0xff]
    %v209 = vld [vmem:[%s1 + $0x2b8] sm:$0xff]
    %v210 = vld [vmem:[%s1 + $0x2c0] sm:$0xff]
    %v211 = vld [vmem:[%s1 + $0x2c8] sm:$0xff]
    %v212 = vld [vmem:[%s1 + $0x2d0] sm:$0xff]
    %v213 = vld [vmem:[%s1 + $0x2d8] sm:$0xff]
    %v214 = vld [vmem:[%s1 + $0x2e0] sm:$0xff]
    %v215 = vld [vmem:[%s1 + $0x2e8] sm:$0xff]
    %v216 = vld [vmem:[%s1 + $0x2f0] sm:$0xff]
    %v217 = vld [vmem:[%s1 + $0x2f8] sm:$0xff]
    %v218 = vld [vmem:[%s1 + $0x300] sm:$0xff]
    %v219 = vld [vmem:[%s1 + $0x308] sm:$0xff]
    %v220 = vld [vmem:[%s1 + $0x310] sm:$0xff]
    %v221 = vld [vmem:[%s1 + $0x318] sm:$0xff]
    %v222 = vld [vmem:[%s1 + $0x320] sm:$0xff]
    %v223 = vld [vmem:[%s1 + $0x328] sm:$0xff]
    %v224 = vld [vmem:[%s1 + $0x330] sm:$0xff]
    %v225 = vld [vmem:[%s1 + $0x338] sm:$0xff]
    %v226 = vld [vmem:[%s1 + $0x340] sm:$0xff]
    %v227 = vld [vmem:[%s1 + $0x348] sm:$0xff]
    %v228 = vld [vmem:[%s1 + $0x350] sm:$0xff]
    %v229 = vld [vmem:[%s1 + $0x358] sm:$0xff]
    %v230 = vld [vmem:[%s1 + $0x360] sm:$0xff]
    %v231 = vld [vmem:[%s1 + $0x368] sm:$0xff]
    %v232 = vld [vmem:[%s1 + $0x370] sm:$0xff]
    %v233 = vld [vmem:[%s1 + $0x378] sm:$0xff]
    %v234 = vld [vmem:[%s1 + $0x380] sm:$0xff]
    %v235 = vld [vmem:[%s1 + $0x388] sm:$0xff]
    %v236 = vld [vmem:[%s1 + $0x390] sm:$0xff]
    %v237 = vld [vmem:[%s1 + $0x398] sm:$0xff]
    %v238 = vld [vmem:[%s1 + $0x3a0] sm:$0xff]
    %v239 = vld [vmem:[%s1 + $0x3a8] sm:$0xff]
    %v240 = vld [vmem:[%s1 + $0x3b0] sm:$0xff]
    %v241 = vld [vmem:[%s1 + $0x3b8] sm:$0xff]
    %v242 = vld [vmem:[%s1 + $0x3c0] sm:$0xff]
    %v243 = vld [vmem:[%s1 + $0x3c8] sm:$0xff]
    %v244 = vld [vmem:[%s1 + $0x3d0] sm:$0xff]
    %v245 = vld [vmem:[%s1 + $0x3d8] sm:$0xff]
    %v246 = vld [vmem:[%s1 + $0x3e0] sm:$0xff]
    %v247 = vld [vmem:[%s1 + $0x3e8] sm:$0xff]
    %v248 = vld [vmem:[%s1 + $0x3f0] sm:$0xff]
    %v249 = vld [vmem:[%s1 + $0x3f8] sm:$0xff]
    %v250 = vld [vmem:[%s1 + $0x400] sm:$0xff]
    %v251 = vld [vmem:[%s1 + $0x408] sm:$0xff]
    %v252 = vld [vmem:[%s1 + $0x410] sm:$0xff]
    %v253 = vld [vmem:[%s1 + $0x418] sm:$0xff]
    %v254 = vld [vmem:[%s1 + $0x420] sm:$0xff]
    %v255 = vld [vmem:[%s1 + $0x428] sm:$0xff]
    %v256 = vld [vmem:[%s1 + $0x430] sm:$0xff]
    %v257 = vld [vmem:[%s1 + $0x438] sm:$0xff]
    %v258 = vld [vmem:[%s1 + $0x440] sm:$0xff]
    %v259 = vld [vmem:[%s1 + $0x448] sm:$0xff]
    %v260 = vld [vmem:[%s1 + $0x450] sm:$0xff]
    %v261 = vld [vmem:[%s1 + $0x458] sm:$0xff]
    %v262 = vld [vmem:[%s1 + $0x460] sm:$0xff]
    %v263 = vld [vmem:[%s1 + $0x468] sm:$0xff]
    %v264 = vld [vmem:[%s1 + $0x470] sm:$0xff]
    %v265 = vld [vmem:[%s1 + $0x478] sm:$0xff]
    %v266 = vld [vmem:[%s1 + $0x480] sm:$0xff]
    %v267 = vld [vmem:[%s1 + $0x488] sm:$0xff]
    %v268 = vld [vmem:[%s1 + $0x490] sm:$0xff]
    %v269 = vld [vmem:[%s1 + $0x498] sm:$0xff]
    %v270 = vld [vmem:[%s1 + $0x4a0] sm:$0xff]
    %v271 = vld [vmem:[%s1 + $0x4a8] sm:$0xff]
    %v272 = vld [vmem:[%s1 + $0x4b0] sm:$0xff]
    %v273 = vld [vmem:[%s1 + $0x4b8] sm:$0xff]
    %v274 = vld [vmem:[%s1 + $0x4c0] sm:$0xff]
    %v275 = vld [vmem:[%s1 + $0x4c8] sm:$0xff]
    %v276 = vld [vmem:[%s1 + $0x4d0] sm:$0xff]
    %v277 = vld [vmem:[%s1 + $0x4d8] sm:$0xff]
    %v278 = vld [vmem:[%s1 + $0x4e0] sm:$0xff]
    %v279 = vld [vmem:[%s1 + $0x4e8] sm:$0xff]
    %v280 = vld [vmem:[%s1 + $0x4f0] sm:$0xff]
    %v281 = vld [vmem:[%s1 + $0x4f8] sm:$0xff]
    %v282 = vld [vmem:[%s1 + $0x500] sm:$0xff]
    %v283 = vld [vmem:[%s1 + $0x508] sm:$0xff]
    %v284 = vld [vmem:[%s1 + $0x510] sm:$0xff]
    %v285 = vld [vmem:[%s1 + $0x518] sm:$0xff]
    %v286 = vld [vmem:[%s1 + $0x520] sm:$0xff]
    %v287 = vld [vmem:[%s1 + $0x528] sm:$0xff]
    %v288 = vld [vmem:[%s1 + $0x530] sm:$0xff]
    %v289 = vld [vmem:[%s1 + $0x538] sm:$0xff]
    %v290 = vld [vmem:[%s1 + $0x540] sm:$0xff]
    %v291 = vld [vmem:[%s1 + $0x548] sm:$0xff]
    %v292 = vld [vmem:[%s1 + $0x550] sm:$0xff]
    %v293 = vld [vmem:[%s1 + $0x558] sm:$0xff]
    %v294 = vld [vmem:[%s1 + $0x560] sm:$0xff]
    %v295 = vld [vmem:[%s1 + $0x568] sm:$0xff]
    %v296 = vld [vmem:[%s1 + $0x570] sm:$0xff]
    %v297 = vld [vmem:[%s1 + $0x578] sm:$0xff]
    %v298 = vld [vmem:[%s1 + $0x580] sm:$0xff]
    %v299 = vld [vmem:[%s1 + $0x588] sm:$0xff]
    %v300 = vld [vmem:[%s1 + $0x590] sm:$0xff]
    %v301 = vld [vmem:[%s1 + $0x598] sm:$0xff]
    %v302 = vld [vmem:[%s1 + $0x5a0] sm:$0xff]
    %v303 = vld [vmem:[%s1 + $0x5a8] sm:$0xff]
    %v304 = vld [vmem:[%s1 + $0x5b0] sm:$0xff]
    %v305 = vld [vmem:[%s1 + $0x5b8] sm:$0xff]
    %v306 = vld [vmem:[%s1 + $0x5c0] sm:$0xff]
    %v307 = vld [vmem:[%s1 + $0x5c8] sm:$0xff]
    %v308 = vld [vmem:[%s1 + $0x5d0] sm:$0xff]
    %v309 = vld [vmem:[%s1 + $0x5d8] sm:$0xff]
    %v310 = vld [vmem:[%s1 + $0x5e0] sm:$0xff]
    %v311 = vld [vmem:[%s1 + $0x5e8] sm:$0xff]
    %v312 = vld [vmem:[%s1 + $0x5f0] sm:$0xff]
    %v313 = vld [vmem:[%s1 + $0x5f8] sm:$0xff]
    %v314 = vld [vmem:[%s1 + $0x600] sm:$0xff]
    %v315 = vld [vmem:[%s1 + $0x608] sm:$0xff]
    %v316 = vld [vmem:[%s1 + $0x610] sm:$0xff]
    %v317 = vld [vmem:[%s1 + $0x618] sm:$0xff]
    %v318 = vld [vmem:[%s1 + $0x620] sm:$0xff]
    %v319 = vld [vmem:[%s1 + $0x628] sm:$0xff]
    %v320 = vld [vmem:[%s1 + $0x630] sm:$0xff]
    %v321 = vld [vmem:[%s1 + $0x638] sm:$0xff]
    %v322 = vld [vmem:[%s1 + $0x640] sm:$0xff]
    %v323 = vld [vmem:[%s1 + $0x648] sm:$0xff]
    %v324 = vld [vmem:[%s1 + $0x650] sm:$0xff]
    %v325 = vld [vmem:[%s1 + $0x658] sm:$0xff]
    %vm326 = vcmask 785408
    %v328 = vsel %vm326, %v30, 0
    %v331 = vsel %vm326, %v43, 0
    %v334 = vsel %vm326, %v56, 0
    %v337 = vsel %vm326, %v69, 0
    %v340 = vsel %vm326, %v82, 0
    %v343 = vsel %vm326, %v95, 0
    %v346 = vsel %vm326, %v108, 0
    %v349 = vsel %vm326, %v121, 0
    %351 = vmatpush.msra.mxu0 %v137
    %352 = vmatpush.msra.mxu0 %v136
    %353 = vmatpush.msra.mxu0 %v135
    %354 = vmatpush.msra.mxu0 %v134
    %355 = vmatpush.msra.mxu0 %v133
    %356 = vmatpush.msra.mxu0 %v132
    %357 = vmatpush.msra.mxu0 %v131
    %358 = vmatpush.msra.mxu0 %v130
    %359 = vmatpush.msra.mxu0 %v129
    %360 = vmatpush.msra.mxu0 %v128
    %361 = vmatpush.msra.mxu0 %v127
    %362 = vmatpush.msra.mxu0 %v126
    %363 = vmatpush.msra.mxu0 %v125
    %364 = vmatpush.msra.mxu0 %v124
    %365 = vmatpush.msra.mxu0 %v123
    %366 = vmatpush.msra.mxu0 %v122
    %367 = vmatmul.f32.gmra.mxu0 %v18
    %v368 = vpop.f32.mrf.mxu0
    %v369 = vadd.f32 0.0, %v368
    %370 = vmatmul.f32.gmra.mxu0 %v31
    %v371 = vpop.f32.mrf.mxu0
    %v372 = vadd.f32 0.0, %v371
    %373 = vmatmul.f32.gmra.mxu0 %v44
    %v374 = vpop.f32.mrf.mxu0
    %v375 = vadd.f32 0.0, %v374
    %376 = vmatmul.f32.gmra.mxu0 %v57
    %v377 = vpop.f32.mrf.mxu0
    %v378 = vadd.f32 0.0, %v377
    %379 = vmatmul.f32.gmra.mxu0 %v70
    %v380 = vpop.f32.mrf.mxu0
    %v381 = vadd.f32 0.0, %v380
    %382 = vmatmul.f32.gmra.mxu0 %v83
    %v383 = vpop.f32.mrf.mxu0
    %v384 = vadd.f32 0.0, %v383
    %385 = vmatmul.f32.gmra.mxu0 %v96
    %v386 = vpop.f32.mrf.mxu0
    %v387 = vadd.f32 0.0, %v386
    %388 = vmatmul.f32.gmra.mxu0 %v109
    %v389 = vpop.f32.mrf.mxu0
    %v390 = vadd.f32 0.0, %v389
    %391 = vdwg.mxu0
    %392 = vmatpush.msra.mxu0 %v153
    %393 = vmatpush.msra.mxu0 %v152
    %394 = vmatpush.msra.mxu0 %v151
    %395 = vmatpush.msra.mxu0 %v150
    %396 = vmatpush.msra.mxu0 %v149
    %397 = vmatpush.msra.mxu0 %v148
    %398 = vmatpush.msra.mxu0 %v147
    %399 = vmatpush.msra.mxu0 %v146
    %400 = vmatpush.msra.mxu0 %v145
    %401 = vmatpush.msra.mxu0 %v144
    %402 = vmatpush.msra.mxu0 %v143
    %403 = vmatpush.msra.mxu0 %v142
    %404 = vmatpush.msra.mxu0 %v141
    %405 = vmatpush.msra.mxu0 %v140
    %406 = vmatpush.msra.mxu0 %v139
    %407 = vmatpush.msra.mxu0 %v138
    %408 = vmatmul.f32.gmra.mxu0 %v19
    %v409 = vpop.f32.mrf.mxu0
    %v410 = vadd.f32 %v369, %v409
    %411 = vmatmul.f32.gmra.mxu0 %v32
    %v412 = vpop.f32.mrf.mxu0
    %v413 = vadd.f32 %v372, %v412
    %414 = vmatmul.f32.gmra.mxu0 %v45
    %v415 = vpop.f32.mrf.mxu0
    %v416 = vadd.f32 %v375, %v415
    %417 = vmatmul.f32.gmra.mxu0 %v58
    %v418 = vpop.f32.mrf.mxu0
    %v419 = vadd.f32 %v378, %v418
    %420 = vmatmul.f32.gmra.mxu0 %v71
    %v421 = vpop.f32.mrf.mxu0
    %v422 = vadd.f32 %v381, %v421
    %423 = vmatmul.f32.gmra.mxu0 %v84
    %v424 = vpop.f32.mrf.mxu0
    %v425 = vadd.f32 %v384, %v424
    %426 = vmatmul.f32.gmra.mxu0 %v97
    %v427 = vpop.f32.mrf.mxu0
    %v428 = vadd.f32 %v387, %v427
    %429 = vmatmul.f32.gmra.mxu0 %v110
    %v430 = vpop.f32.mrf.mxu0
    %v431 = vadd.f32 %v390, %v430
    %432 = vdwg.mxu0
    %433 = vmatpush.msra.mxu0 %v169
    %434 = vmatpush.msra.mxu0 %v168
    %435 = vmatpush.msra.mxu0 %v167
    %436 = vmatpush.msra.mxu0 %v166
    %437 = vmatpush.msra.mxu0 %v165
    %438 = vmatpush.msra.mxu0 %v164
    %439 = vmatpush.msra.mxu0 %v163
    %440 = vmatpush.msra.mxu0 %v162
    %441 = vmatpush.msra.mxu0 %v161
    %442 = vmatpush.msra.mxu0 %v160
    %443 = vmatpush.msra.mxu0 %v159
    %444 = vmatpush.msra.mxu0 %v158
    %445 = vmatpush.msra.mxu0 %v157
    %446 = vmatpush.msra.mxu0 %v156
    %447 = vmatpush.msra.mxu0 %v155
    %448 = vmatpush.msra.mxu0 %v154
    %449 = vmatmul.f32.gmra.mxu0 %v20
    %v450 = vpop.f32.mrf.mxu0
    %v451 = vadd.f32 %v410, %v450
    %452 = vmatmul.f32.gmra.mxu0 %v33
    %v453 = vpop.f32.mrf.mxu0
    %v454 = vadd.f32 %v413, %v453
    %455 = vmatmul.f32.gmra.mxu0 %v46
    %v456 = vpop.f32.mrf.mxu0
    %v457 = vadd.f32 %v416, %v456
    %458 = vmatmul.f32.gmra.mxu0 %v59
    %v459 = vpop.f32.mrf.mxu0
    %v460 = vadd.f32 %v419, %v459
    %461 = vmatmul.f32.gmra.mxu0 %v72
    %v462 = vpop.f32.mrf.mxu0
    %v463 = vadd.f32 %v422, %v462
    %464 = vmatmul.f32.gmra.mxu0 %v85
    %v465 = vpop.f32.mrf.mxu0
    %v466 = vadd.f32 %v425, %v465
    %467 = vmatmul.f32.gmra.mxu0 %v98
    %v468 = vpop.f32.mrf.mxu0
    %v469 = vadd.f32 %v428, %v468
    %470 = vmatmul.f32.gmra.mxu0 %v111
    %v471 = vpop.f32.mrf.mxu0
    %v472 = vadd.f32 %v431, %v471
    %473 = vdwg.mxu0
    %474 = vmatpush.msra.mxu0 %v185
    %475 = vmatpush.msra.mxu0 %v184
    %476 = vmatpush.msra.mxu0 %v183
    %477 = vmatpush.msra.mxu0 %v182
    %478 = vmatpush.msra.mxu0 %v181
    %479 = vmatpush.msra.mxu0 %v180
    %480 = vmatpush.msra.mxu0 %v179
    %481 = vmatpush.msra.mxu0 %v178
    %482 = vmatpush.msra.mxu0 %v177
    %483 = vmatpush.msra.mxu0 %v176
    %484 = vmatpush.msra.mxu0 %v175
    %485 = vmatpush.msra.mxu0 %v174
    %486 = vmatpush.msra.mxu0 %v173
    %487 = vmatpush.msra.mxu0 %v172
    %488 = vmatpush.msra.mxu0 %v171
    %489 = vmatpush.msra.mxu0 %v170
    %490 = vmatmul.f32.gmra.mxu0 %v21
    %v491 = vpop.f32.mrf.mxu0
    %v492 = vadd.f32 %v451, %v491
    %493 = vmatmul.f32.gmra.mxu0 %v34
    %v494 = vpop.f32.mrf.mxu0
    %v495 = vadd.f32 %v454, %v494
    %496 = vmatmul.f32.gmra.mxu0 %v47
    %v497 = vpop.f32.mrf.mxu0
    %v498 = vadd.f32 %v457, %v497
    %499 = vmatmul.f32.gmra.mxu0 %v60
    %v500 = vpop.f32.mrf.mxu0
    %v501 = vadd.f32 %v460, %v500
    %502 = vmatmul.f32.gmra.mxu0 %v73
    %v503 = vpop.f32.mrf.mxu0
    %v504 = vadd.f32 %v463, %v503
    %505 = vmatmul.f32.gmra.mxu0 %v86
    %v506 = vpop.f32.mrf.mxu0
    %v507 = vadd.f32 %v466, %v506
    %508 = vmatmul.f32.gmra.mxu0 %v99
    %v509 = vpop.f32.mrf.mxu0
    %v510 = vadd.f32 %v469, %v509
    %511 = vmatmul.f32.gmra.mxu0 %v112
    %v512 = vpop.f32.mrf.mxu0
    %v513 = vadd.f32 %v472, %v512
    %514 = vdwg.mxu0
    %515 = vmatpush.msra.mxu0 %v201
    %516 = vmatpush.msra.mxu0 %v200
    %517 = vmatpush.msra.mxu0 %v199
    %518 = vmatpush.msra.mxu0 %v198
    %519 = vmatpush.msra.mxu0 %v197
    %520 = vmatpush.msra.mxu0 %v196
    %521 = vmatpush.msra.mxu0 %v195
    %522 = vmatpush.msra.mxu0 %v194
    %523 = vmatpush.msra.mxu0 %v193
    %524 = vmatpush.msra.mxu0 %v192
    %525 = vmatpush.msra.mxu0 %v191
    %526 = vmatpush.msra.mxu0 %v190
    %527 = vmatpush.msra.mxu0 %v189
    %528 = vmatpush.msra.mxu0 %v188
    %529 = vmatpush.msra.mxu0 %v187
    %530 = vmatpush.msra.mxu0 %v186
    %531 = vmatmul.f32.gmra.mxu0 %v22
    %v532 = vpop.f32.mrf.mxu0
    %v533 = vadd.f32 %v492, %v532
    %534 = vmatmul.f32.gmra.mxu0 %v35
    %v535 = vpop.f32.mrf.mxu0
    %v536 = vadd.f32 %v495, %v535
    %537 = vmatmul.f32.gmra.mxu0 %v48
    %v538 = vpop.f32.mrf.mxu0
    %v539 = vadd.f32 %v498, %v538
    %540 = vmatmul.f32.gmra.mxu0 %v61
    %v541 = vpop.f32.mrf.mxu0
    %v542 = vadd.f32 %v501, %v541
    %543 = vmatmul.f32.gmra.mxu0 %v74
    %v544 = vpop.f32.mrf.mxu0
    %v545 = vadd.f32 %v504, %v544
    %546 = vmatmul.f32.gmra.mxu0 %v87
    %v547 = vpop.f32.mrf.mxu0
    %v548 = vadd.f32 %v507, %v547
    %549 = vmatmul.f32.gmra.mxu0 %v100
    %v550 = vpop.f32.mrf.mxu0
    %v551 = vadd.f32 %v510, %v550
    %552 = vmatmul.f32.gmra.mxu0 %v113
    %v553 = vpop.f32.mrf.mxu0
    %v554 = vadd.f32 %v513, %v553
    %555 = vdwg.mxu0
    %556 = vmatpush.msra.mxu0 %v217
    %557 = vmatpush.msra.mxu0 %v216
    %558 = vmatpush.msra.mxu0 %v215
    %559 = vmatpush.msra.mxu0 %v214
    %560 = vmatpush.msra.mxu0 %v213
    %561 = vmatpush.msra.mxu0 %v212
    %562 = vmatpush.msra.mxu0 %v211
    %563 = vmatpush.msra.mxu0 %v210
    %564 = vmatpush.msra.mxu0 %v209
    %565 = vmatpush.msra.mxu0 %v208
    %566 = vmatpush.msra.mxu0 %v207
    %567 = vmatpush.msra.mxu0 %v206
    %568 = vmatpush.msra.mxu0 %v205
    %569 = vmatpush.msra.mxu0 %v204
    %570 = vmatpush.msra.mxu0 %v203
    %571 = vmatpush.msra.mxu0 %v202
    %572 = vmatmul.f32.gmra.mxu0 %v23
    %v573 = vpop.f32.mrf.mxu0
    %v574 = vadd.f32 %v533, %v573
    %575 = vmatmul.f32.gmra.mxu0 %v36
    %v576 = vpop.f32.mrf.mxu0
    %v577 = vadd.f32 %v536, %v576
    %578 = vmatmul.f32.gmra.mxu0 %v49
    %v579 = vpop.f32.mrf.mxu0
    %v580 = vadd.f32 %v539, %v579
    %581 = vmatmul.f32.gmra.mxu0 %v62
    %v582 = vpop.f32.mrf.mxu0
    %v583 = vadd.f32 %v542, %v582
    %584 = vmatmul.f32.gmra.mxu0 %v75
    %v585 = vpop.f32.mrf.mxu0
    %v586 = vadd.f32 %v545, %v585
    %587 = vmatmul.f32.gmra.mxu0 %v88
    %v588 = vpop.f32.mrf.mxu0
    %v589 = vadd.f32 %v548, %v588
    %590 = vmatmul.f32.gmra.mxu0 %v101
    %v591 = vpop.f32.mrf.mxu0
    %v592 = vadd.f32 %v551, %v591
    %593 = vmatmul.f32.gmra.mxu0 %v114
    %v594 = vpop.f32.mrf.mxu0
    %v595 = vadd.f32 %v554, %v594
    %596 = vdwg.mxu0
    %597 = vmatpush.msra.mxu0 %v233
    %598 = vmatpush.msra.mxu0 %v232
    %599 = vmatpush.msra.mxu0 %v231
    %600 = vmatpush.msra.mxu0 %v230
    %601 = vmatpush.msra.mxu0 %v229
    %602 = vmatpush.msra.mxu0 %v228
    %603 = vmatpush.msra.mxu0 %v227
    %604 = vmatpush.msra.mxu0 %v226
    %605 = vmatpush.msra.mxu0 %v225
    %606 = vmatpush.msra.mxu0 %v224
    %607 = vmatpush.msra.mxu0 %v223
    %608 = vmatpush.msra.mxu0 %v222
    %609 = vmatpush.msra.mxu0 %v221
    %610 = vmatpush.msra.mxu0 %v220
    %611 = vmatpush.msra.mxu0 %v219
    %612 = vmatpush.msra.mxu0 %v218
    %613 = vmatmul.f32.gmra.mxu0 %v24
    %v614 = vpop.f32.mrf.mxu0
    %v615 = vadd.f32 %v574, %v614
    %616 = vmatmul.f32.gmra.mxu0 %v37
    %v617 = vpop.f32.mrf.mxu0
    %v618 = vadd.f32 %v577, %v617
    %619 = vmatmul.f32.gmra.mxu0 %v50
    %v620 = vpop.f32.mrf.mxu0
    %v621 = vadd.f32 %v580, %v620
    %622 = vmatmul.f32.gmra.mxu0 %v63
    %v623 = vpop.f32.mrf.mxu0
    %v624 = vadd.f32 %v583, %v623
    %625 = vmatmul.f32.gmra.mxu0 %v76
    %v626 = vpop.f32.mrf.mxu0
    %v627 = vadd.f32 %v586, %v626
    %628 = vmatmul.f32.gmra.mxu0 %v89
    %v629 = vpop.f32.mrf.mxu0
    %v630 = vadd.f32 %v589, %v629
    %631 = vmatmul.f32.gmra.mxu0 %v102
    %v632 = vpop.f32.mrf.mxu0
    %v633 = vadd.f32 %v592, %v632
    %634 = vmatmul.f32.gmra.mxu0 %v115
    %v635 = vpop.f32.mrf.mxu0
    %v636 = vadd.f32 %v595, %v635
    %637 = vdwg.mxu0
    %638 = vmatpush.msra.mxu0 %v249
    %639 = vmatpush.msra.mxu0 %v248
    %640 = vmatpush.msra.mxu0 %v247
    %641 = vmatpush.msra.mxu0 %v246
    %642 = vmatpush.msra.mxu0 %v245
    %643 = vmatpush.msra.mxu0 %v244
    %644 = vmatpush.msra.mxu0 %v243
    %645 = vmatpush.msra.mxu0 %v242
    %646 = vmatpush.msra.mxu0 %v241
    %647 = vmatpush.msra.mxu0 %v240
    %648 = vmatpush.msra.mxu0 %v239
    %649 = vmatpush.msra.mxu0 %v238
    %650 = vmatpush.msra.mxu0 %v237
    %651 = vmatpush.msra.mxu0 %v236
    %652 = vmatpush.msra.mxu0 %v235
    %653 = vmatpush.msra.mxu0 %v234
    %654 = vmatmul.f32.gmra.mxu0 %v25
    %v655 = vpop.f32.mrf.mxu0
    %v656 = vadd.f32 %v615, %v655
    %657 = vmatmul.f32.gmra.mxu0 %v38
    %v658 = vpop.f32.mrf.mxu0
    %v659 = vadd.f32 %v618, %v658
    %660 = vmatmul.f32.gmra.mxu0 %v51
    %v661 = vpop.f32.mrf.mxu0
    %v662 = vadd.f32 %v621, %v661
    %663 = vmatmul.f32.gmra.mxu0 %v64
    %v664 = vpop.f32.mrf.mxu0
    %v665 = vadd.f32 %v624, %v664
    %666 = vmatmul.f32.gmra.mxu0 %v77
    %v667 = vpop.f32.mrf.mxu0
    %v668 = vadd.f32 %v627, %v667
    %669 = vmatmul.f32.gmra.mxu0 %v90
    %v670 = vpop.f32.mrf.mxu0
    %v671 = vadd.f32 %v630, %v670
    %672 = vmatmul.f32.gmra.mxu0 %v103
    %v673 = vpop.f32.mrf.mxu0
    %v674 = vadd.f32 %v633, %v673
    %675 = vmatmul.f32.gmra.mxu0 %v116
    %v676 = vpop.f32.mrf.mxu0
    %v677 = vadd.f32 %v636, %v676
    %678 = vdwg.mxu0
    %679 = vmatpush.msra.mxu0 %v265
    %680 = vmatpush.msra.mxu0 %v264
    %681 = vmatpush.msra.mxu0 %v263
    %682 = vmatpush.msra.mxu0 %v262
    %683 = vmatpush.msra.mxu0 %v261
    %684 = vmatpush.msra.mxu0 %v260
    %685 = vmatpush.msra.mxu0 %v259
    %686 = vmatpush.msra.mxu0 %v258
    %687 = vmatpush.msra.mxu0 %v257
    %688 = vmatpush.msra.mxu0 %v256
    %689 = vmatpush.msra.mxu0 %v255
    %690 = vmatpush.msra.mxu0 %v254
    %691 = vmatpush.msra.mxu0 %v253
    %692 = vmatpush.msra.mxu0 %v252
    %693 = vmatpush.msra.mxu0 %v251
    %694 = vmatpush.msra.mxu0 %v250
    %695 = vmatmul.f32.gmra.mxu0 %v26
    %v696 = vpop.f32.mrf.mxu0
    %v697 = vadd.f32 %v656, %v696
    %698 = vmatmul.f32.gmra.mxu0 %v39
    %v699 = vpop.f32.mrf.mxu0
    %v700 = vadd.f32 %v659, %v699
    %701 = vmatmul.f32.gmra.mxu0 %v52
    %v702 = vpop.f32.mrf.mxu0
    %v703 = vadd.f32 %v662, %v702
    %704 = vmatmul.f32.gmra.mxu0 %v65
    %v705 = vpop.f32.mrf.mxu0
    %v706 = vadd.f32 %v665, %v705
    %707 = vmatmul.f32.gmra.mxu0 %v78
    %v708 = vpop.f32.mrf.mxu0
    %v709 = vadd.f32 %v668, %v708
    %710 = vmatmul.f32.gmra.mxu0 %v91
    %v711 = vpop.f32.mrf.mxu0
    %v712 = vadd.f32 %v671, %v711
    %713 = vmatmul.f32.gmra.mxu0 %v104
    %v714 = vpop.f32.mrf.mxu0
    %v715 = vadd.f32 %v674, %v714
    %716 = vmatmul.f32.gmra.mxu0 %v117
    %v717 = vpop.f32.mrf.mxu0
    %v718 = vadd.f32 %v677, %v717
    %719 = vdwg.mxu0
    %720 = vmatpush.msra.mxu0 %v281
    %721 = vmatpush.msra.mxu0 %v280
    %722 = vmatpush.msra.mxu0 %v279
    %723 = vmatpush.msra.mxu0 %v278
    %724 = vmatpush.msra.mxu0 %v277
    %725 = vmatpush.msra.mxu0 %v276
    %726 = vmatpush.msra.mxu0 %v275
    %727 = vmatpush.msra.mxu0 %v274
    %728 = vmatpush.msra.mxu0 %v273
    %729 = vmatpush.msra.mxu0 %v272
    %730 = vmatpush.msra.mxu0 %v271
    %731 = vmatpush.msra.mxu0 %v270
    %732 = vmatpush.msra.mxu0 %v269
    %733 = vmatpush.msra.mxu0 %v268
    %734 = vmatpush.msra.mxu0 %v267
    %735 = vmatpush.msra.mxu0 %v266
    %736 = vmatmul.f32.gmra.mxu0 %v27
    %v737 = vpop.f32.mrf.mxu0
    %v738 = vadd.f32 %v697, %v737
    %739 = vmatmul.f32.gmra.mxu0 %v40
    %v740 = vpop.f32.mrf.mxu0
    %v741 = vadd.f32 %v700, %v740
    %742 = vmatmul.f32.gmra.mxu0 %v53
    %v743 = vpop.f32.mrf.mxu0
    %v744 = vadd.f32 %v703, %v743
    %745 = vmatmul.f32.gmra.mxu0 %v66
    %v746 = vpop.f32.mrf.mxu0
    %v747 = vadd.f32 %v706, %v746
    %748 = vmatmul.f32.gmra.mxu0 %v79
    %v749 = vpop.f32.mrf.mxu0
    %v750 = vadd.f32 %v709, %v749
    %751 = vmatmul.f32.gmra.mxu0 %v92
    %v752 = vpop.f32.mrf.mxu0
    %v753 = vadd.f32 %v712, %v752
    %754 = vmatmul.f32.gmra.mxu0 %v105
    %v755 = vpop.f32.mrf.mxu0
    %v756 = vadd.f32 %v715, %v755
    %757 = vmatmul.f32.gmra.mxu0 %v118
    %v758 = vpop.f32.mrf.mxu0
    %v759 = vadd.f32 %v718, %v758
    %760 = vdwg.mxu0
    %761 = vmatpush.msra.mxu0 %v297
    %762 = vmatpush.msra.mxu0 %v296
    %763 = vmatpush.msra.mxu0 %v295
    %764 = vmatpush.msra.mxu0 %v294
    %765 = vmatpush.msra.mxu0 %v293
    %766 = vmatpush.msra.mxu0 %v292
    %767 = vmatpush.msra.mxu0 %v291
    %768 = vmatpush.msra.mxu0 %v290
    %769 = vmatpush.msra.mxu0 %v289
    %770 = vmatpush.msra.mxu0 %v288
    %771 = vmatpush.msra.mxu0 %v287
    %772 = vmatpush.msra.mxu0 %v286
    %773 = vmatpush.msra.mxu0 %v285
    %774 = vmatpush.msra.mxu0 %v284
    %775 = vmatpush.msra.mxu0 %v283
    %776 = vmatpush.msra.mxu0 %v282
    %777 = vmatmul.f32.gmra.mxu0 %v28
    %v778 = vpop.f32.mrf.mxu0
    %v779 = vadd.f32 %v738, %v778
    %780 = vmatmul.f32.gmra.mxu0 %v41
    %v781 = vpop.f32.mrf.mxu0
    %v782 = vadd.f32 %v741, %v781
    %783 = vmatmul.f32.gmra.mxu0 %v54
    %v784 = vpop.f32.mrf.mxu0
    %v785 = vadd.f32 %v744, %v784
    %786 = vmatmul.f32.gmra.mxu0 %v67
    %v787 = vpop.f32.mrf.mxu0
    %v788 = vadd.f32 %v747, %v787
    %789 = vmatmul.f32.gmra.mxu0 %v80
    %v790 = vpop.f32.mrf.mxu0
    %v791 = vadd.f32 %v750, %v790
    %792 = vmatmul.f32.gmra.mxu0 %v93
    %v793 = vpop.f32.mrf.mxu0
    %v794 = vadd.f32 %v753, %v793
    %795 = vmatmul.f32.gmra.mxu0 %v106
    %v796 = vpop.f32.mrf.mxu0
    %v797 = vadd.f32 %v756, %v796
    %798 = vmatmul.f32.gmra.mxu0 %v119
    %v799 = vpop.f32.mrf.mxu0
    %v800 = vadd.f32 %v759, %v799
    %801 = vdwg.mxu0
    %802 = vmatpush.msra.mxu0 %v313
    %803 = vmatpush.msra.mxu0 %v312
    %804 = vmatpush.msra.mxu0 %v311
    %805 = vmatpush.msra.mxu0 %v310
    %806 = vmatpush.msra.mxu0 %v309
    %807 = vmatpush.msra.mxu0 %v308
    %808 = vmatpush.msra.mxu0 %v307
    %809 = vmatpush.msra.mxu0 %v306
    %810 = vmatpush.msra.mxu0 %v305
    %811 = vmatpush.msra.mxu0 %v304
    %812 = vmatpush.msra.mxu0 %v303
    %813 = vmatpush.msra.mxu0 %v302
    %814 = vmatpush.msra.mxu0 %v301
    %815 = vmatpush.msra.mxu0 %v300
    %816 = vmatpush.msra.mxu0 %v299
    %817 = vmatpush.msra.mxu0 %v298
    %818 = vmatmul.f32.gmra.mxu0 %v29
    %v819 = vpop.f32.mrf.mxu0
    %v820 = vadd.f32 %v779, %v819
    %821 = vmatmul.f32.gmra.mxu0 %v42
    %v822 = vpop.f32.mrf.mxu0
    %v823 = vadd.f32 %v782, %v822
    %824 = vmatmul.f32.gmra.mxu0 %v55
    %v825 = vpop.f32.mrf.mxu0
    %v826 = vadd.f32 %v785, %v825
    %827 = vmatmul.f32.gmra.mxu0 %v68
    %v828 = vpop.f32.mrf.mxu0
    %v829 = vadd.f32 %v788, %v828
    %830 = vmatmul.f32.gmra.mxu0 %v81
    %v831 = vpop.f32.mrf.mxu0
    %v832 = vadd.f32 %v791, %v831
    %833 = vmatmul.f32.gmra.mxu0 %v94
    %v834 = vpop.f32.mrf.mxu0
    %v835 = vadd.f32 %v794, %v834
    %836 = vmatmul.f32.gmra.mxu0 %v107
    %v837 = vpop.f32.mrf.mxu0
    %v838 = vadd.f32 %v797, %v837
    %839 = vmatmul.f32.gmra.mxu0 %v120
    %v840 = vpop.f32.mrf.mxu0
    %v841 = vadd.f32 %v800, %v840
    %842 = vdwg.mxu0
    %843 = vmatpush.msra.mxu0 0.0
    %844 = vmatpush.msra.mxu0 0.0
    %845 = vmatpush.msra.mxu0 0.0
    %846 = vmatpush.msra.mxu0 0.0
    %847 = vmatpush.msra.mxu0 %v325
    %848 = vmatpush.msra.mxu0 %v324
    %849 = vmatpush.msra.mxu0 %v323
    %850 = vmatpush.msra.mxu0 %v322
    %851 = vmatpush.msra.mxu0 %v321
    %852 = vmatpush.msra.mxu0 %v320
    %853 = vmatpush.msra.mxu0 %v319
    %854 = vmatpush.msra.mxu0 %v318
    %855 = vmatpush.msra.mxu0 %v317
    %856 = vmatpush.msra.mxu0 %v316
    %857 = vmatpush.msra.mxu0 %v315
    %858 = vmatpush.msra.mxu0 %v314
    %859 = vmatmul.f32.gmra.mxu0 %v328
    %v860 = vpop.f32.mrf.mxu0
    %v861 = vadd.f32 %v820, %v860
    %862 = vmatmul.f32.gmra.mxu0 %v331
    %v863 = vpop.f32.mrf.mxu0
    %v864 = vadd.f32 %v823, %v863
    %865 = vmatmul.f32.gmra.mxu0 %v334
    %v866 = vpop.f32.mrf.mxu0
    %v867 = vadd.f32 %v826, %v866
    %868 = vmatmul.f32.gmra.mxu0 %v337
    %v869 = vpop.f32.mrf.mxu0
    %v870 = vadd.f32 %v829, %v869
    %871 = vmatmul.f32.gmra.mxu0 %v340
    %v872 = vpop.f32.mrf.mxu0
    %v873 = vadd.f32 %v832, %v872
    %874 = vmatmul.f32.gmra.mxu0 %v343
    %v875 = vpop.f32.mrf.mxu0
    %v876 = vadd.f32 %v835, %v875
    %877 = vmatmul.f32.gmra.mxu0 %v346
    %v878 = vpop.f32.mrf.mxu0
    %v879 = vadd.f32 %v838, %v878
    %880 = vmatmul.f32.gmra.mxu0 %v349
    %v881 = vpop.f32.mrf.mxu0
    %v882 = vadd.f32 %v841, %v881
    %883 = vdwg.mxu0
    %v884 = vld [vmem:[%s2] sm:$0xff]
    %v885 = vld [vmem:[%s2 + $0x8] sm:$0xff]
    %v886 = vld [vmem:[%s2 + $0x10] sm:$0xff]
    %v887 = vld [vmem:[%s2 + $0x18] sm:$0xff]
    %v888 = vld [vmem:[%s2 + $0x20] sm:$0xff]
    %v889 = vld [vmem:[%s2 + $0x28] sm:$0xff]
    %v890 = vld [vmem:[%s2 + $0x30] sm:$0xff]
    %v891 = vld [vmem:[%s3] sm:$0x1]
    %v893 = vperm.slane %v891, 0
    %vm895 = vcmask 523264
    %v897 = vsel %vm895, %v884, 0
    %v900 = vsel %vm895, %v885, 0
    %v903 = vsel %vm895, %v886, 0
    %v906 = vsel %vm895, %v887, 0
    %v909 = vsel %vm895, %v888, 0
    %v912 = vsel %vm895, %v889, 0
    %v915 = vsel %vm895, %v890, 0
    %917 = vmatpush.msra.mxu0 0.0
    %918 = vmatpush.msra.mxu0 0.0
    %919 = vmatpush.msra.mxu0 0.0
    %920 = vmatpush.msra.mxu0 0.0
    %921 = vmatpush.msra.mxu0 0.0
    %922 = vmatpush.msra.mxu0 0.0
    %923 = vmatpush.msra.mxu0 0.0
    %924 = vmatpush.msra.mxu0 0.0
    %925 = vmatpush.msra.mxu0 %v882
    %926 = vmatpush.msra.mxu0 %v879
    %927 = vmatpush.msra.mxu0 %v876
    %928 = vmatpush.msra.mxu0 %v873
    %929 = vmatpush.msra.mxu0 %v870
    %930 = vmatpush.msra.mxu0 %v867
    %931 = vmatpush.msra.mxu0 %v864
    %932 = vmatpush.msra.mxu0 %v861
    %933 = vmatmul.f32.gmra.mxu0 %v897
    %v934 = vpop.f32.mrf.mxu0
    %v935 = vadd.f32 %v893, %v934
    %936 = vmatmul.f32.gmra.mxu0 %v900
    %v937 = vpop.f32.mrf.mxu0
    %v938 = vadd.f32 %v893, %v937
    %939 = vmatmul.f32.gmra.mxu0 %v903
    %v940 = vpop.f32.mrf.mxu0
    %v941 = vadd.f32 %v893, %v940
    %942 = vmatmul.f32.gmra.mxu0 %v906
    %v943 = vpop.f32.mrf.mxu0
    %v944 = vadd.f32 %v893, %v943
    %945 = vmatmul.f32.gmra.mxu0 %v909
    %v946 = vpop.f32.mrf.mxu0
    %v947 = vadd.f32 %v893, %v946
    %948 = vmatmul.f32.gmra.mxu0 %v912
    %v949 = vpop.f32.mrf.mxu0
    %v950 = vadd.f32 %v893, %v949
    %951 = vmatmul.f32.gmra.mxu0 %v915
    %v952 = vpop.f32.mrf.mxu0
    %v953 = vadd.f32 %v893, %v952
    %954 = vdwg.mxu0
    %v955 = vxor.u32 %v935, 2147483648
    %v956 = vxor.u32 %v938, 2147483648
    %v957 = vxor.u32 %v941, 2147483648
    %v958 = vxor.u32 %v944, 2147483648
    %v959 = vxor.u32 %v947, 2147483648
    %v960 = vxor.u32 %v950, 2147483648
    %v961 = vxor.u32 %v953, 2147483648
    %v962 = vmul.f32 %v955, 1.442695
    %v963 = vpow.pop %v962
    %v964 = vmul.f32 %v956, 1.442695
    %v965 = vpow.pop %v964
    %v966 = vmul.f32 %v957, 1.442695
    %v967 = vpow.pop %v966
    %v968 = vmul.f32 %v958, 1.442695
    %v969 = vpow.pop %v968
    %v970 = vmul.f32 %v959, 1.442695
    %v971 = vpow.pop %v970
    %v972 = vmul.f32 %v960, 1.442695
    %v973 = vpow.pop %v972
    %v974 = vmul.f32 %v961, 1.442695
    %v975 = vpow.pop %v974
    %v976 = vadd.f32 %v963, 1.0
    %v977 = vadd.f32 %v965, 1.0
    %v978 = vadd.f32 %v967, 1.0
    %v979 = vadd.f32 %v969, 1.0
    %v980 = vadd.f32 %v971, 1.0
    %v981 = vadd.f32 %v973, 1.0
    %v982 = vadd.f32 %v975, 1.0
    %v983 = vrcp.pop %v976
    %v984 = vmul.f32 %v976, %v983
    %v985 = vsub.f32 1.0, %v984
    %v986 = vmul.f32 %v983, %v985
    %v987 = vadd.f32 %v983, %v986
    %vm988 = vweird.f32 %v976
    %vm989 = vweird.f32 %v983
    %vm990 = vmor %vm988, %vm989
    %v991 = vsel %vm990, %v983, %v987
    %v992 = vand.u32 2147483647, %v976
    %vm993 = vcmp.eq.f32.partialorder %v992, 8.507059e+37
    %v994 = vand.u32 %v976, 2147483648
    %v995 = vor.u32 1.1754944e-38, %v994
    %v996 = vsel %vm993, %v995, %v991
    %v997 = vmul.f32 1.0, %v996
    %v998 = vrcp.pop %v977
    %v999 = vmul.f32 %v977, %v998
    %v1000 = vsub.f32 1.0, %v999
    %v1001 = vmul.f32 %v998, %v1000
    %v1002 = vadd.f32 %v998, %v1001
    %vm1003 = vweird.f32 %v977
    %vm1004 = vweird.f32 %v998
    %vm1005 = vmor %vm1003, %vm1004
    %v1006 = vsel %vm1005, %v998, %v1002
    %v1007 = vand.u32 2147483647, %v977
    %vm1008 = vcmp.eq.f32.partialorder %v1007, 8.507059e+37
    %v1009 = vand.u32 %v977, 2147483648
    %v1010 = vor.u32 1.1754944e-38, %v1009
    %v1011 = vsel %vm1008, %v1010, %v1006
    %v1012 = vmul.f32 1.0, %v1011
    %v1013 = vrcp.pop %v978
    %v1014 = vmul.f32 %v978, %v1013
    %v1015 = vsub.f32 1.0, %v1014
    %v1016 = vmul.f32 %v1013, %v1015
    %v1017 = vadd.f32 %v1013, %v1016
    %vm1018 = vweird.f32 %v978
    %vm1019 = vweird.f32 %v1013
    %vm1020 = vmor %vm1018, %vm1019
    %v1021 = vsel %vm1020, %v1013, %v1017
    %v1022 = vand.u32 2147483647, %v978
    %vm1023 = vcmp.eq.f32.partialorder %v1022, 8.507059e+37
    %v1024 = vand.u32 %v978, 2147483648
    %v1025 = vor.u32 1.1754944e-38, %v1024
    %v1026 = vsel %vm1023, %v1025, %v1021
    %v1027 = vmul.f32 1.0, %v1026
    %v1028 = vrcp.pop %v979
    %v1029 = vmul.f32 %v979, %v1028
    %v1030 = vsub.f32 1.0, %v1029
    %v1031 = vmul.f32 %v1028, %v1030
    %v1032 = vadd.f32 %v1028, %v1031
    %vm1033 = vweird.f32 %v979
    %vm1034 = vweird.f32 %v1028
    %vm1035 = vmor %vm1033, %vm1034
    %v1036 = vsel %vm1035, %v1028, %v1032
    %v1037 = vand.u32 2147483647, %v979
    %vm1038 = vcmp.eq.f32.partialorder %v1037, 8.507059e+37
    %v1039 = vand.u32 %v979, 2147483648
    %v1040 = vor.u32 1.1754944e-38, %v1039
    %v1041 = vsel %vm1038, %v1040, %v1036
    %v1042 = vmul.f32 1.0, %v1041
    %v1043 = vrcp.pop %v980
    %v1044 = vmul.f32 %v980, %v1043
    %v1045 = vsub.f32 1.0, %v1044
    %v1046 = vmul.f32 %v1043, %v1045
    %v1047 = vadd.f32 %v1043, %v1046
    %vm1048 = vweird.f32 %v980
    %vm1049 = vweird.f32 %v1043
    %vm1050 = vmor %vm1048, %vm1049
    %v1051 = vsel %vm1050, %v1043, %v1047
    %v1052 = vand.u32 2147483647, %v980
    %vm1053 = vcmp.eq.f32.partialorder %v1052, 8.507059e+37
    %v1054 = vand.u32 %v980, 2147483648
    %v1055 = vor.u32 1.1754944e-38, %v1054
    %v1056 = vsel %vm1053, %v1055, %v1051
    %v1057 = vmul.f32 1.0, %v1056
    %v1058 = vrcp.pop %v981
    %v1059 = vmul.f32 %v981, %v1058
    %v1060 = vsub.f32 1.0, %v1059
    %v1061 = vmul.f32 %v1058, %v1060
    %v1062 = vadd.f32 %v1058, %v1061
    %vm1063 = vweird.f32 %v981
    %vm1064 = vweird.f32 %v1058
    %vm1065 = vmor %vm1063, %vm1064
    %v1066 = vsel %vm1065, %v1058, %v1062
    %v1067 = vand.u32 2147483647, %v981
    %vm1068 = vcmp.eq.f32.partialorder %v1067, 8.507059e+37
    %v1069 = vand.u32 %v981, 2147483648
    %v1070 = vor.u32 1.1754944e-38, %v1069
    %v1071 = vsel %vm1068, %v1070, %v1066
    %v1072 = vmul.f32 1.0, %v1071
    %v1073 = vrcp.pop %v982
    %v1074 = vmul.f32 %v982, %v1073
    %v1075 = vsub.f32 1.0, %v1074
    %v1076 = vmul.f32 %v1073, %v1075
    %v1077 = vadd.f32 %v1073, %v1076
    %vm1078 = vweird.f32 %v982
    %vm1079 = vweird.f32 %v1073
    %vm1080 = vmor %vm1078, %vm1079
    %v1081 = vsel %vm1080, %v1073, %v1077
    %v1082 = vand.u32 2147483647, %v982
    %vm1083 = vcmp.eq.f32.partialorder %v1082, 8.507059e+37
    %v1084 = vand.u32 %v982, 2147483648
    %v1085 = vor.u32 1.1754944e-38, %v1084
    %v1086 = vsel %vm1083, %v1085, %v1081
    %v1087 = vmul.f32 1.0, %v1086
    %vm1088 = vcmask 228352
    %1089 = vst.msk [vmem:[#allocation2] sm:$0xff] %vm1088, %v997
    %1090 = vst.msk [vmem:[#allocation2 + $0x8] sm:$0xff] %vm1088, %v1012
    %1091 = vst.msk [vmem:[#allocation2 + $0x10] sm:$0xff] %vm1088, %v1027
    %1092 = vst.msk [vmem:[#allocation2 + $0x18] sm:$0xff] %vm1088, %v1042
    %1093 = vst.msk [vmem:[#allocation2 + $0x20] sm:$0xff] %vm1088, %v1057
    %1094 = vst.msk [vmem:[#allocation2 + $0x28] sm:$0xff] %vm1088, %v1072
    %1095 = vst.msk [vmem:[#allocation2 + $0x30] sm:$0xff] %vm1088, %v1087
    // Predicated region
    $region18: #{decoder_forward.9} parent=1 // pred_check
      _
    $region19: #{decoder_forward.9} parent=1 // pred_check_branch
      %1097 = sbr.rel (0) target = $region21
    $region20: #{decoder_forward.9} parent=1 // pred_region
      %1099 = vsyncadd [#allocation3], 0
      %s1100 = sshll.u32 [#allocation2], 4
      %s1101 = int_to_ptr.vmem [resolvable:$true] %s1100
      %s1102 = sshll.u32 %s4, 4
      %s1103 = int_to_ptr.hbm [resolvable:$true] %s1102
      %1108 = dma.vmem_to_hbm [thread:$0]  %s1101, 896, %s1103, [#allocation3], 128, 128, 8
    $region21: #{decoder_forward.9} parent=1 // pred_fallthru
      _
    // Predicated region
    $region22: #{decoder_forward.9} parent=1 // pred_check
      _
    $region23: #{decoder_forward.9} parent=1 // pred_check_branch
      %1110 = sbr.rel (0) target = $region25
    $region24: #{decoder_forward.9} parent=1 // pred_region
      %1112 = dma.done [#allocation3], 896
    $region25: #{decoder_forward.9} parent=1 // pred_fallthru
      _
    %1113 = vsyncpa [#allocation3], 1

</llo_original>
